<compile_context>
chip_gen: v7x
topology: tpu7x:2x2x1
jax: 0.10.0
libtpu: 0.0.40
codegen_flags: <defaults>
</compile_context>

<pallas_src>
import math
import functools

import jax
import jax.numpy as jnp
from jax.experimental import pallas as pl
from jax.experimental.pallas import tpu as pltpu


# ----------------------------- in-kernel math ------------------------------

def _erf(x):
    # Rational approximation (Abramowitz & Stegun 7.1.26), |err| < 1.5e-7.
    # Divide done as EUP approximate reciprocal + one Newton step (frees VALU).
    a1, a2, a3, a4, a5 = 0.254829592, -0.284496736, 1.421413741, -1.453152027, 1.061405429
    p = 0.3275911
    s = jnp.where(x >= 0.0, 1.0, -1.0)
    ax = jnp.abs(x)
    den = 1.0 + p * ax
    r = pl.reciprocal(den, approx=True)
    r = r * (2.0 - den * r)                      # one Newton-Raphson refinement
    poly = ((((a5 * r + a4) * r + a3) * r + a2) * r + a1) * r
    return s * (1.0 - poly * jnp.exp(-ax * ax))


def _gelu_exact(x):
    # nn.GELU() default (erf form): 0.5 * x * (1 + erf(x / sqrt(2)))
    return 0.5 * x * (1.0 + _erf(x * (1.0 / math.sqrt(2.0))))


# ------------------------------- the kernel --------------------------------

def _bottleneck_kan_kernel(xh_ref, w1_ref, b1_ref, waug_ref, hm_ref, prelu_ref,
                           out_ref, aug_ref, p1s_ref, p2s_ref,
                           *, H, W, C1, CM, C2, G, B, KNOTS, SPLINE_ORDER, add, in_eps):
    HW = H * W
    PAD = W + 1                 # flat-halo width on each side of every row
    CA = CM * (G + 1)           # GELU(t) channels + spline-basis channels
    R1 = B * C1                 # rows per tap in the cv1 patch stack
    R2 = B * CA                 # rows per tap in the KAN patch stack
    MR = max(R1, R2)

    # Horizontal-validity masks (dx=0 kills w==0, dx=2 kills w==W-1),
    # broadcast ONCE and reused for every masked tap of both im2col builds.
    m0 = jnp.broadcast_to(hm_ref[0:1, :], (MR, HW))
    m2 = jnp.broadcast_to(hm_ref[1:2, :], (MR, HW))

    def build_patches(src, dst, rows):
        # src: flat-halo ref (rows, HW + 2*PAD); dst: (9*rows, HW) patch stack.
        # Tap (dy, dx) is a pure lane shift of the flat layout; halo zeros
        # handle vertical out-of-range taps, the masks horizontal row-wrap.
        for dy in range(3):
            for dx in range(3):
                v = src[:, pl.ds(dy * W + dx, HW)]
                if dx == 0:
                    v = v * m0[:rows]
                elif dx == 2:
                    v = v * m2[:rows]
                dst[pl.ds((dy * 3 + dx) * rows, rows), :] = v

    # ---------- cv1 im2col (in-kernel) + ONE fused MXU contraction ----------
    build_patches(xh_ref, p1s_ref, R1)
    # Block-diagonal (over the batch tile) BN-folded weight, K = 9*B*C1.
    t = jnp.dot(w1_ref[...], p1s_ref[...], preferred_element_type=jnp.float32)  # (B*CM, HW)
    t = t + b1_ref[...]
    t = t * jax.nn.sigmoid(t)                                                    # SiLU

    # ---------- halo upkeep of the shared [GELU(t); bases] scratch ----------
    # Interior lanes are fully rewritten below; only the halo bands must stay
    # zero (done per step so correctness holds under "parallel" core sharding).
    zb = jnp.zeros((R2, PAD), jnp.float32)
    aug_ref[:, pl.ds(0, PAD)] = zb
    aug_ref[:, pl.ds(PAD + HW, PAD)] = zb

    # ---------- base-path input: GELU(t) ----------
    gel = _gelu_exact(t)                                          # (B*CM, HW)
    for b in range(B):
        aug_ref[pl.ds(b * CA, CM), pl.ds(PAD, HW)] = gel[b * CM:(b + 1) * CM]

    # ---------- spline bases: Cox-de Boor, vectorized over batch*channels ----------
    g = KNOTS                                                     # python-float knots
    nk = len(g)
    tm = [t - g[i] for i in range(nk)]                            # hoisted (t - g[i])
    step = [(t >= g[i]).astype(jnp.float32) for i in range(nk)]   # 12 step functions
    bas = [step[j] - step[j + 1] for j in range(nk - 1)]          # order-0 bases
    for k in range(1, SPLINE_ORDER + 1):
        nxt = []
        for j in range(len(bas) - 1):
            d1 = g[j + k] - g[j]
            d1 = d1 if d1 != 0.0 else 1.0          # torch.where guard (first term only)
            inv1 = 1.0 / d1
            # TODO(synk): second denominator unguarded to match the PyTorch
            # reference; identical for the uniform knot grid used here.
            ninv2 = -1.0 / (g[j + k + 1] - g[j + 1])
            nxt.append((tm[j] * inv1) * bas[j] + (tm[j + k + 1] * ninv2) * bas[j + 1])
        bas = nxt                                                 # order-k bases
    for j in range(G):                                            # row CM + j*CM + c per image
        for b in range(B):
            aug_ref[pl.ds(b * CA + CM + j * CM, CM), pl.ds(PAD, HW)] = \
                bas[j][b * CM:(b + 1) * CM]

    # ---------- merged base+spline conv: im2col + ONE dot, K = 9*B*CA ----------
    build_patches(aug_ref, p2s_ref, R2)
    acc = jnp.dot(waug_ref[...], p2s_ref[...], preferred_element_type=jnp.float32)  # (B*C2, HW)

    # ---------- InstanceNorm2d (affine=False, eps=1e-5, two-pass) + PReLU ----------
    inv_hw = 1.0 / HW
    mu = jnp.sum(acc, axis=1, keepdims=True) * inv_hw
    d = acc - mu
    var = jnp.sum(d * d, axis=1, keepdims=True) * inv_hw
    y = d * jax.lax.rsqrt(var + in_eps)
    a = prelu_ref[...]                                            # (1, 1) PReLU slope
    y = jnp.where(y >= 0.0, y, a * y)

    # ---------- residual (centre tap of the flat-halo input == original x) ----------
    if add:
        y = y + xh_ref[:, pl.ds(PAD, HW)]                         # needs C1 == C2
    out_ref[...] = y


# ------------------------------- the wrapper --------------------------------

def _pick_batch_tile(n, c1, c2):
    # Largest batch tile <= 8 that divides N and keeps the row-blocked
    # BlockSpecs 8-sublane aligned (or covers the whole array).  For realistic
    # N this still leaves each TensorCore several pipelined grid steps (v7x).
    for b in range(min(n, 8), 0, -1):
        if n % b:
            continue
        if b == n or ((b * c1) % 8 == 0 and (b * c2) % 8 == 0):
            return b
    return 1


def bottleneck_kanconv2d(x_nchw, params, *, add):
    """x_nchw: (N, C1, H, W) float32. Returns (N, C2, H, W) float32."""
    w1, b1, wb, ws, knots, prelu_a = params
    N, C1, H, W = x_nchw.shape
    CM = w1.shape[-1]
    C2 = wb.shape[-1]
    G = ws.shape[2] // CM
    CA = CM * (G + 1)
    HW = H * W
    PAD = W + 1
    HWP = HW + 2 * PAD

    B = _pick_batch_tile(N, C1, C2)
    assert N % B == 0

    x = x_nchw.astype(jnp.float32)

    # Flat-halo input: each (image, channel) row of length H*W gets W+1 zero
    # lanes on each side, so every 3x3 tap inside the kernel is a pure lane
    # shift (vertical out-of-range taps read the zeros).  This is the only
    # image-sized HBM traffic — im2col happens in VMEM inside the kernel.
    xh = jnp.pad(x.reshape(N * C1, HW), ((0, 0), (PAD, PAD)))

    eye = jnp.eye(B, dtype=jnp.float32)

    # cv1 weight (BN pre-folded), per tap (CM, C1), block-diagonal over the
    # batch tile: row = b*CM + m, col = tap*(B*C1) + b*C1 + c.
    w19 = jnp.transpose(w1, (0, 1, 3, 2)).reshape(9, CM, C1)
    w1_blk = jnp.einsum('bB,tmc->bmtBc', eye, w19).reshape(B * CM, 9 * B * C1)
    b1_blk = jnp.tile(b1, (B,)).reshape(B * CM, 1)

    # Merged base+spline weight, per tap (C2, CA).  Augmented input channel
    # order is [GELU channel c ; basis j of channel c at CM + j*CM + c], i.e.
    # the spline input channels are permuted from PyTorch's c*G + j order.
    wb_t = jnp.transpose(wb, (0, 1, 3, 2))                                   # (3,3,C2,CM)
    ws_t = jnp.transpose(ws, (0, 1, 3, 2))                                   # (3,3,C2,CM*G)
    ws_p = ws_t.reshape(3, 3, C2, CM, G).transpose(0, 1, 2, 4, 3).reshape(3, 3, C2, G * CM)
    waug9 = jnp.concatenate([wb_t, ws_p], axis=-1).reshape(9, C2, CA)
    waug_blk = jnp.einsum('bB,tor->botBr', eye, waug9).reshape(B * C2, 9 * B * CA)

    # Horizontal-validity masks (dx=0 taps must ignore w==0, dx=2 taps w==W-1).
    col = jnp.arange(HW, dtype=jnp.int32) % W
    hmask = jnp.stack([(col != 0).astype(jnp.float32),
                       (col != W - 1).astype(jnp.float32)], axis=0)          # (2, HW)

    kernel = functools.partial(
        _bottleneck_kan_kernel,
        H=H, W=W, C1=C1, CM=CM, C2=C2, G=G, B=B,
        KNOTS=tuple(float(k) for k in knots), SPLINE_ORDER=3, add=add, in_eps=1e-5,
    )

    # VMEM per step (B=2): patch stacks ~405 KB + aug scratch ~42 KB + small
    # weight/input/output blocks — < 0.5 MiB, far inside v7x's 64 MiB physical
    # / 32 MiB scoped VMEM; scales linearly in B if the tile is grown.
    out = pl.pallas_call(
        kernel,
        out_shape=jax.ShapeDtypeStruct((N * C2, HW), jnp.float32),
        grid_spec=pltpu.PrefetchScalarGridSpec(
            num_scalar_prefetch=0,
            grid=(N // B,),
            in_specs=[
                pl.BlockSpec((B * C1, HWP), lambda i: (i, 0)),
                pl.BlockSpec((B * CM, 9 * B * C1), lambda i: (0, 0)),
                pl.BlockSpec((B * CM, 1), lambda i: (0, 0)),
                pl.BlockSpec((B * C2, 9 * B * CA), lambda i: (0, 0)),
                pl.BlockSpec((2, HW), lambda i: (0, 0)),
                pl.BlockSpec((1, 1), lambda i: (0, 0)),
            ],
            out_specs=pl.BlockSpec((B * C2, HW), lambda i: (i, 0)),
            scratch_shapes=[
                pltpu.VMEM((B * CA, HWP), jnp.float32),        # flat-halo [GELU(t); bases]
                pltpu.VMEM((9 * B * C1, HW), jnp.float32),     # cv1 im2col patch stack
                pltpu.VMEM((9 * B * CA, HW), jnp.float32),     # KAN im2col patch stack
            ],
        ),
        compiler_params=pltpu.CompilerParams(dimension_semantics=("parallel",)),
    )(xh, w1_blk, b1_blk, waug_blk, hmask, prelu_a)

    return out.reshape(N, C2, H, W)                              # lane-flat HW -> (H, W)


# --------------------------- deterministic params ---------------------------

def init_params(key, c1, c2, *, e=0.5, grid_size=5, spline_order=3, grid_range=(-1.0, 1.0)):
    c_ = int(c2 * e)
    G = grid_size + spline_order
    k1, k2, k3 = jax.random.split(key, 3)

    def kaiming_uniform(k, shape, fan_in):
        bound = math.sqrt(3.0 / fan_in)
        return jax.random.uniform(k, shape, jnp.float32, -bound, bound)

    # conv weights stored HWIO (PyTorch is OIHW)
    w1 = kaiming_uniform(k1, (3, 3, c1, c_), 3 * 3 * c1)             # cv1.conv
    wb = kaiming_uniform(k2, (3, 3, c_, c2), 3 * 3 * c_)             # KAN base_conv
    ws = kaiming_uniform(k3, (3, 3, G * c_, c2), 3 * 3 * G * c_)     # KAN spline_conv (in ch = c*G+j)

    # BatchNorm2d (inference-mode semantics): gamma=1, beta=0, mean=0, var=1,
    # eps=1e-5, folded into cv1 conv weight + bias.
    bn_eps = 1e-5
    gamma = jnp.ones((c_,), jnp.float32)
    beta = jnp.zeros((c_,), jnp.float32)
    rmean = jnp.zeros((c_,), jnp.float32)
    rvar = jnp.ones((c_,), jnp.float32)
    scale = gamma / jnp.sqrt(rvar + bn_eps)
    shift = beta - rmean * scale
    w1 = w1 * scale[None, None, None, :]
    b1 = shift                                                       # (c_,)

    # B-spline knot grid (torch.linspace equivalent), baked as Python floats.
    lo = grid_range[0] - (grid_range[1] - grid_range[0]) / grid_size * spline_order
    hi = grid_range[1] + (grid_range[1] - grid_range[0]) / grid_size * spline_order
    n = grid_size + 2 * spline_order + 1
    knots = tuple(lo + (hi - lo) * i / (n - 1) for i in range(n))

    prelu_a = jnp.full((1, 1), 0.25, jnp.float32)                    # nn.PReLU() default
    return (w1, b1, wb, ws, knots, prelu_a)


if __name__ == "__main__":
    key = jax.random.PRNGKey(0)
    kx, kp = jax.random.split(key)

    c1, c2 = 4, 4                     # shortcut active since c1 == c2
    x = jax.random.normal(kx, (2, c1, 16, 16), jnp.float32)          # NCHW like PyTorch

    params = init_params(kp, c1, c2)
    add = True and (c1 == c2)

    out = bottleneck_kanconv2d(x, params, add=add)
    jax.block_until_ready(out)
    assert out.shape == (2, c2, 16, 16)
    print("KERNEL_OK")
</pallas_src>

<mosaic_0001>
module attributes {stable_mosaic.version = 11 : i64} {
  func.func @_bottleneck_kan_kernel(%arg0: i32, %arg1: memref<8x290xf32, #tpu.memory_space<vmem>>, %arg2: memref<4x72xf32, #tpu.memory_space<vmem>>, %arg3: memref<4x1xf32, #tpu.memory_space<vmem>>, %arg4: memref<8x324xf32, #tpu.memory_space<vmem>>, %arg5: memref<2x256xf32, #tpu.memory_space<vmem>>, %arg6: memref<1x1xf32, #tpu.memory_space<vmem>>, %arg7: memref<8x256xf32, #tpu.memory_space<vmem>>, %arg8: memref<36x290xf32, #tpu.memory_space<vmem>>, %arg9: memref<72x256xf32, #tpu.memory_space<vmem>>, %arg10: memref<324x256xf32, #tpu.memory_space<vmem>>) attributes {dimension_semantics = [#tpu.dimension_semantics<parallel>], iteration_bounds = array<i64: 1>, scalar_prefetch = 0 : i64, scratch_operands = 3 : i64, tpu.core_type = #tpu.core_type<tc>, window_params = [{transform_indices = @transform_0, window_bounds = array<i64: 8, 290>}, {pipeline_mode = #tpu.pipeline_mode<synchronous>, transform_indices = @transform_1, window_bounds = array<i64: 4, 72>}, {pipeline_mode = #tpu.pipeline_mode<synchronous>, transform_indices = @transform_2, window_bounds = array<i64: 4, 1>}, {pipeline_mode = #tpu.pipeline_mode<synchronous>, transform_indices = @transform_3, window_bounds = array<i64: 8, 324>}, {pipeline_mode = #tpu.pipeline_mode<synchronous>, transform_indices = @transform_4, window_bounds = array<i64: 2, 256>}, {pipeline_mode = #tpu.pipeline_mode<synchronous>, transform_indices = @transform_5, window_bounds = array<i64: 1, 1>}, {transform_indices = @transform_6, window_bounds = array<i64: 8, 256>}]} {
    %c0 = arith.constant 0 : index
    %c0_0 = arith.constant 0 : index
    %0 = vector.load %arg5[%c0, %c0_0] : memref<2x256xf32, #tpu.memory_space<vmem>>, vector<1x256xf32>
    %1 = vector.shape_cast %0 : vector<1x256xf32> to vector<1x256xf32>
    %2 = vector.broadcast %1 : vector<1x256xf32> to vector<36x256xf32>
    %c1 = arith.constant 1 : index
    %c0_1 = arith.constant 0 : index
    %3 = vector.load %arg5[%c1, %c0_1] : memref<2x256xf32, #tpu.memory_space<vmem>>, vector<1x256xf32>
    %4 = vector.shape_cast %3 : vector<1x256xf32> to vector<1x256xf32>
    %5 = vector.broadcast %4 : vector<1x256xf32> to vector<36x256xf32>
    %c0_2 = arith.constant 0 : index
    %c0_3 = arith.constant 0 : index
    %6 = vector.load %arg1[%c0_2, %c0_3] : memref<8x290xf32, #tpu.memory_space<vmem>>, vector<8x256xf32>
    %7 = vector.extract_strided_slice %2 {offsets = [0, 0], sizes = [8, 256], strides = [1, 1]} : vector<36x256xf32> to vector<8x256xf32>
    %8 = arith.mulf %6, %7 : vector<8x256xf32>
    %c0_4 = arith.constant 0 : index
    %c0_5 = arith.constant 0 : index
    %9 = vector.load %arg9[%c0_4, %c0_5] : memref<72x256xf32, #tpu.memory_space<vmem>>, vector<8x256xf32>
    tpu.vector_store %arg9[%c0_4, %c0_5], %8 {strides = array<i32>} : memref<72x256xf32, #tpu.memory_space<vmem>>, vector<8x256xf32>,
    %c0_6 = arith.constant 0 : index
    %c1_7 = arith.constant 1 : index
    %10 = vector.load %arg1[%c0_6, %c1_7] : memref<8x290xf32, #tpu.memory_space<vmem>>, vector<8x256xf32>
    %c8 = arith.constant 8 : index
    %c0_8 = arith.constant 0 : index
    %11 = vector.load %arg9[%c8, %c0_8] : memref<72x256xf32, #tpu.memory_space<vmem>>, vector<8x256xf32>
    tpu.vector_store %arg9[%c8, %c0_8], %10 {strides = array<i32>} : memref<72x256xf32, #tpu.memory_space<vmem>>, vector<8x256xf32>,
    %c0_9 = arith.constant 0 : index
    %c2 = arith.constant 2 : index
    %12 = vector.load %arg1[%c0_9, %c2] : memref<8x290xf32, #tpu.memory_space<vmem>>, vector<8x256xf32>
    %13 = vector.extract_strided_slice %5 {offsets = [0, 0], sizes = [8, 256], strides = [1, 1]} : vector<36x256xf32> to vector<8x256xf32>
    %14 = arith.mulf %12, %13 : vector<8x256xf32>
    %c16 = arith.constant 16 : index
    %c0_10 = arith.constant 0 : index
    %15 = vector.load %arg9[%c16, %c0_10] : memref<72x256xf32, #tpu.memory_space<vmem>>, vector<8x256xf32>
    tpu.vector_store %arg9[%c16, %c0_10], %14 {strides = array<i32>} : memref<72x256xf32, #tpu.memory_space<vmem>>, vector<8x256xf32>,
    %c0_11 = arith.constant 0 : index
    %c16_12 = arith.constant 16 : index
    %16 = vector.load %arg1[%c0_11, %c16_12] : memref<8x290xf32, #tpu.memory_space<vmem>>, vector<8x256xf32>
    %17 = vector.extract_strided_slice %2 {offsets = [0, 0], sizes = [8, 256], strides = [1, 1]} : vector<36x256xf32> to vector<8x256xf32>
    %18 = arith.mulf %16, %17 : vector<8x256xf32>
    %c24 = arith.constant 24 : index
    %c0_13 = arith.constant 0 : index
    %19 = vector.load %arg9[%c24, %c0_13] : memref<72x256xf32, #tpu.memory_space<vmem>>, vector<8x256xf32>
    tpu.vector_store %arg9[%c24, %c0_13], %18 {strides = array<i32>} : memref<72x256xf32, #tpu.memory_space<vmem>>, vector<8x256xf32>,
    %c0_14 = arith.constant 0 : index
    %c17 = arith.constant 17 : index
    %20 = vector.load %arg1[%c0_14, %c17] : memref<8x290xf32, #tpu.memory_space<vmem>>, vector<8x256xf32>
    %c32 = arith.constant 32 : index
    %c0_15 = arith.constant 0 : index
    %21 = vector.load %arg9[%c32, %c0_15] : memref<72x256xf32, #tpu.memory_space<vmem>>, vector<8x256xf32>
    tpu.vector_store %arg9[%c32, %c0_15], %20 {strides = array<i32>} : memref<72x256xf32, #tpu.memory_space<vmem>>, vector<8x256xf32>,
    %c0_16 = arith.constant 0 : index
    %c18 = arith.constant 18 : index
    %22 = vector.load %arg1[%c0_16, %c18] : memref<8x290xf32, #tpu.memory_space<vmem>>, vector<8x256xf32>
    %23 = vector.extract_strided_slice %5 {offsets = [0, 0], sizes = [8, 256], strides = [1, 1]} : vector<36x256xf32> to vector<8x256xf32>
    %24 = arith.mulf %22, %23 : vector<8x256xf32>
    %c40 = arith.constant 40 : index
    %c0_17 = arith.constant 0 : index
    %25 = vector.load %arg9[%c40, %c0_17] : memref<72x256xf32, #tpu.memory_space<vmem>>, vector<8x256xf32>
    tpu.vector_store %arg9[%c40, %c0_17], %24 {strides = array<i32>} : memref<72x256xf32, #tpu.memory_space<vmem>>, vector<8x256xf32>,
    %c0_18 = arith.constant 0 : index
    %c32_19 = arith.constant 32 : index
    %26 = vector.load %arg1[%c0_18, %c32_19] : memref<8x290xf32, #tpu.memory_space<vmem>>, vector<8x256xf32>
    %27 = vector.extract_strided_slice %2 {offsets = [0, 0], sizes = [8, 256], strides = [1, 1]} : vector<36x256xf32> to vector<8x256xf32>
    %28 = arith.mulf %26, %27 : vector<8x256xf32>
    %c48 = arith.constant 48 : index
    %c0_20 = arith.constant 0 : index
    %29 = vector.load %arg9[%c48, %c0_20] : memref<72x256xf32, #tpu.memory_space<vmem>>, vector<8x256xf32>
    tpu.vector_store %arg9[%c48, %c0_20], %28 {strides = array<i32>} : memref<72x256xf32, #tpu.memory_space<vmem>>, vector<8x256xf32>,
    %c0_21 = arith.constant 0 : index
    %c33 = arith.constant 33 : index
    %30 = vector.load %arg1[%c0_21, %c33] : memref<8x290xf32, #tpu.memory_space<vmem>>, vector<8x256xf32>
    %c56 = arith.constant 56 : index
    %c0_22 = arith.constant 0 : index
    %31 = vector.load %arg9[%c56, %c0_22] : memref<72x256xf32, #tpu.memory_space<vmem>>, vector<8x256xf32>
    tpu.vector_store %arg9[%c56, %c0_22], %30 {strides = array<i32>} : memref<72x256xf32, #tpu.memory_space<vmem>>, vector<8x256xf32>,
    %c0_23 = arith.constant 0 : index
    %c34 = arith.constant 34 : index
    %32 = vector.load %arg1[%c0_23, %c34] : memref<8x290xf32, #tpu.memory_space<vmem>>, vector<8x256xf32>
    %33 = vector.extract_strided_slice %5 {offsets = [0, 0], sizes = [8, 256], strides = [1, 1]} : vector<36x256xf32> to vector<8x256xf32>
    %34 = arith.mulf %32, %33 : vector<8x256xf32>
    %c64 = arith.constant 64 : index
    %c0_24 = arith.constant 0 : index
    %35 = vector.load %arg9[%c64, %c0_24] : memref<72x256xf32, #tpu.memory_space<vmem>>, vector<8x256xf32>
    tpu.vector_store %arg9[%c64, %c0_24], %34 {strides = array<i32>} : memref<72x256xf32, #tpu.memory_space<vmem>>, vector<8x256xf32>,
    %c0_25 = arith.constant 0 : index
    %c0_26 = arith.constant 0 : index
    %36 = vector.load %arg2[%c0_25, %c0_26] : memref<4x72xf32, #tpu.memory_space<vmem>>, vector<4x72xf32>
    %c0_27 = arith.constant 0 : index
    %c0_28 = arith.constant 0 : index
    %37 = vector.load %arg9[%c0_27, %c0_28] : memref<72x256xf32, #tpu.memory_space<vmem>>, vector<72x256xf32>
    %cst = arith.constant dense<0.000000e+00> : vector<4x256xf32>
    %38 = tpu.matmul %36, %37, %cst {dimension_numbers = #tpu.dot_dimension_numbers<[1], [0], [0], [1], [0, 0, 1, 1], [], []>} : vector<4x72xf32>, vector<72x256xf32>, vector<4x256xf32> -> vector<4x256xf32>
    %c0_29 = arith.constant 0 : index
    %c0_30 = arith.constant 0 : index
    %39 = vector.load %arg3[%c0_29, %c0_30] : memref<4x1xf32, #tpu.memory_space<vmem>>, vector<4x1xf32>
    %40 = vector.broadcast %39 : vector<4x1xf32> to vector<4x256xf32>
    %41 = arith.addf %38, %40 : vector<4x256xf32>
    %42 = arith.negf %41 : vector<4x256xf32>
    %43 = math.exp %42 : vector<4x256xf32>
    %cst_31 = arith.constant 1.000000e+00 : f32
    %44 = vector.broadcast %cst_31 : f32 to vector<4x256xf32>
    %45 = arith.addf %44, %43 : vector<4x256xf32>
    %46 = arith.divf %44, %45 : vector<4x256xf32>
    %47 = arith.mulf %41, %46 : vector<4x256xf32>
    %cst_32 = arith.constant 0.000000e+00 : f32
    %48 = vector.broadcast %cst_32 : f32 to vector<36x17xf32>
    %c0_33 = arith.constant 0 : index
    %c0_34 = arith.constant 0 : index
    %49 = vector.load %arg8[%c0_33, %c0_34] : memref<36x290xf32, #tpu.memory_space<vmem>>, vector<36x17xf32>
    tpu.vector_store %arg8[%c0_33, %c0_34], %48 {strides = array<i32>} : memref<36x290xf32, #tpu.memory_space<vmem>>, vector<36x17xf32>,
    %c0_35 = arith.constant 0 : index
    %c273 = arith.constant 273 : index
    %50 = vector.load %arg8[%c0_35, %c273] : memref<36x290xf32, #tpu.memory_space<vmem>>, vector<36x17xf32>
    tpu.vector_store %arg8[%c0_35, %c273], %48 {strides = array<i32>} : memref<36x290xf32, #tpu.memory_space<vmem>>, vector<36x17xf32>,
    %cst_36 = arith.constant 5.000000e-01 : f32
    %51 = vector.broadcast %cst_36 : f32 to vector<4x256xf32>
    %52 = arith.mulf %51, %47 : vector<4x256xf32>
    %cst_37 = arith.constant 0.707106769 : f32
    %53 = vector.broadcast %cst_37 : f32 to vector<4x256xf32>
    %54 = arith.mulf %47, %53 : vector<4x256xf32>
    %cst_38 = arith.constant 0.000000e+00 : f32
    %55 = vector.broadcast %cst_38 : f32 to vector<4x256xf32>
    %56 = arith.cmpf oge, %54, %55 : vector<4x256xf32>
    %cst_39 = arith.constant 1.000000e+00 : f32
    %cst_40 = arith.constant -1.000000e+00 : f32
    %57 = vector.broadcast %cst_39 : f32 to vector<4x256xf32>
    %58 = vector.broadcast %cst_40 : f32 to vector<4x256xf32>
    %59 = arith.select %56, %57, %58 : vector<4x256xi1>, vector<4x256xf32>
    %60 = math.absf %54 : vector<4x256xf32>
    %cst_41 = arith.constant 0.327591091 : f32
    %61 = vector.broadcast %cst_41 : f32 to vector<4x256xf32>
    %62 = arith.mulf %61, %60 : vector<4x256xf32>
    %cst_42 = arith.constant 1.000000e+00 : f32
    %63 = vector.broadcast %cst_42 : f32 to vector<4x256xf32>
    %64 = arith.addf %63, %62 : vector<4x256xf32>
    %65 = tpu.reciprocal %64 {approx = true} : vector<4x256xf32> -> vector<4x256xf32>
    %66 = arith.mulf %64, %65 : vector<4x256xf32>
    %cst_43 = arith.constant 2.000000e+00 : f32
    %67 = vector.broadcast %cst_43 : f32 to vector<4x256xf32>
    %68 = arith.subf %67, %66 : vector<4x256xf32>
    %69 = arith.mulf %65, %68 : vector<4x256xf32>
    %cst_44 = arith.constant 1.06140542 : f32
    %70 = vector.broadcast %cst_44 : f32 to vector<4x256xf32>
    %71 = arith.mulf %70, %69 : vector<4x256xf32>
    %cst_45 = arith.constant -1.45315206 : f32
    %72 = vector.broadcast %cst_45 : f32 to vector<4x256xf32>
    %73 = arith.addf %71, %72 : vector<4x256xf32>
    %74 = arith.mulf %73, %69 : vector<4x256xf32>
    %cst_46 = arith.constant 1.42141378 : f32
    %75 = vector.broadcast %cst_46 : f32 to vector<4x256xf32>
    %76 = arith.addf %74, %75 : vector<4x256xf32>
    %77 = arith.mulf %76, %69 : vector<4x256xf32>
    %cst_47 = arith.constant -0.284496725 : f32
    %78 = vector.broadcast %cst_47 : f32 to vector<4x256xf32>
    %79 = arith.addf %77, %78 : vector<4x256xf32>
    %80 = arith.mulf %79, %69 : vector<4x256xf32>
    %cst_48 = arith.constant 0.254829586 : f32
    %81 = vector.broadcast %cst_48 : f32 to vector<4x256xf32>
    %82 = arith.addf %80, %81 : vector<4x256xf32>
    %83 = arith.mulf %82, %69 : vector<4x256xf32>
    %cst_49 = arith.constant 0.000000e+00 : f32
    %84 = vector.broadcast %cst_49 : f32 to vector<4x256xf32>
    %85 = arith.subf %84, %60 : vector<4x256xf32>
    %86 = arith.mulf %85, %60 : vector<4x256xf32>
    %87 = math.exp %86 : vector<4x256xf32>
    %88 = arith.mulf %83, %87 : vector<4x256xf32>
    %cst_50 = arith.constant 1.000000e+00 : f32
    %89 = vector.broadcast %cst_50 : f32 to vector<4x256xf32>
    %90 = arith.subf %89, %88 : vector<4x256xf32>
    %91 = arith.mulf %59, %90 : vector<4x256xf32>
    %cst_51 = arith.constant 1.000000e+00 : f32
    %92 = vector.broadcast %cst_51 : f32 to vector<4x256xf32>
    %93 = arith.addf %92, %91 : vector<4x256xf32>
    %94 = arith.mulf %52, %93 : vector<4x256xf32>
    %95 = vector.extract_strided_slice %94 {offsets = [0, 0], sizes = [2, 256], strides = [1, 1]} : vector<4x256xf32> to vector<2x256xf32>
    %c0_52 = arith.constant 0 : index
    %c17_53 = arith.constant 17 : index
    %96 = vector.load %arg8[%c0_52, %c17_53] : memref<36x290xf32, #tpu.memory_space<vmem>>, vector<2x256xf32>
    tpu.vector_store %arg8[%c0_52, %c17_53], %95 {strides = array<i32>} : memref<36x290xf32, #tpu.memory_space<vmem>>, vector<2x256xf32>,
    %97 = vector.extract_strided_slice %94 {offsets = [2, 0], sizes = [2, 256], strides = [1, 1]} : vector<4x256xf32> to vector<2x256xf32>
    %c18_54 = arith.constant 18 : index
    %c17_55 = arith.constant 17 : index
    %98 = vector.load %arg8[%c18_54, %c17_55] : memref<36x290xf32, #tpu.memory_space<vmem>>, vector<2x256xf32>
    tpu.vector_store %arg8[%c18_54, %c17_55], %97 {strides = array<i32>} : memref<36x290xf32, #tpu.memory_space<vmem>>, vector<2x256xf32>,
    %cst_56 = arith.constant -2.200000e+00 : f32
    %99 = vector.broadcast %cst_56 : f32 to vector<4x256xf32>
    %100 = arith.subf %47, %99 : vector<4x256xf32>
    %cst_57 = arith.constant -1.800000e+00 : f32
    %101 = vector.broadcast %cst_57 : f32 to vector<4x256xf32>
    %102 = arith.subf %47, %101 : vector<4x256xf32>
    %cst_58 = arith.constant -1.400000e+00 : f32
    %103 = vector.broadcast %cst_58 : f32 to vector<4x256xf32>
    %104 = arith.subf %47, %103 : vector<4x256xf32>
    %cst_59 = arith.constant -1.000000e+00 : f32
    %105 = vector.broadcast %cst_59 : f32 to vector<4x256xf32>
    %106 = arith.subf %47, %105 : vector<4x256xf32>
    %cst_60 = arith.constant -6.000000e-01 : f32
    %107 = vector.broadcast %cst_60 : f32 to vector<4x256xf32>
    %108 = arith.subf %47, %107 : vector<4x256xf32>
    %cst_61 = arith.constant -2.000000e-01 : f32
    %109 = vector.broadcast %cst_61 : f32 to vector<4x256xf32>
    %110 = arith.subf %47, %109 : vector<4x256xf32>
    %cst_62 = arith.constant 2.000000e-01 : f32
    %111 = vector.broadcast %cst_62 : f32 to vector<4x256xf32>
    %112 = arith.subf %47, %111 : vector<4x256xf32>
    %cst_63 = arith.constant 6.000000e-01 : f32
    %113 = vector.broadcast %cst_63 : f32 to vector<4x256xf32>
    %114 = arith.subf %47, %113 : vector<4x256xf32>
    %cst_64 = arith.constant 1.000000e+00 : f32
    %115 = vector.broadcast %cst_64 : f32 to vector<4x256xf32>
    %116 = arith.subf %47, %115 : vector<4x256xf32>
    %cst_65 = arith.constant 1.400000e+00 : f32
    %117 = vector.broadcast %cst_65 : f32 to vector<4x256xf32>
    %118 = arith.subf %47, %117 : vector<4x256xf32>
    %cst_66 = arith.constant 1.800000e+00 : f32
    %119 = vector.broadcast %cst_66 : f32 to vector<4x256xf32>
    %120 = arith.subf %47, %119 : vector<4x256xf32>
    %cst_67 = arith.constant 2.200000e+00 : f32
    %121 = vector.broadcast %cst_67 : f32 to vector<4x256xf32>
    %122 = arith.subf %47, %121 : vector<4x256xf32>
    %cst_68 = arith.constant -2.200000e+00 : f32
    %123 = vector.broadcast %cst_68 : f32 to vector<4x256xf32>
    %124 = arith.cmpf oge, %47, %123 : vector<4x256xf32>
    %125 = arith.extui %124 : vector<4x256xi1> to vector<4x256xi32>
    %126 = arith.sitofp %125 : vector<4x256xi32> to vector<4x256xf32>
    %cst_69 = arith.constant -1.800000e+00 : f32
    %127 = vector.broadcast %cst_69 : f32 to vector<4x256xf32>
    %128 = arith.cmpf oge, %47, %127 : vector<4x256xf32>
    %129 = arith.extui %128 : vector<4x256xi1> to vector<4x256xi32>
    %130 = arith.sitofp %129 : vector<4x256xi32> to vector<4x256xf32>
    %cst_70 = arith.constant -1.400000e+00 : f32
    %131 = vector.broadcast %cst_70 : f32 to vector<4x256xf32>
    %132 = arith.cmpf oge, %47, %131 : vector<4x256xf32>
    %133 = arith.extui %132 : vector<4x256xi1> to vector<4x256xi32>
    %134 = arith.sitofp %133 : vector<4x256xi32> to vector<4x256xf32>
    %cst_71 = arith.constant -1.000000e+00 : f32
    %135 = vector.broadcast %cst_71 : f32 to vector<4x256xf32>
    %136 = arith.cmpf oge, %47, %135 : vector<4x256xf32>
    %137 = arith.extui %136 : vector<4x256xi1> to vector<4x256xi32>
    %138 = arith.sitofp %137 : vector<4x256xi32> to vector<4x256xf32>
    %cst_72 = arith.constant -6.000000e-01 : f32
    %139 = vector.broadcast %cst_72 : f32 to vector<4x256xf32>
    %140 = arith.cmpf oge, %47, %139 : vector<4x256xf32>
    %141 = arith.extui %140 : vector<4x256xi1> to vector<4x256xi32>
    %142 = arith.sitofp %141 : vector<4x256xi32> to vector<4x256xf32>
    %cst_73 = arith.constant -2.000000e-01 : f32
    %143 = vector.broadcast %cst_73 : f32 to vector<4x256xf32>
    %144 = arith.cmpf oge, %47, %143 : vector<4x256xf32>
    %145 = arith.extui %144 : vector<4x256xi1> to vector<4x256xi32>
    %146 = arith.sitofp %145 : vector<4x256xi32> to vector<4x256xf32>
    %cst_74 = arith.constant 2.000000e-01 : f32
    %147 = vector.broadcast %cst_74 : f32 to vector<4x256xf32>
    %148 = arith.cmpf oge, %47, %147 : vector<4x256xf32>
    %149 = arith.extui %148 : vector<4x256xi1> to vector<4x256xi32>
    %150 = arith.sitofp %149 : vector<4x256xi32> to vector<4x256xf32>
    %cst_75 = arith.constant 6.000000e-01 : f32
    %151 = vector.broadcast %cst_75 : f32 to vector<4x256xf32>
    %152 = arith.cmpf oge, %47, %151 : vector<4x256xf32>
    %153 = arith.extui %152 : vector<4x256xi1> to vector<4x256xi32>
    %154 = arith.sitofp %153 : vector<4x256xi32> to vector<4x256xf32>
    %cst_76 = arith.constant 1.000000e+00 : f32
    %155 = vector.broadcast %cst_76 : f32 to vector<4x256xf32>
    %156 = arith.cmpf oge, %47, %155 : vector<4x256xf32>
    %157 = arith.extui %156 : vector<4x256xi1> to vector<4x256xi32>
    %158 = arith.sitofp %157 : vector<4x256xi32> to vector<4x256xf32>
    %cst_77 = arith.constant 1.400000e+00 : f32
    %159 = vector.broadcast %cst_77 : f32 to vector<4x256xf32>
    %160 = arith.cmpf oge, %47, %159 : vector<4x256xf32>
    %161 = arith.extui %160 : vector<4x256xi1> to vector<4x256xi32>
    %162 = arith.sitofp %161 : vector<4x256xi32> to vector<4x256xf32>
    %cst_78 = arith.constant 1.800000e+00 : f32
    %163 = vector.broadcast %cst_78 : f32 to vector<4x256xf32>
    %164 = arith.cmpf oge, %47, %163 : vector<4x256xf32>
    %165 = arith.extui %164 : vector<4x256xi1> to vector<4x256xi32>
    %166 = arith.sitofp %165 : vector<4x256xi32> to vector<4x256xf32>
    %cst_79 = arith.constant 2.200000e+00 : f32
    %167 = vector.broadcast %cst_79 : f32 to vector<4x256xf32>
    %168 = arith.cmpf oge, %47, %167 : vector<4x256xf32>
    %169 = arith.extui %168 : vector<4x256xi1> to vector<4x256xi32>
    %170 = arith.sitofp %169 : vector<4x256xi32> to vector<4x256xf32>
    %171 = arith.subf %126, %130 : vector<4x256xf32>
    %172 = arith.subf %130, %134 : vector<4x256xf32>
    %173 = arith.subf %134, %138 : vector<4x256xf32>
    %174 = arith.subf %138, %142 : vector<4x256xf32>
    %175 = arith.subf %142, %146 : vector<4x256xf32>
    %176 = arith.subf %146, %150 : vector<4x256xf32>
    %177 = arith.subf %150, %154 : vector<4x256xf32>
    %178 = arith.subf %154, %158 : vector<4x256xf32>
    %179 = arith.subf %158, %162 : vector<4x256xf32>
    %180 = arith.subf %162, %166 : vector<4x256xf32>
    %181 = arith.subf %166, %170 : vector<4x256xf32>
    %cst_80 = arith.constant 2.500000e+00 : f32
    %182 = vector.broadcast %cst_80 : f32 to vector<4x256xf32>
    %183 = arith.mulf %100, %182 : vector<4x256xf32>
    %184 = arith.mulf %183, %171 : vector<4x256xf32>
    %cst_81 = arith.constant -2.500000e+00 : f32
    %185 = vector.broadcast %cst_81 : f32 to vector<4x256xf32>
    %186 = arith.mulf %104, %185 : vector<4x256xf32>
    %187 = arith.mulf %186, %172 : vector<4x256xf32>
    %188 = arith.addf %184, %187 : vector<4x256xf32>
    %cst_82 = arith.constant 2.500000e+00 : f32
    %189 = vector.broadcast %cst_82 : f32 to vector<4x256xf32>
    %190 = arith.mulf %102, %189 : vector<4x256xf32>
    %191 = arith.mulf %190, %172 : vector<4x256xf32>
    %cst_83 = arith.constant -2.500000e+00 : f32
    %192 = vector.broadcast %cst_83 : f32 to vector<4x256xf32>
    %193 = arith.mulf %106, %192 : vector<4x256xf32>
    %194 = arith.mulf %193, %173 : vector<4x256xf32>
    %195 = arith.addf %191, %194 : vector<4x256xf32>
    %cst_84 = arith.constant 2.500000e+00 : f32
    %196 = vector.broadcast %cst_84 : f32 to vector<4x256xf32>
    %197 = arith.mulf %104, %196 : vector<4x256xf32>
    %198 = arith.mulf %197, %173 : vector<4x256xf32>
    %cst_85 = arith.constant -2.500000e+00 : f32
    %199 = vector.broadcast %cst_85 : f32 to vector<4x256xf32>
    %200 = arith.mulf %108, %199 : vector<4x256xf32>
    %201 = arith.mulf %200, %174 : vector<4x256xf32>
    %202 = arith.addf %198, %201 : vector<4x256xf32>
    %cst_86 = arith.constant 2.500000e+00 : f32
    %203 = vector.broadcast %cst_86 : f32 to vector<4x256xf32>
    %204 = arith.mulf %106, %203 : vector<4x256xf32>
    %205 = arith.mulf %204, %174 : vector<4x256xf32>
    %cst_87 = arith.constant -2.500000e+00 : f32
    %206 = vector.broadcast %cst_87 : f32 to vector<4x256xf32>
    %207 = arith.mulf %110, %206 : vector<4x256xf32>
    %208 = arith.mulf %207, %175 : vector<4x256xf32>
    %209 = arith.addf %205, %208 : vector<4x256xf32>
    %cst_88 = arith.constant 2.500000e+00 : f32
    %210 = vector.broadcast %cst_88 : f32 to vector<4x256xf32>
    %211 = arith.mulf %108, %210 : vector<4x256xf32>
    %212 = arith.mulf %211, %175 : vector<4x256xf32>
    %cst_89 = arith.constant -2.500000e+00 : f32
    %213 = vector.broadcast %cst_89 : f32 to vector<4x256xf32>
    %214 = arith.mulf %112, %213 : vector<4x256xf32>
    %215 = arith.mulf %214, %176 : vector<4x256xf32>
    %216 = arith.addf %212, %215 : vector<4x256xf32>
    %cst_90 = arith.constant 2.500000e+00 : f32
    %217 = vector.broadcast %cst_90 : f32 to vector<4x256xf32>
    %218 = arith.mulf %110, %217 : vector<4x256xf32>
    %219 = arith.mulf %218, %176 : vector<4x256xf32>
    %cst_91 = arith.constant -2.500000e+00 : f32
    %220 = vector.broadcast %cst_91 : f32 to vector<4x256xf32>
    %221 = arith.mulf %114, %220 : vector<4x256xf32>
    %222 = arith.mulf %221, %177 : vector<4x256xf32>
    %223 = arith.addf %219, %222 : vector<4x256xf32>
    %cst_92 = arith.constant 2.500000e+00 : f32
    %224 = vector.broadcast %cst_92 : f32 to vector<4x256xf32>
    %225 = arith.mulf %112, %224 : vector<4x256xf32>
    %226 = arith.mulf %225, %177 : vector<4x256xf32>
    %cst_93 = arith.constant -2.500000e+00 : f32
    %227 = vector.broadcast %cst_93 : f32 to vector<4x256xf32>
    %228 = arith.mulf %116, %227 : vector<4x256xf32>
    %229 = arith.mulf %228, %178 : vector<4x256xf32>
    %230 = arith.addf %226, %229 : vector<4x256xf32>
    %cst_94 = arith.constant 2.500000e+00 : f32
    %231 = vector.broadcast %cst_94 : f32 to vector<4x256xf32>
    %232 = arith.mulf %114, %231 : vector<4x256xf32>
    %233 = arith.mulf %232, %178 : vector<4x256xf32>
    %cst_95 = arith.constant -2.500000e+00 : f32
    %234 = vector.broadcast %cst_95 : f32 to vector<4x256xf32>
    %235 = arith.mulf %118, %234 : vector<4x256xf32>
    %236 = arith.mulf %235, %179 : vector<4x256xf32>
    %237 = arith.addf %233, %236 : vector<4x256xf32>
    %cst_96 = arith.constant 2.500000e+00 : f32
    %238 = vector.broadcast %cst_96 : f32 to vector<4x256xf32>
    %239 = arith.mulf %116, %238 : vector<4x256xf32>
    %240 = arith.mulf %239, %179 : vector<4x256xf32>
    %cst_97 = arith.constant -2.500000e+00 : f32
    %241 = vector.broadcast %cst_97 : f32 to vector<4x256xf32>
    %242 = arith.mulf %120, %241 : vector<4x256xf32>
    %243 = arith.mulf %242, %180 : vector<4x256xf32>
    %244 = arith.addf %240, %243 : vector<4x256xf32>
    %cst_98 = arith.constant 2.500000e+00 : f32
    %245 = vector.broadcast %cst_98 : f32 to vector<4x256xf32>
    %246 = arith.mulf %118, %245 : vector<4x256xf32>
    %247 = arith.mulf %246, %180 : vector<4x256xf32>
    %cst_99 = arith.constant -2.500000e+00 : f32
    %248 = vector.broadcast %cst_99 : f32 to vector<4x256xf32>
    %249 = arith.mulf %122, %248 : vector<4x256xf32>
    %250 = arith.mulf %249, %181 : vector<4x256xf32>
    %251 = arith.addf %247, %250 : vector<4x256xf32>
    %cst_100 = arith.constant 1.250000e+00 : f32
    %252 = vector.broadcast %cst_100 : f32 to vector<4x256xf32>
    %253 = arith.mulf %100, %252 : vector<4x256xf32>
    %254 = arith.mulf %253, %188 : vector<4x256xf32>
    %cst_101 = arith.constant -1.250000e+00 : f32
    %255 = vector.broadcast %cst_101 : f32 to vector<4x256xf32>
    %256 = arith.mulf %106, %255 : vector<4x256xf32>
    %257 = arith.mulf %256, %195 : vector<4x256xf32>
    %258 = arith.addf %254, %257 : vector<4x256xf32>
    %cst_102 = arith.constant 1.250000e+00 : f32
    %259 = vector.broadcast %cst_102 : f32 to vector<4x256xf32>
    %260 = arith.mulf %102, %259 : vector<4x256xf32>
    %261 = arith.mulf %260, %195 : vector<4x256xf32>
    %cst_103 = arith.constant -1.250000e+00 : f32
    %262 = vector.broadcast %cst_103 : f32 to vector<4x256xf32>
    %263 = arith.mulf %108, %262 : vector<4x256xf32>
    %264 = arith.mulf %263, %202 : vector<4x256xf32>
    %265 = arith.addf %261, %264 : vector<4x256xf32>
    %cst_104 = arith.constant 1.250000e+00 : f32
    %266 = vector.broadcast %cst_104 : f32 to vector<4x256xf32>
    %267 = arith.mulf %104, %266 : vector<4x256xf32>
    %268 = arith.mulf %267, %202 : vector<4x256xf32>
    %cst_105 = arith.constant -1.250000e+00 : f32
    %269 = vector.broadcast %cst_105 : f32 to vector<4x256xf32>
    %270 = arith.mulf %110, %269 : vector<4x256xf32>
    %271 = arith.mulf %270, %209 : vector<4x256xf32>
    %272 = arith.addf %268, %271 : vector<4x256xf32>
    %cst_106 = arith.constant 1.250000e+00 : f32
    %273 = vector.broadcast %cst_106 : f32 to vector<4x256xf32>
    %274 = arith.mulf %106, %273 : vector<4x256xf32>
    %275 = arith.mulf %274, %209 : vector<4x256xf32>
    %cst_107 = arith.constant -1.250000e+00 : f32
    %276 = vector.broadcast %cst_107 : f32 to vector<4x256xf32>
    %277 = arith.mulf %112, %276 : vector<4x256xf32>
    %278 = arith.mulf %277, %216 : vector<4x256xf32>
    %279 = arith.addf %275, %278 : vector<4x256xf32>
    %cst_108 = arith.constant 1.250000e+00 : f32
    %280 = vector.broadcast %cst_108 : f32 to vector<4x256xf32>
    %281 = arith.mulf %108, %280 : vector<4x256xf32>
    %282 = arith.mulf %281, %216 : vector<4x256xf32>
    %cst_109 = arith.constant -1.250000e+00 : f32
    %283 = vector.broadcast %cst_109 : f32 to vector<4x256xf32>
    %284 = arith.mulf %114, %283 : vector<4x256xf32>
    %285 = arith.mulf %284, %223 : vector<4x256xf32>
    %286 = arith.addf %282, %285 : vector<4x256xf32>
    %cst_110 = arith.constant 1.250000e+00 : f32
    %287 = vector.broadcast %cst_110 : f32 to vector<4x256xf32>
    %288 = arith.mulf %110, %287 : vector<4x256xf32>
    %289 = arith.mulf %288, %223 : vector<4x256xf32>
    %cst_111 = arith.constant -1.250000e+00 : f32
    %290 = vector.broadcast %cst_111 : f32 to vector<4x256xf32>
    %291 = arith.mulf %116, %290 : vector<4x256xf32>
    %292 = arith.mulf %291, %230 : vector<4x256xf32>
    %293 = arith.addf %289, %292 : vector<4x256xf32>
    %cst_112 = arith.constant 1.250000e+00 : f32
    %294 = vector.broadcast %cst_112 : f32 to vector<4x256xf32>
    %295 = arith.mulf %112, %294 : vector<4x256xf32>
    %296 = arith.mulf %295, %230 : vector<4x256xf32>
    %cst_113 = arith.constant -1.250000e+00 : f32
    %297 = vector.broadcast %cst_113 : f32 to vector<4x256xf32>
    %298 = arith.mulf %118, %297 : vector<4x256xf32>
    %299 = arith.mulf %298, %237 : vector<4x256xf32>
    %300 = arith.addf %296, %299 : vector<4x256xf32>
    %cst_114 = arith.constant 1.250000e+00 : f32
    %301 = vector.broadcast %cst_114 : f32 to vector<4x256xf32>
    %302 = arith.mulf %114, %301 : vector<4x256xf32>
    %303 = arith.mulf %302, %237 : vector<4x256xf32>
    %cst_115 = arith.constant -1.250000e+00 : f32
    %304 = vector.broadcast %cst_115 : f32 to vector<4x256xf32>
    %305 = arith.mulf %120, %304 : vector<4x256xf32>
    %306 = arith.mulf %305, %244 : vector<4x256xf32>
    %307 = arith.addf %303, %306 : vector<4x256xf32>
    %cst_116 = arith.constant 1.250000e+00 : f32
    %308 = vector.broadcast %cst_116 : f32 to vector<4x256xf32>
    %309 = arith.mulf %116, %308 : vector<4x256xf32>
    %310 = arith.mulf %309, %244 : vector<4x256xf32>
    %cst_117 = arith.constant -1.250000e+00 : f32
    %311 = vector.broadcast %cst_117 : f32 to vector<4x256xf32>
    %312 = arith.mulf %122, %311 : vector<4x256xf32>
    %313 = arith.mulf %312, %251 : vector<4x256xf32>
    %314 = arith.addf %310, %313 : vector<4x256xf32>
    %cst_118 = arith.constant 0.833333313 : f32
    %315 = vector.broadcast %cst_118 : f32 to vector<4x256xf32>
    %316 = arith.mulf %100, %315 : vector<4x256xf32>
    %317 = arith.mulf %316, %258 : vector<4x256xf32>
    %cst_119 = arith.constant -0.833333313 : f32
    %318 = vector.broadcast %cst_119 : f32 to vector<4x256xf32>
    %319 = arith.mulf %108, %318 : vector<4x256xf32>
    %320 = arith.mulf %319, %265 : vector<4x256xf32>
    %321 = arith.addf %317, %320 : vector<4x256xf32>
    %cst_120 = arith.constant 0.833333313 : f32
    %322 = vector.broadcast %cst_120 : f32 to vector<4x256xf32>
    %323 = arith.mulf %102, %322 : vector<4x256xf32>
    %324 = arith.mulf %323, %265 : vector<4x256xf32>
    %cst_121 = arith.constant -0.833333313 : f32
    %325 = vector.broadcast %cst_121 : f32 to vector<4x256xf32>
    %326 = arith.mulf %110, %325 : vector<4x256xf32>
    %327 = arith.mulf %326, %272 : vector<4x256xf32>
    %328 = arith.addf %324, %327 : vector<4x256xf32>
    %cst_122 = arith.constant 0.833333313 : f32
    %329 = vector.broadcast %cst_122 : f32 to vector<4x256xf32>
    %330 = arith.mulf %104, %329 : vector<4x256xf32>
    %331 = arith.mulf %330, %272 : vector<4x256xf32>
    %cst_123 = arith.constant -0.833333313 : f32
    %332 = vector.broadcast %cst_123 : f32 to vector<4x256xf32>
    %333 = arith.mulf %112, %332 : vector<4x256xf32>
    %334 = arith.mulf %333, %279 : vector<4x256xf32>
    %335 = arith.addf %331, %334 : vector<4x256xf32>
    %cst_124 = arith.constant 0.833333313 : f32
    %336 = vector.broadcast %cst_124 : f32 to vector<4x256xf32>
    %337 = arith.mulf %106, %336 : vector<4x256xf32>
    %338 = arith.mulf %337, %279 : vector<4x256xf32>
    %cst_125 = arith.constant -0.833333313 : f32
    %339 = vector.broadcast %cst_125 : f32 to vector<4x256xf32>
    %340 = arith.mulf %114, %339 : vector<4x256xf32>
    %341 = arith.mulf %340, %286 : vector<4x256xf32>
    %342 = arith.addf %338, %341 : vector<4x256xf32>
    %cst_126 = arith.constant 0.833333313 : f32
    %343 = vector.broadcast %cst_126 : f32 to vector<4x256xf32>
    %344 = arith.mulf %108, %343 : vector<4x256xf32>
    %345 = arith.mulf %344, %286 : vector<4x256xf32>
    %cst_127 = arith.constant -0.833333313 : f32
    %346 = vector.broadcast %cst_127 : f32 to vector<4x256xf32>
    %347 = arith.mulf %116, %346 : vector<4x256xf32>
    %348 = arith.mulf %347, %293 : vector<4x256xf32>
    %349 = arith.addf %345, %348 : vector<4x256xf32>
    %cst_128 = arith.constant 0.833333313 : f32
    %350 = vector.broadcast %cst_128 : f32 to vector<4x256xf32>
    %351 = arith.mulf %110, %350 : vector<4x256xf32>
    %352 = arith.mulf %351, %293 : vector<4x256xf32>
    %cst_129 = arith.constant -0.833333313 : f32
    %353 = vector.broadcast %cst_129 : f32 to vector<4x256xf32>
    %354 = arith.mulf %118, %353 : vector<4x256xf32>
    %355 = arith.mulf %354, %300 : vector<4x256xf32>
    %356 = arith.addf %352, %355 : vector<4x256xf32>
    %cst_130 = arith.constant 0.833333313 : f32
    %357 = vector.broadcast %cst_130 : f32 to vector<4x256xf32>
    %358 = arith.mulf %112, %357 : vector<4x256xf32>
    %359 = arith.mulf %358, %300 : vector<4x256xf32>
    %cst_131 = arith.constant -0.833333313 : f32
    %360 = vector.broadcast %cst_131 : f32 to vector<4x256xf32>
    %361 = arith.mulf %120, %360 : vector<4x256xf32>
    %362 = arith.mulf %361, %307 : vector<4x256xf32>
    %363 = arith.addf %359, %362 : vector<4x256xf32>
    %cst_132 = arith.constant 0.833333313 : f32
    %364 = vector.broadcast %cst_132 : f32 to vector<4x256xf32>
    %365 = arith.mulf %114, %364 : vector<4x256xf32>
    %366 = arith.mulf %365, %307 : vector<4x256xf32>
    %cst_133 = arith.constant -0.833333313 : f32
    %367 = vector.broadcast %cst_133 : f32 to vector<4x256xf32>
    %368 = arith.mulf %122, %367 : vector<4x256xf32>
    %369 = arith.mulf %368, %314 : vector<4x256xf32>
    %370 = arith.addf %366, %369 : vector<4x256xf32>
    %371 = vector.extract_strided_slice %321 {offsets = [0, 0], sizes = [2, 256], strides = [1, 1]} : vector<4x256xf32> to vector<2x256xf32>
    %c2_134 = arith.constant 2 : index
    %c17_135 = arith.constant 17 : index
    %372 = vector.load %arg8[%c2_134, %c17_135] : memref<36x290xf32, #tpu.memory_space<vmem>>, vector<2x256xf32>
    tpu.vector_store %arg8[%c2_134, %c17_135], %371 {strides = array<i32>} : memref<36x290xf32, #tpu.memory_space<vmem>>, vector<2x256xf32>,
    %373 = vector.extract_strided_slice %321 {offsets = [2, 0], sizes = [2, 256], strides = [1, 1]} : vector<4x256xf32> to vector<2x256xf32>
    %c20 = arith.constant 20 : index
    %c17_136 = arith.constant 17 : index
    %374 = vector.load %arg8[%c20, %c17_136] : memref<36x290xf32, #tpu.memory_space<vmem>>, vector<2x256xf32>
    tpu.vector_store %arg8[%c20, %c17_136], %373 {strides = array<i32>} : memref<36x290xf32, #tpu.memory_space<vmem>>, vector<2x256xf32>,
    %375 = vector.extract_strided_slice %328 {offsets = [0, 0], sizes = [2, 256], strides = [1, 1]} : vector<4x256xf32> to vector<2x256xf32>
    %c4 = arith.constant 4 : index
    %c17_137 = arith.constant 17 : index
    %376 = vector.load %arg8[%c4, %c17_137] : memref<36x290xf32, #tpu.memory_space<vmem>>, vector<2x256xf32>
    tpu.vector_store %arg8[%c4, %c17_137], %375 {strides = array<i32>} : memref<36x290xf32, #tpu.memory_space<vmem>>, vector<2x256xf32>,
    %377 = vector.extract_strided_slice %328 {offsets = [2, 0], sizes = [2, 256], strides = [1, 1]} : vector<4x256xf32> to vector<2x256xf32>
    %c22 = arith.constant 22 : index
    %c17_138 = arith.constant 17 : index
    %378 = vector.load %arg8[%c22, %c17_138] : memref<36x290xf32, #tpu.memory_space<vmem>>, vector<2x256xf32>
    tpu.vector_store %arg8[%c22, %c17_138], %377 {strides = array<i32>} : memref<36x290xf32, #tpu.memory_space<vmem>>, vector<2x256xf32>,
    %379 = vector.extract_strided_slice %335 {offsets = [0, 0], sizes = [2, 256], strides = [1, 1]} : vector<4x256xf32> to vector<2x256xf32>
    %c6 = arith.constant 6 : index
    %c17_139 = arith.constant 17 : index
    %380 = vector.load %arg8[%c6, %c17_139] : memref<36x290xf32, #tpu.memory_space<vmem>>, vector<2x256xf32>
    tpu.vector_store %arg8[%c6, %c17_139], %379 {strides = array<i32>} : memref<36x290xf32, #tpu.memory_space<vmem>>, vector<2x256xf32>,
    %381 = vector.extract_strided_slice %335 {offsets = [2, 0], sizes = [2, 256], strides = [1, 1]} : vector<4x256xf32> to vector<2x256xf32>
    %c24_140 = arith.constant 24 : index
    %c17_141 = arith.constant 17 : index
    %382 = vector.load %arg8[%c24_140, %c17_141] : memref<36x290xf32, #tpu.memory_space<vmem>>, vector<2x256xf32>
    tpu.vector_store %arg8[%c24_140, %c17_141], %381 {strides = array<i32>} : memref<36x290xf32, #tpu.memory_space<vmem>>, vector<2x256xf32>,
    %383 = vector.extract_strided_slice %342 {offsets = [0, 0], sizes = [2, 256], strides = [1, 1]} : vector<4x256xf32> to vector<2x256xf32>
    %c8_142 = arith.constant 8 : index
    %c17_143 = arith.constant 17 : index
    %384 = vector.load %arg8[%c8_142, %c17_143] : memref<36x290xf32, #tpu.memory_space<vmem>>, vector<2x256xf32>
    tpu.vector_store %arg8[%c8_142, %c17_143], %383 {strides = array<i32>} : memref<36x290xf32, #tpu.memory_space<vmem>>, vector<2x256xf32>,
    %385 = vector.extract_strided_slice %342 {offsets = [2, 0], sizes = [2, 256], strides = [1, 1]} : vector<4x256xf32> to vector<2x256xf32>
    %c26 = arith.constant 26 : index
    %c17_144 = arith.constant 17 : index
    %386 = vector.load %arg8[%c26, %c17_144] : memref<36x290xf32, #tpu.memory_space<vmem>>, vector<2x256xf32>
    tpu.vector_store %arg8[%c26, %c17_144], %385 {strides = array<i32>} : memref<36x290xf32, #tpu.memory_space<vmem>>, vector<2x256xf32>,
    %387 = vector.extract_strided_slice %349 {offsets = [0, 0], sizes = [2, 256], strides = [1, 1]} : vector<4x256xf32> to vector<2x256xf32>
    %c10 = arith.constant 10 : index
    %c17_145 = arith.constant 17 : index
    %388 = vector.load %arg8[%c10, %c17_145] : memref<36x290xf32, #tpu.memory_space<vmem>>, vector<2x256xf32>
    tpu.vector_store %arg8[%c10, %c17_145], %387 {strides = array<i32>} : memref<36x290xf32, #tpu.memory_space<vmem>>, vector<2x256xf32>,
    %389 = vector.extract_strided_slice %349 {offsets = [2, 0], sizes = [2, 256], strides = [1, 1]} : vector<4x256xf32> to vector<2x256xf32>
    %c28 = arith.constant 28 : index
    %c17_146 = arith.constant 17 : index
    %390 = vector.load %arg8[%c28, %c17_146] : memref<36x290xf32, #tpu.memory_space<vmem>>, vector<2x256xf32>
    tpu.vector_store %arg8[%c28, %c17_146], %389 {strides = array<i32>} : memref<36x290xf32, #tpu.memory_space<vmem>>, vector<2x256xf32>,
    %391 = vector.extract_strided_slice %356 {offsets = [0, 0], sizes = [2, 256], strides = [1, 1]} : vector<4x256xf32> to vector<2x256xf32>
    %c12 = arith.constant 12 : index
    %c17_147 = arith.constant 17 : index
    %392 = vector.load %arg8[%c12, %c17_147] : memref<36x290xf32, #tpu.memory_space<vmem>>, vector<2x256xf32>
    tpu.vector_store %arg8[%c12, %c17_147], %391 {strides = array<i32>} : memref<36x290xf32, #tpu.memory_space<vmem>>, vector<2x256xf32>,
    %393 = vector.extract_strided_slice %356 {offsets = [2, 0], sizes = [2, 256], strides = [1, 1]} : vector<4x256xf32> to vector<2x256xf32>
    %c30 = arith.constant 30 : index
    %c17_148 = arith.constant 17 : index
    %394 = vector.load %arg8[%c30, %c17_148] : memref<36x290xf32, #tpu.memory_space<vmem>>, vector<2x256xf32>
    tpu.vector_store %arg8[%c30, %c17_148], %393 {strides = array<i32>} : memref<36x290xf32, #tpu.memory_space<vmem>>, vector<2x256xf32>,
    %395 = vector.extract_strided_slice %363 {offsets = [0, 0], sizes = [2, 256], strides = [1, 1]} : vector<4x256xf32> to vector<2x256xf32>
    %c14 = arith.constant 14 : index
    %c17_149 = arith.constant 17 : index
    %396 = vector.load %arg8[%c14, %c17_149] : memref<36x290xf32, #tpu.memory_space<vmem>>, vector<2x256xf32>
    tpu.vector_store %arg8[%c14, %c17_149], %395 {strides = array<i32>} : memref<36x290xf32, #tpu.memory_space<vmem>>, vector<2x256xf32>,
    %397 = vector.extract_strided_slice %363 {offsets = [2, 0], sizes = [2, 256], strides = [1, 1]} : vector<4x256xf32> to vector<2x256xf32>
    %c32_150 = arith.constant 32 : index
    %c17_151 = arith.constant 17 : index
    %398 = vector.load %arg8[%c32_150, %c17_151] : memref<36x290xf32, #tpu.memory_space<vmem>>, vector<2x256xf32>
    tpu.vector_store %arg8[%c32_150, %c17_151], %397 {strides = array<i32>} : memref<36x290xf32, #tpu.memory_space<vmem>>, vector<2x256xf32>,
    %399 = vector.extract_strided_slice %370 {offsets = [0, 0], sizes = [2, 256], strides = [1, 1]} : vector<4x256xf32> to vector<2x256xf32>
    %c16_152 = arith.constant 16 : index
    %c17_153 = arith.constant 17 : index
    %400 = vector.load %arg8[%c16_152, %c17_153] : memref<36x290xf32, #tpu.memory_space<vmem>>, vector<2x256xf32>
    tpu.vector_store %arg8[%c16_152, %c17_153], %399 {strides = array<i32>} : memref<36x290xf32, #tpu.memory_space<vmem>>, vector<2x256xf32>,
    %401 = vector.extract_strided_slice %370 {offsets = [2, 0], sizes = [2, 256], strides = [1, 1]} : vector<4x256xf32> to vector<2x256xf32>
    %c34_154 = arith.constant 34 : index
    %c17_155 = arith.constant 17 : index
    %402 = vector.load %arg8[%c34_154, %c17_155] : memref<36x290xf32, #tpu.memory_space<vmem>>, vector<2x256xf32>
    tpu.vector_store %arg8[%c34_154, %c17_155], %401 {strides = array<i32>} : memref<36x290xf32, #tpu.memory_space<vmem>>, vector<2x256xf32>,
    %c0_156 = arith.constant 0 : index
    %c0_157 = arith.constant 0 : index
    %403 = vector.load %arg8[%c0_156, %c0_157] : memref<36x290xf32, #tpu.memory_space<vmem>>, vector<36x256xf32>
    %404 = arith.mulf %403, %2 : vector<36x256xf32>
    %c0_158 = arith.constant 0 : index
    %c0_159 = arith.constant 0 : index
    %405 = vector.load %arg10[%c0_158, %c0_159] : memref<324x256xf32, #tpu.memory_space<vmem>>, vector<36x256xf32>
    tpu.vector_store %arg10[%c0_158, %c0_159], %404 {strides = array<i32>} : memref<324x256xf32, #tpu.memory_space<vmem>>, vector<36x256xf32>,
    %c0_160 = arith.constant 0 : index
    %c1_161 = arith.constant 1 : index
    %406 = vector.load %arg8[%c0_160, %c1_161] : memref<36x290xf32, #tpu.memory_space<vmem>>, vector<36x256xf32>
    %c36 = arith.constant 36 : index
    %c0_162 = arith.constant 0 : index
    %407 = vector.load %arg10[%c36, %c0_162] : memref<324x256xf32, #tpu.memory_space<vmem>>, vector<36x256xf32>
    tpu.vector_store %arg10[%c36, %c0_162], %406 {strides = array<i32>} : memref<324x256xf32, #tpu.memory_space<vmem>>, vector<36x256xf32>,
    %c0_163 = arith.constant 0 : index
    %c2_164 = arith.constant 2 : index
    %408 = vector.load %arg8[%c0_163, %c2_164] : memref<36x290xf32, #tpu.memory_space<vmem>>, vector<36x256xf32>
    %409 = arith.mulf %408, %5 : vector<36x256xf32>
    %c72 = arith.constant 72 : index
    %c0_165 = arith.constant 0 : index
    %410 = vector.load %arg10[%c72, %c0_165] : memref<324x256xf32, #tpu.memory_space<vmem>>, vector<36x256xf32>
    tpu.vector_store %arg10[%c72, %c0_165], %409 {strides = array<i32>} : memref<324x256xf32, #tpu.memory_space<vmem>>, vector<36x256xf32>,
    %c0_166 = arith.constant 0 : index
    %c16_167 = arith.constant 16 : index
    %411 = vector.load %arg8[%c0_166, %c16_167] : memref<36x290xf32, #tpu.memory_space<vmem>>, vector<36x256xf32>
    %412 = arith.mulf %411, %2 : vector<36x256xf32>
    %c108 = arith.constant 108 : index
    %c0_168 = arith.constant 0 : index
    %413 = vector.load %arg10[%c108, %c0_168] : memref<324x256xf32, #tpu.memory_space<vmem>>, vector<36x256xf32>
    tpu.vector_store %arg10[%c108, %c0_168], %412 {strides = array<i32>} : memref<324x256xf32, #tpu.memory_space<vmem>>, vector<36x256xf32>,
    %c0_169 = arith.constant 0 : index
    %c17_170 = arith.constant 17 : index
    %414 = vector.load %arg8[%c0_169, %c17_170] : memref<36x290xf32, #tpu.memory_space<vmem>>, vector<36x256xf32>
    %c144 = arith.constant 144 : index
    %c0_171 = arith.constant 0 : index
    %415 = vector.load %arg10[%c144, %c0_171] : memref<324x256xf32, #tpu.memory_space<vmem>>, vector<36x256xf32>
    tpu.vector_store %arg10[%c144, %c0_171], %414 {strides = array<i32>} : memref<324x256xf32, #tpu.memory_space<vmem>>, vector<36x256xf32>,
    %c0_172 = arith.constant 0 : index
    %c18_173 = arith.constant 18 : index
    %416 = vector.load %arg8[%c0_172, %c18_173] : memref<36x290xf32, #tpu.memory_space<vmem>>, vector<36x256xf32>
    %417 = arith.mulf %416, %5 : vector<36x256xf32>
    %c180 = arith.constant 180 : index
    %c0_174 = arith.constant 0 : index
    %418 = vector.load %arg10[%c180, %c0_174] : memref<324x256xf32, #tpu.memory_space<vmem>>, vector<36x256xf32>
    tpu.vector_store %arg10[%c180, %c0_174], %417 {strides = array<i32>} : memref<324x256xf32, #tpu.memory_space<vmem>>, vector<36x256xf32>,
    %c0_175 = arith.constant 0 : index
    %c32_176 = arith.constant 32 : index
    %419 = vector.load %arg8[%c0_175, %c32_176] : memref<36x290xf32, #tpu.memory_space<vmem>>, vector<36x256xf32>
    %420 = arith.mulf %419, %2 : vector<36x256xf32>
    %c216 = arith.constant 216 : index
    %c0_177 = arith.constant 0 : index
    %421 = vector.load %arg10[%c216, %c0_177] : memref<324x256xf32, #tpu.memory_space<vmem>>, vector<36x256xf32>
    tpu.vector_store %arg10[%c216, %c0_177], %420 {strides = array<i32>} : memref<324x256xf32, #tpu.memory_space<vmem>>, vector<36x256xf32>,
    %c0_178 = arith.constant 0 : index
    %c33_179 = arith.constant 33 : index
    %422 = vector.load %arg8[%c0_178, %c33_179] : memref<36x290xf32, #tpu.memory_space<vmem>>, vector<36x256xf32>
    %c252 = arith.constant 252 : index
    %c0_180 = arith.constant 0 : index
    %423 = vector.load %arg10[%c252, %c0_180] : memref<324x256xf32, #tpu.memory_space<vmem>>, vector<36x256xf32>
    tpu.vector_store %arg10[%c252, %c0_180], %422 {strides = array<i32>} : memref<324x256xf32, #tpu.memory_space<vmem>>, vector<36x256xf32>,
    %c0_181 = arith.constant 0 : index
    %c34_182 = arith.constant 34 : index
    %424 = vector.load %arg8[%c0_181, %c34_182] : memref<36x290xf32, #tpu.memory_space<vmem>>, vector<36x256xf32>
    %425 = arith.mulf %424, %5 : vector<36x256xf32>
    %c288 = arith.constant 288 : index
    %c0_183 = arith.constant 0 : index
    %426 = vector.load %arg10[%c288, %c0_183] : memref<324x256xf32, #tpu.memory_space<vmem>>, vector<36x256xf32>
    tpu.vector_store %arg10[%c288, %c0_183], %425 {strides = array<i32>} : memref<324x256xf32, #tpu.memory_space<vmem>>, vector<36x256xf32>,
    %c0_184 = arith.constant 0 : index
    %c0_185 = arith.constant 0 : index
    %427 = vector.load %arg4[%c0_184, %c0_185] : memref<8x324xf32, #tpu.memory_space<vmem>>, vector<8x324xf32>
    %c0_186 = arith.constant 0 : index
    %c0_187 = arith.constant 0 : index
    %428 = vector.load %arg10[%c0_186, %c0_187] : memref<324x256xf32, #tpu.memory_space<vmem>>, vector<324x256xf32>
    %cst_188 = arith.constant dense<0.000000e+00> : vector<8x256xf32>
    %429 = tpu.matmul %427, %428, %cst_188 {dimension_numbers = #tpu.dot_dimension_numbers<[1], [0], [0], [1], [0, 0, 1, 1], [], []>} : vector<8x324xf32>, vector<324x256xf32>, vector<8x256xf32> -> vector<8x256xf32>
    %cst_189 = arith.constant dense<0.000000e+00> : vector<8xf32>
    %430 = vector.multi_reduction <add>, %429, %cst_189 [1] : vector<8x256xf32> to vector<8xf32>
    %431 = vector.shape_cast %430 : vector<8xf32> to vector<8x1xf32>
    %cst_190 = arith.constant 3.906250e-03 : f32
    %432 = vector.broadcast %cst_190 : f32 to vector<8x1xf32>
    %433 = arith.mulf %431, %432 : vector<8x1xf32>
    %434 = vector.broadcast %433 : vector<8x1xf32> to vector<8x256xf32>
    %435 = arith.subf %429, %434 : vector<8x256xf32>
    %436 = arith.mulf %435, %435 : vector<8x256xf32>
    %cst_191 = arith.constant dense<0.000000e+00> : vector<8xf32>
    %437 = vector.multi_reduction <add>, %436, %cst_191 [1] : vector<8x256xf32> to vector<8xf32>
    %438 = vector.shape_cast %437 : vector<8xf32> to vector<8x1xf32>
    %cst_192 = arith.constant 3.906250e-03 : f32
    %439 = vector.broadcast %cst_192 : f32 to vector<8x1xf32>
    %440 = arith.mulf %438, %439 : vector<8x1xf32>
    %cst_193 = arith.constant 9.99999974E-6 : f32
    %441 = vector.broadcast %cst_193 : f32 to vector<8x1xf32>
    %442 = arith.addf %440, %441 : vector<8x1xf32>
    %443 = math.rsqrt %442 : vector<8x1xf32>
    %444 = vector.broadcast %443 : vector<8x1xf32> to vector<8x256xf32>
    %445 = arith.mulf %435, %444 : vector<8x256xf32>
    %c0_194 = arith.constant 0 : index
    %c0_195 = arith.constant 0 : index
    %446 = vector.load %arg6[%c0_194, %c0_195] : memref<1x1xf32, #tpu.memory_space<vmem>>, vector<1x1xf32>
    %cst_196 = arith.constant 0.000000e+00 : f32
    %447 = vector.broadcast %cst_196 : f32 to vector<8x256xf32>
    %448 = arith.cmpf oge, %445, %447 : vector<8x256xf32>
    %449 = vector.broadcast %446 : vector<1x1xf32> to vector<8x256xf32>
    %450 = arith.mulf %449, %445 : vector<8x256xf32>
    %451 = arith.select %448, %445, %450 : vector<8x256xi1>, vector<8x256xf32>
    %c0_197 = arith.constant 0 : index
    %c17_198 = arith.constant 17 : index
    %452 = vector.load %arg1[%c0_197, %c17_198] : memref<8x290xf32, #tpu.memory_space<vmem>>, vector<8x256xf32>
    %453 = arith.addf %451, %452 : vector<8x256xf32>
    %c0_199 = arith.constant 0 : index
    %c0_200 = arith.constant 0 : index
    %454 = vector.load %arg7[%c0_199, %c0_200] : memref<8x256xf32, #tpu.memory_space<vmem>>, vector<8x256xf32>
    tpu.vector_store %arg7[%c0_199, %c0_200], %453 {strides = array<i32>} : memref<8x256xf32, #tpu.memory_space<vmem>>, vector<8x256xf32>,
    return
  }
  func.func @transform_0(%arg0: i32) -> (i32, i32) {
    %c0_i32 = arith.constant 0 : i32
    %c0_i32_0 = arith.constant 0 : i32
    return %arg0, %c0_i32 : i32, i32
  }
  func.func @transform_1(%arg0: i32) -> (i32, i32) {
    %c0_i32 = arith.constant 0 : i32
    %c0_i32_0 = arith.constant 0 : i32
    %c0_i32_1 = arith.constant 0 : i32
    return %c0_i32, %c0_i32_0 : i32, i32
  }
  func.func @transform_2(%arg0: i32) -> (i32, i32) {
    %c0_i32 = arith.constant 0 : i32
    %c0_i32_0 = arith.constant 0 : i32
    %c0_i32_1 = arith.constant 0 : i32
    return %c0_i32, %c0_i32_0 : i32, i32
  }
  func.func @transform_3(%arg0: i32) -> (i32, i32) {
    %c0_i32 = arith.constant 0 : i32
    %c0_i32_0 = arith.constant 0 : i32
    %c0_i32_1 = arith.constant 0 : i32
    return %c0_i32, %c0_i32_0 : i32, i32
  }
  func.func @transform_4(%arg0: i32) -> (i32, i32) {
    %c0_i32 = arith.constant 0 : i32
    %c0_i32_0 = arith.constant 0 : i32
    %c0_i32_1 = arith.constant 0 : i32
    return %c0_i32, %c0_i32_0 : i32, i32
  }
  func.func @transform_5(%arg0: i32) -> (i32, i32) {
    %c0_i32 = arith.constant 0 : i32
    %c0_i32_0 = arith.constant 0 : i32
    %c0_i32_1 = arith.constant 0 : i32
    return %c0_i32, %c0_i32_0 : i32, i32
  }
  func.func @transform_6(%arg0: i32) -> (i32, i32) {
    %c0_i32 = arith.constant 0 : i32
    %c0_i32_0 = arith.constant 0 : i32
    return %arg0, %c0_i32 : i32, i32
  }
}

</mosaic_0001>

<llo_original>
// kernel: tpu_custom_call.1
$region0: #{tpu_custom_call.1}
  #allocation0 [shape = 'u32[]', space=smem, size = 0x4, offset = 0x4, fixed_abs, tag = 'smem constant byte address 0x4 - core index']
  #allocation1 [shape = 'u32[144,128]{1,0:T(1,128)}', space=vmem, size = 0x12000, scoped, tag = 'internal scratch']
  #allocation2 [shape = 'f32[36,290]{1,0:T(8,128)}', space=vmem, size = 0xf000, scoped, tag = 'scratch operand']
  #allocation3 [shape = 'f32[72,256]{1,0:T(8,128)}', space=vmem, size = 0x12000, scoped, tag = 'scratch operand']
  #allocation4 [shape = 'f32[324,256]{1,0:T(8,128)}', space=vmem, size = 0x52000, scoped, tag = 'scratch operand']
  #allocation5 [shape = 'f32[1,1]{1,0:T(1,128)S(1)}', space=vmem, size = 0x200, scoped, tag = 'scoped memory for tpu_custom_call.1']
  %s0 = inlined_call_operand.hbm [shape: f32[8,290], index: 0, kind: input, shape index: {}]
  %s1 = inlined_call_operand.vmem [shape: f32[4,72], index: 1, kind: input, shape index: {}]
  %s2 = inlined_call_operand.vmem [shape: f32[4,1], index: 2, kind: input, shape index: {}]
  %s3 = inlined_call_operand.hbm [shape: f32[8,324], index: 3, kind: input, shape index: {}]
  %s4 = inlined_call_operand.vmem [shape: f32[2,256], index: 4, kind: input, shape index: {}]
  %s5 = inlined_call_operand.<no memory space> [shape: f32[1,1], index: 5, kind: input, shape index: {}]
  %s6 = inlined_call_operand.hbm [shape: f32[8,256], index: 6, kind: output, shape index: {}]
  %s7 = sld [smem:[#allocation0]]
  $region42: #{tpu_custom_call.1} parent=0
    _
  %s9 = ssub.s32 1, %s7
  %s10 = scalar_select 0, %s9, %s7
  %v11 = vstv %s5
  %12 = vst [vmem:[#allocation5] sm:$0x1] %v11
  $region1: #{tpu_custom_call.1} parent=0
    #allocation6 [shape = 'u8[12288]{0}', space=vmem, size = 0x3000, scoped, tag = 'input window, operand 0, single buffered']
    #allocation7 [shape = 's32[1]{0}', space=sflag, size = 0x4, scoped, tag = 'scoped memory for tpu_custom_call.1']
    #allocation8 [shape = 's32[1]{0}', space=sflag, size = 0x4, scoped, tag = 'scoped memory for tpu_custom_call.1']
    #allocation9 [shape = 'u8[12288]{0}', space=vmem, size = 0x3000, scoped, tag = 'input window, operand 3, single buffered']
    #allocation10 [shape = 's32[1]{0}', space=sflag, size = 0x4, scoped, tag = 'scoped memory for tpu_custom_call.1']
    #allocation11 [shape = 'u8[8192]{0}', space=vmem, size = 0x2000, scoped, tag = 'output window, operand 0, single buffered']
    %13 = vsyncpa [#allocation7], 0
    %14 = vsyncpa [#allocation10], 0
    %15 = vsyncpa [#allocation8], 0
    // Predicated region
    $region2: #{tpu_custom_call.1} parent=1 // pred_check
      _
    $region3: #{tpu_custom_call.1} parent=1 // pred_check_branch
      %17 = sbr.rel (0) target = $region5
    $region4: #{tpu_custom_call.1} parent=1 // pred_region
      %s19 = ssub.s32 384, 384
      %20 = vsyncadd [#allocation7], %s19
      %s22 = sshll.u32 [#allocation6], 4
      %s23 = int_to_ptr.vmem [resolvable:$true] %s22
      %25 = dma.hbm_to_vmem [thread:$0]  %s0, 384, %s23, [#allocation7]
    $region5: #{tpu_custom_call.1} parent=1 // pred_fallthru
      _
    // Predicated region
    $region6: #{tpu_custom_call.1} parent=1 // pred_check
      _
    $region7: #{tpu_custom_call.1} parent=1 // pred_check_branch
      %27 = sbr.rel (0) target = $region9
    $region8: #{tpu_custom_call.1} parent=1 // pred_region
      _
    $region9: #{tpu_custom_call.1} parent=1 // pred_fallthru
      _
    // Predicated region
    $region10: #{tpu_custom_call.1} parent=1 // pred_check
      _
    $region11: #{tpu_custom_call.1} parent=1 // pred_check_branch
      %29 = sbr.rel (0) target = $region13
    $region12: #{tpu_custom_call.1} parent=1 // pred_region
      _
    $region13: #{tpu_custom_call.1} parent=1 // pred_fallthru
      _
    // Predicated region
    $region14: #{tpu_custom_call.1} parent=1 // pred_check
      _
    $region15: #{tpu_custom_call.1} parent=1 // pred_check_branch
      %31 = sbr.rel (0) target = $region17
    $region16: #{tpu_custom_call.1} parent=1 // pred_region
      %s33 = ssub.s32 384, 384
      %34 = vsyncadd [#allocation10], %s33
      %s36 = sshll.u32 [#allocation9], 4
      %s37 = int_to_ptr.vmem [resolvable:$true] %s36
      %39 = dma.hbm_to_vmem [thread:$0]  %s3, 384, %s37, [#allocation10]
    $region17: #{tpu_custom_call.1} parent=1 // pred_fallthru
      _
    // Predicated region
    $region18: #{tpu_custom_call.1} parent=1 // pred_check
      _
    $region19: #{tpu_custom_call.1} parent=1 // pred_check_branch
      %41 = sbr.rel (0) target = $region21
    $region20: #{tpu_custom_call.1} parent=1 // pred_region
      _
    $region21: #{tpu_custom_call.1} parent=1 // pred_fallthru
      _
    // Predicated region
    $region22: #{tpu_custom_call.1} parent=1 // pred_check
      _
    $region23: #{tpu_custom_call.1} parent=1 // pred_check_branch
      %43 = sbr.rel (0) target = $region25
    $region24: #{tpu_custom_call.1} parent=1 // pred_region
      _
    $region25: #{tpu_custom_call.1} parent=1 // pred_fallthru
      _
    // Predicated region
    $region26: #{tpu_custom_call.1} parent=1 // pred_check
      _
    $region27: #{tpu_custom_call.1} parent=1 // pred_check_branch
      %45 = sbr.rel (0) target = $region29
    $region28: #{tpu_custom_call.1} parent=1 // pred_region
      %46 = dma.done [#allocation7], 384
    $region29: #{tpu_custom_call.1} parent=1 // pred_fallthru
      _
    // Predicated region
    $region30: #{tpu_custom_call.1} parent=1 // pred_check
      _
    $region31: #{tpu_custom_call.1} parent=1 // pred_check_branch
      %48 = sbr.rel (0) target = $region33
    $region32: #{tpu_custom_call.1} parent=1 // pred_region
      %49 = dma.done [#allocation10], 384
    $region33: #{tpu_custom_call.1} parent=1 // pred_fallthru
      _
    %v50 = vld [vmem:[%s4] ss:$2 sm:$0x3]
    %v52 = vlaneseq
    %v53 = vshrl.u32 %v52, 7
    %v54 = vsub.s32 0, %v53
    %v55 = vrot.slane %v50, %v54
    %v56 = vlaneseq
    %v57 = vshrl.u32 %v56, 7
    %v58 = vsub.s32 1, %v57
    %v59 = vrot.slane %v50, %v58
    %s62 = scalar_lea.vmem %s4, 1
    %v63 = vld [vmem:[%s62] ss:$2 sm:$0x3]
    %v65 = vlaneseq
    %v66 = vshrl.u32 %v65, 7
    %v67 = vsub.s32 0, %v66
    %v68 = vrot.slane %v63, %v67
    %v69 = vlaneseq
    %v70 = vshrl.u32 %v69, 7
    %v71 = vsub.s32 1, %v70
    %v72 = vrot.slane %v63, %v71
    %v73 = vld [vmem:[#allocation6] sm:$0xff]
    %v74 = vld [vmem:[#allocation6 + $0x8] sm:$0xff]
    %v75 = vmul.f32 %v73, %v55
    %v76 = vmul.f32 %v74, %v59
    %77 = vst [vmem:[#allocation3] sm:$0xff] %v75
    %78 = vst [vmem:[#allocation3 + $0x8] sm:$0xff] %v76
    %v79 = vld [vmem:[#allocation6] sm:$0xff]
    %v80 = vld [vmem:[#allocation6 + $0x8] sm:$0xff]
    %v81 = vld [vmem:[#allocation6 + $0x10] sm:$0xff]
    %85 = vrot.lane.b32.xlu0 %v79, 127
    %v86 = vpop.permute.xlu0 %85
    %87 = vrot.lane.b32.xlu0 %v80, 127
    %v88 = vpop.permute.xlu0 %87
    %89 = vrot.lane.b32.xlu0 %v81, 127
    %v90 = vpop.permute.xlu0 %89
    %vm91 = vcmask 1039360
    %v92 = vsel %vm91, %v86, %v88
    %v93 = vsel %vm91, %v88, %v90
    %96 = vst [vmem:[#allocation3 + $0x10] sm:$0xff] %v92
    %97 = vst [vmem:[#allocation3 + $0x18] sm:$0xff] %v93
    %v98 = vld [vmem:[#allocation6] sm:$0xff]
    %v99 = vld [vmem:[#allocation6 + $0x8] sm:$0xff]
    %v100 = vld [vmem:[#allocation6 + $0x10] sm:$0xff]
    %101 = vrot.lane.b32.xlu0 %v68, 2
    %v102 = vpop.permute.xlu0 %101
    %103 = vrot.lane.b32.xlu0 %v72, 2
    %v104 = vpop.permute.xlu0 %103
    %vm105 = vcmask 15360
    %v106 = vsel %vm105, %v102, %v104
    %v110 = vmul.f32 %v98, %v102
    %v111 = vmul.f32 %v99, %v106
    %v112 = vmul.f32 %v100, %v104
    %116 = vrot.lane.b32.xlu0 %v110, 126
    %v117 = vpop.permute.xlu0 %116
    %118 = vrot.lane.b32.xlu0 %v111, 126
    %v119 = vpop.permute.xlu0 %118
    %120 = vrot.lane.b32.xlu0 %v112, 126
    %v121 = vpop.permute.xlu0 %120
    %vm122 = vcmask 1031168
    %v123 = vsel %vm122, %v117, %v119
    %v124 = vsel %vm122, %v119, %v121
    %127 = vst [vmem:[#allocation3 + $0x20] sm:$0xff] %v123
    %128 = vst [vmem:[#allocation3 + $0x28] sm:$0xff] %v124
    %v129 = vld [vmem:[#allocation6] sm:$0xff]
    %v130 = vld [vmem:[#allocation6 + $0x8] sm:$0xff]
    %v131 = vld [vmem:[#allocation6 + $0x10] sm:$0xff]
    %132 = vrot.lane.b32.xlu0 %v55, 16
    %v133 = vpop.permute.xlu0 %132
    %134 = vrot.lane.b32.xlu0 %v59, 16
    %v135 = vpop.permute.xlu0 %134
    %vm136 = vcmask 130048
    %v137 = vsel %vm136, %v133, %v135
    %v141 = vmul.f32 %v129, %v133
    %v142 = vmul.f32 %v130, %v137
    %v143 = vmul.f32 %v131, %v135
    %147 = vrot.lane.b32.xlu0 %v141, 112
    %v148 = vpop.permute.xlu0 %147
    %149 = vrot.lane.b32.xlu0 %v142, 112
    %v150 = vpop.permute.xlu0 %149
    %151 = vrot.lane.b32.xlu0 %v143, 112
    %v152 = vpop.permute.xlu0 %151
    %vm153 = vcmask 916480
    %v154 = vsel %vm153, %v148, %v150
    %v155 = vsel %vm153, %v150, %v152
    %158 = vst [vmem:[#allocation3 + $0x30] sm:$0xff] %v154
    %159 = vst [vmem:[#allocation3 + $0x38] sm:$0xff] %v155
    %v160 = vld [vmem:[#allocation6] sm:$0xff]
    %v161 = vld [vmem:[#allocation6 + $0x8] sm:$0xff]
    %v162 = vld [vmem:[#allocation6 + $0x10] sm:$0xff]
    %166 = vrot.lane.b32.xlu0 %v160, 111
    %v167 = vpop.permute.xlu0 %166
    %168 = vrot.lane.b32.xlu0 %v161, 111
    %v169 = vpop.permute.xlu0 %168
    %170 = vrot.lane.b32.xlu0 %v162, 111
    %v171 = vpop.permute.xlu0 %170
    %vm172 = vcmask 908288
    %v173 = vsel %vm172, %v167, %v169
    %v174 = vsel %vm172, %v169, %v171
    %177 = vst [vmem:[#allocation3 + $0x40] sm:$0xff] %v173
    %178 = vst [vmem:[#allocation3 + $0x48] sm:$0xff] %v174
    %v179 = vld [vmem:[#allocation6] sm:$0xff]
    %v180 = vld [vmem:[#allocation6 + $0x8] sm:$0xff]
    %v181 = vld [vmem:[#allocation6 + $0x10] sm:$0xff]
    %182 = vrot.lane.b32.xlu0 %v68, 18
    %v183 = vpop.permute.xlu0 %182
    %184 = vrot.lane.b32.xlu0 %v72, 18
    %v185 = vpop.permute.xlu0 %184
    %vm186 = vcmask 146432
    %v187 = vsel %vm186, %v183, %v185
    %v191 = vmul.f32 %v179, %v183
    %v192 = vmul.f32 %v180, %v187
    %v193 = vmul.f32 %v181, %v185
    %197 = vrot.lane.b32.xlu0 %v191, 110
    %v198 = vpop.permute.xlu0 %197
    %199 = vrot.lane.b32.xlu0 %v192, 110
    %v200 = vpop.permute.xlu0 %199
    %201 = vrot.lane.b32.xlu0 %v193, 110
    %v202 = vpop.permute.xlu0 %201
    %vm203 = vcmask 900096
    %v204 = vsel %vm203, %v198, %v200
    %v205 = vsel %vm203, %v200, %v202
    %208 = vst [vmem:[#allocation3 + $0x50] sm:$0xff] %v204
    %209 = vst [vmem:[#allocation3 + $0x58] sm:$0xff] %v205
    %v210 = vld [vmem:[#allocation6] sm:$0xff]
    %v211 = vld [vmem:[#allocation6 + $0x8] sm:$0xff]
    %v212 = vld [vmem:[#allocation6 + $0x10] sm:$0xff]
    %213 = vrot.lane.b32.xlu0 %v55, 32
    %v214 = vpop.permute.xlu0 %213
    %215 = vrot.lane.b32.xlu0 %v59, 32
    %v216 = vpop.permute.xlu0 %215
    %vm217 = vcmask 261120
    %v218 = vsel %vm217, %v214, %v216
    %v222 = vmul.f32 %v210, %v214
    %v223 = vmul.f32 %v211, %v218
    %v224 = vmul.f32 %v212, %v216
    %228 = vrot.lane.b32.xlu0 %v222, 96
    %v229 = vpop.permute.xlu0 %228
    %230 = vrot.lane.b32.xlu0 %v223, 96
    %v231 = vpop.permute.xlu0 %230
    %232 = vrot.lane.b32.xlu0 %v224, 96
    %v233 = vpop.permute.xlu0 %232
    %vm234 = vcmask 785408
    %v235 = vsel %vm234, %v229, %v231
    %v236 = vsel %vm234, %v231, %v233
    %239 = vst [vmem:[#allocation3 + $0x60] sm:$0xff] %v235
    %240 = vst [vmem:[#allocation3 + $0x68] sm:$0xff] %v236
    %v241 = vld [vmem:[#allocation6] sm:$0xff]
    %v242 = vld [vmem:[#allocation6 + $0x8] sm:$0xff]
    %v243 = vld [vmem:[#allocation6 + $0x10] sm:$0xff]
    %247 = vrot.lane.b32.xlu0 %v241, 95
    %v248 = vpop.permute.xlu0 %247
    %249 = vrot.lane.b32.xlu0 %v242, 95
    %v250 = vpop.permute.xlu0 %249
    %251 = vrot.lane.b32.xlu0 %v243, 95
    %v252 = vpop.permute.xlu0 %251
    %vm253 = vcmask 777216
    %v254 = vsel %vm253, %v248, %v250
    %v255 = vsel %vm253, %v250, %v252
    %258 = vst [vmem:[#allocation3 + $0x70] sm:$0xff] %v254
    %259 = vst [vmem:[#allocation3 + $0x78] sm:$0xff] %v255
    %v260 = vld [vmem:[#allocation6] sm:$0xff]
    %v261 = vld [vmem:[#allocation6 + $0x8] sm:$0xff]
    %v262 = vld [vmem:[#allocation6 + $0x10] sm:$0xff]
    %263 = vrot.lane.b32.xlu0 %v68, 34
    %v264 = vpop.permute.xlu0 %263
    %265 = vrot.lane.b32.xlu0 %v72, 34
    %v266 = vpop.permute.xlu0 %265
    %vm267 = vcmask 277504
    %v268 = vsel %vm267, %v264, %v266
    %v272 = vmul.f32 %v260, %v264
    %v273 = vmul.f32 %v261, %v268
    %v274 = vmul.f32 %v262, %v266
    %278 = vrot.lane.b32.xlu0 %v272, 94
    %v279 = vpop.permute.xlu0 %278
    %280 = vrot.lane.b32.xlu0 %v273, 94
    %v281 = vpop.permute.xlu0 %280
    %282 = vrot.lane.b32.xlu0 %v274, 94
    %v283 = vpop.permute.xlu0 %282
    %vm284 = vcmask 769024
    %v285 = vsel %vm284, %v279, %v281
    %v286 = vsel %vm284, %v281, %v283
    %289 = vst [vmem:[#allocation3 + $0x80] sm:$0xff] %v285
    %290 = vst [vmem:[#allocation3 + $0x88] sm:$0xff] %v286
    %v291 = vld [vmem:[%s1] sm:$0xf]
    %v292 = vld [vmem:[#allocation3] sm:$0xff]
    %v293 = vld [vmem:[#allocation3 + $0x8] sm:$0xff]
    %v294 = vld [vmem:[#allocation3 + $0x10] sm:$0xff]
    %v295 = vld [vmem:[#allocation3 + $0x18] sm:$0xff]
    %v296 = vld [vmem:[#allocation3 + $0x20] sm:$0xff]
    %v297 = vld [vmem:[#allocation3 + $0x28] sm:$0xff]
    %v298 = vld [vmem:[#allocation3 + $0x30] sm:$0xff]
    %v299 = vld [vmem:[#allocation3 + $0x38] sm:$0xff]
    %v300 = vld [vmem:[#allocation3 + $0x40] sm:$0xff]
    %v301 = vld [vmem:[#allocation3 + $0x48] sm:$0xff]
    %v302 = vld [vmem:[#allocation3 + $0x50] sm:$0xff]
    %v303 = vld [vmem:[#allocation3 + $0x58] sm:$0xff]
    %v304 = vld [vmem:[#allocation3 + $0x60] sm:$0xff]
    %v305 = vld [vmem:[#allocation3 + $0x68] sm:$0xff]
    %v306 = vld [vmem:[#allocation3 + $0x70] sm:$0xff]
    %v307 = vld [vmem:[#allocation3 + $0x78] sm:$0xff]
    %v308 = vld [vmem:[#allocation3 + $0x80] sm:$0xff]
    %v309 = vld [vmem:[#allocation3 + $0x88] sm:$0xff]
    %v310 = vld [vmem:[%s2] sm:$0xf]
    %312 = vset.pattern.permute.xlu0 0
    %313 = vperm.xlu0 %312, %v310
    %v314 = vpop.permute.xlu0 %313
    %vm316 = vcmask 588800
    %v318 = vsel %vm316, %v291, 0
    %320 = vmatprep.subr.mxu0 %v293
    %321 = vmatpush1.msra.mxu0 %v292
    %322 = vmatprep.subr.mxu0 %v295
    %323 = vmatpush1.msra.mxu0 %v294
    %324 = vmatprep.subr.mxu0 %v297
    %325 = vmatpush1.msra.mxu0 %v296
    %326 = vmatprep.subr.mxu0 %v299
    %327 = vmatpush1.msra.mxu0 %v298
    %328 = vmatprep.subr.mxu0 %v301
    %329 = vmatpush1.msra.mxu0 %v300
    %330 = vmatprep.subr.mxu0 %v303
    %331 = vmatpush1.msra.mxu0 %v302
    %332 = vmatprep.subr.mxu0 %v305
    %333 = vmatpush1.msra.mxu0 %v304
    %334 = vmatprep.subr.mxu0 %v307
    %335 = vmatpush1.msra.mxu0 %v306
    %336 = vmatprep.subr.mxu0 %v309
    %337 = vmatpush1.msra.mxu0 %v308
    %338 = vmatprep.subr.mxu0 0.0
    %339 = vmatpush1.msra.mxu0 0.0
    %340 = vmatprep.subr.mxu0 0.0
    %341 = vmatpush1.msra.mxu0 0.0
    %342 = vmatprep.subr.mxu0 0.0
    %343 = vmatpush1.msra.mxu0 0.0
    %344 = vmatprep.subr.mxu0 0.0
    %345 = vmatpush1.msra.mxu0 0.0
    %346 = vmatprep.subr.mxu0 0.0
    %347 = vmatpush1.msra.mxu0 0.0
    %348 = vmatprep.subr.mxu0 0.0
    %349 = vmatpush1.msra.mxu0 0.0
    %350 = vmatprep.subr.mxu0 0.0
    %351 = vmatpush1.msra.mxu0 0.0
    %352 = vmatprep.subr.mxu0 0.0
    %353 = vmatpush1.msra.mxu0 0.0
    %354 = vmatprep.subr.mxu0 0.0
    %355 = vmatpush1.msra.mxu0 0.0
    %356 = vmatprep.subr.mxu0 0.0
    %357 = vmatpush1.msra.mxu0 0.0
    %358 = vmatprep.subr.mxu0 0.0
    %359 = vmatpush1.msra.mxu0 0.0
    %360 = vmatprep.subr.mxu0 0.0
    %361 = vmatpush1.msra.mxu0 0.0
    %362 = vmatprep.subr.mxu0 0.0
    %363 = vmatpush1.msra.mxu0 0.0
    %364 = vmatprep.subr.mxu0 0.0
    %365 = vmatpush1.msra.mxu0 0.0
    %366 = vmatprep.subr.mxu0 0.0
    %367 = vmatpush1.msra.mxu0 0.0
    %368 = vmatprep.subr.mxu0 0.0
    %369 = vmatpush1.msra.mxu0 0.0
    %370 = vmatprep.subr.mxu0 0.0
    %371 = vmatpush1.msra.mxu0 0.0
    %372 = vmatprep.subr.mxu0 0.0
    %373 = vmatpush1.msra.mxu0 0.0
    %374 = vmatprep.subr.mxu0 0.0
    %375 = vmatpush1.msra.mxu0 0.0
    %376 = vmatprep.subr.mxu0 0.0
    %377 = vmatpush1.msra.mxu0 0.0
    %378 = vmatprep.subr.mxu0 0.0
    %379 = vmatpush1.msra.mxu0 0.0
    %380 = vmatprep.subr.mxu0 0.0
    %381 = vmatpush1.msra.mxu0 0.0
    %382 = vmatprep.subr.mxu0 0.0
    %383 = vmatpush1.msra.mxu0 0.0
    %384 = vmatprep.mubr.f32.mxu0 0.0
    %385 = vmatmul.mubr.f32.gmra.mrb[0].mxu0 %v318
    %v386 = vpop.f32.mrb[0].mxu0
    %v387 = vadd.f32 %v314, %v386
    %v388 = vpop.f32.mrb[0].mxu0
    %v389 = vadd.f32 %v314, %v388
    %390 = vdwg.mxu0
    %v391 = vxor.u32 %v387, 2147483648
    %v392 = vxor.u32 %v389, 2147483648
    %v393 = vmul.f32 %v391, 1.442695
    %v394 = vpow.pop %v393
    %v395 = vmul.f32 %v392, 1.442695
    %v396 = vpow.pop %v395
    %v397 = vadd.f32 %v394, 1.0
    %v398 = vadd.f32 %v396, 1.0
    %v399 = vrcp.pop %v397
    %v400 = vmul.f32 1.0, %v399
    %v401 = vrcp.pop %v398
    %v402 = vmul.f32 1.0, %v401
    %v403 = vmul.f32 %v387, %v400
    %v404 = vmul.f32 %v389, %v402
    %vm405 = vcmask 138240
    %406 = vst.msk [vmem:[#allocation2] sm:$0xff] %vm405, 0.0
    %407 = vst.msk [vmem:[#allocation2 + $0x18] sm:$0xff] %vm405, 0.0
    %408 = vst.msk [vmem:[#allocation2 + $0x30] sm:$0xff] %vm405, 0.0
    %409 = vst.msk [vmem:[#allocation2 + $0x48] sm:$0xff] %vm405, 0.0
    %vm410 = vcmask 134144
    %411 = vst.msk [vmem:[#allocation2 + $0x60] sm:$0xf] %vm410, 0.0
    %vm412 = vcmask 277640
    %413 = vst.msk [vmem:[#allocation2 + $0x10] sm:$0xff] %vm412, 0.0
    %414 = vst.msk [vmem:[#allocation2 + $0x28] sm:$0xff] %vm412, 0.0
    %415 = vst.msk [vmem:[#allocation2 + $0x40] sm:$0xff] %vm412, 0.0
    %416 = vst.msk [vmem:[#allocation2 + $0x58] sm:$0xff] %vm412, 0.0
    %vm417 = vcmask 273544
    %418 = vst.msk [vmem:[#allocation2 + $0x70] sm:$0xf] %vm417, 0.0
    %v419 = vmul.f32 %v403, 0.5
    %v420 = vmul.f32 %v404, 0.5
    %v421 = vmul.f32 %v403, 0.70710677
    %v422 = vmul.f32 %v404, 0.70710677
    %vm423 = vcmp.ge.f32.partialorder %v421, 0.0
    %vm424 = vcmp.ge.f32.partialorder %v422, 0.0
    %v425 = vsel %vm423, 1.0, -1.0
    %v426 = vsel %vm424, 1.0, -1.0
    %v427 = vand.u32 2147483647, %v421
    %v428 = vand.u32 2147483647, %v422
    %v429 = vmul.f32 %v427, 0.3275911
    %v430 = vmul.f32 %v428, 0.3275911
    %v431 = vadd.f32 %v429, 1.0
    %v432 = vadd.f32 %v430, 1.0
    %v433 = vrcp.pop %v431
    %v434 = vrcp.pop %v432
    %v435 = vmul.f32 %v431, %v433
    %v436 = vmul.f32 %v432, %v434
    %v437 = vsub.f32 2.0, %v435
    %v438 = vsub.f32 2.0, %v436
    %v439 = vmul.f32 %v433, %v437
    %v440 = vmul.f32 %v434, %v438
    %v441 = vmul.f32 %v439, 1.0614054
    %v442 = vmul.f32 %v440, 1.0614054
    %v443 = vadd.f32 %v441, -1.4531521
    %v444 = vadd.f32 %v442, -1.4531521
    %v445 = vmul.f32 %v443, %v439
    %v446 = vmul.f32 %v444, %v440
    %v447 = vadd.f32 %v445, 1.4214138
    %v448 = vadd.f32 %v446, 1.4214138
    %v449 = vmul.f32 %v447, %v439
    %v450 = vmul.f32 %v448, %v440
    %v451 = vadd.f32 %v449, -0.28449672
    %v452 = vadd.f32 %v450, -0.28449672
    %v453 = vmul.f32 %v451, %v439
    %v454 = vmul.f32 %v452, %v440
    %v455 = vadd.f32 %v453, 0.2548296
    %v456 = vadd.f32 %v454, 0.2548296
    %v457 = vmul.f32 %v455, %v439
    %v458 = vmul.f32 %v456, %v440
    %v459 = vsub.f32 0.0, %v427
    %v460 = vsub.f32 0.0, %v428
    %v461 = vmul.f32 %v459, %v427
    %v462 = vmul.f32 %v460, %v428
    %v463 = vmul.f32 %v461, 1.442695
    %v464 = vpow.pop %v463
    %v465 = vmul.f32 %v462, 1.442695
    %v466 = vpow.pop %v465
    %v467 = vmul.f32 %v457, %v464
    %v468 = vmul.f32 %v458, %v466
    %v469 = vsub.f32 1.0, %v467
    %v470 = vsub.f32 1.0, %v468
    %v471 = vmul.f32 %v425, %v469
    %v472 = vmul.f32 %v426, %v470
    %v473 = vadd.f32 %v471, 1.0
    %v474 = vadd.f32 %v472, 1.0
    %v475 = vmul.f32 %v419, %v473
    %v476 = vmul.f32 %v420, %v474
    %479 = vrot.lane.b32.xlu0 %v475, 17
    %v480 = vpop.permute.xlu0 %479
    %481 = vrot.lane.b32.xlu0 %v476, 17
    %v482 = vpop.permute.xlu0 %481
    %v483 = vsel %vm405, %v480, %v482
    %vm487 = vcmask 1041544
    %488 = vst.msk [vmem:[#allocation2] sm:$0x3] %vm487, %v480
    %489 = vst [vmem:[#allocation2 + $0x8] sm:$0x3] %v483
    %vm490 = vcmask 132096
    %491 = vst.msk [vmem:[#allocation2 + $0x10] sm:$0x3] %vm490, %v482
    %vm492 = vcmask 1043594
    %493 = vst.msk [vmem:[#allocation2 + $0x30] sm:$0xc] %vm492, %v480
    %494 = vst [vmem:[#allocation2 + $0x38] sm:$0xc] %v483
    %vm495 = vcmask 134146
    %496 = vst.msk [vmem:[#allocation2 + $0x40] sm:$0xc] %vm495, %v482
    %v497 = vsub.f32 %v403, -2.2
    %v498 = vsub.f32 %v404, -2.2
    %v499 = vsub.f32 %v403, -1.8
    %v500 = vsub.f32 %v404, -1.8
    %v501 = vsub.f32 %v403, -1.4
    %v502 = vsub.f32 %v404, -1.4
    %v503 = vsub.f32 %v403, -1.0
    %v504 = vsub.f32 %v404, -1.0
    %v505 = vsub.f32 %v403, -0.6
    %v506 = vsub.f32 %v404, -0.6
    %v507 = vsub.f32 %v403, -0.2
    %v508 = vsub.f32 %v404, -0.2
    %v509 = vsub.f32 %v403, 0.2
    %v510 = vsub.f32 %v404, 0.2
    %v511 = vsub.f32 %v403, 0.6
    %v512 = vsub.f32 %v404, 0.6
    %v513 = vsub.f32 %v403, 1.0
    %v514 = vsub.f32 %v404, 1.0
    %v515 = vsub.f32 %v403, 1.4
    %v516 = vsub.f32 %v404, 1.4
    %v517 = vsub.f32 %v403, 1.8
    %v518 = vsub.f32 %v404, 1.8
    %v519 = vsub.f32 %v403, 2.2
    %v520 = vsub.f32 %v404, 2.2
    %vm521 = vcmp.ge.f32.partialorder %v403, -2.2
    %vm522 = vcmp.ge.f32.partialorder %v404, -2.2
    %v523 = vsel %vm521, 1, 0
    %v524 = vsel %vm522, 1, 0
    %v525 = vcvt.s32.f32 %v523
    %v526 = vcvt.s32.f32 %v524
    %vm527 = vcmp.ge.f32.partialorder %v403, -1.8
    %vm528 = vcmp.ge.f32.partialorder %v404, -1.8
    %v529 = vsel %vm527, 1, 0
    %v530 = vsel %vm528, 1, 0
    %v531 = vcvt.s32.f32 %v529
    %v532 = vcvt.s32.f32 %v530
    %vm533 = vcmp.ge.f32.partialorder %v403, -1.4
    %vm534 = vcmp.ge.f32.partialorder %v404, -1.4
    %v535 = vsel %vm533, 1, 0
    %v536 = vsel %vm534, 1, 0
    %v537 = vcvt.s32.f32 %v535
    %v538 = vcvt.s32.f32 %v536
    %vm539 = vcmp.ge.f32.partialorder %v403, -1.0
    %vm540 = vcmp.ge.f32.partialorder %v404, -1.0
    %v541 = vsel %vm539, 1, 0
    %v542 = vsel %vm540, 1, 0
    %v543 = vcvt.s32.f32 %v541
    %v544 = vcvt.s32.f32 %v542
    %vm545 = vcmp.ge.f32.partialorder %v403, -0.6
    %vm546 = vcmp.ge.f32.partialorder %v404, -0.6
    %v547 = vsel %vm545, 1, 0
    %v548 = vsel %vm546, 1, 0
    %v549 = vcvt.s32.f32 %v547
    %v550 = vcvt.s32.f32 %v548
    %vm551 = vcmp.ge.f32.partialorder %v403, -0.2
    %vm552 = vcmp.ge.f32.partialorder %v404, -0.2
    %v553 = vsel %vm551, 1, 0
    %v554 = vsel %vm552, 1, 0
    %v555 = vcvt.s32.f32 %v553
    %v556 = vcvt.s32.f32 %v554
    %vm557 = vcmp.ge.f32.partialorder %v403, 0.2
    %vm558 = vcmp.ge.f32.partialorder %v404, 0.2
    %v559 = vsel %vm557, 1, 0
    %v560 = vsel %vm558, 1, 0
    %v561 = vcvt.s32.f32 %v559
    %v562 = vcvt.s32.f32 %v560
    %vm563 = vcmp.ge.f32.partialorder %v403, 0.6
    %vm564 = vcmp.ge.f32.partialorder %v404, 0.6
    %v565 = vsel %vm563, 1, 0
    %v566 = vsel %vm564, 1, 0
    %v567 = vcvt.s32.f32 %v565
    %v568 = vcvt.s32.f32 %v566
    %vm569 = vcmp.ge.f32.partialorder %v403, 1.0
    %vm570 = vcmp.ge.f32.partialorder %v404, 1.0
    %v571 = vsel %vm569, 1, 0
    %v572 = vsel %vm570, 1, 0
    %v573 = vcvt.s32.f32 %v571
    %v574 = vcvt.s32.f32 %v572
    %vm575 = vcmp.ge.f32.partialorder %v403, 1.4
    %vm576 = vcmp.ge.f32.partialorder %v404, 1.4
    %v577 = vsel %vm575, 1, 0
    %v578 = vsel %vm576, 1, 0
    %v579 = vcvt.s32.f32 %v577
    %v580 = vcvt.s32.f32 %v578
    %vm581 = vcmp.ge.f32.partialorder %v403, 1.8
    %vm582 = vcmp.ge.f32.partialorder %v404, 1.8
    %v583 = vsel %vm581, 1, 0
    %v584 = vsel %vm582, 1, 0
    %v585 = vcvt.s32.f32 %v583
    %v586 = vcvt.s32.f32 %v584
    %vm587 = vcmp.ge.f32.partialorder %v403, 2.2
    %vm588 = vcmp.ge.f32.partialorder %v404, 2.2
    %v589 = vsel %vm587, 1, 0
    %v590 = vsel %vm588, 1, 0
    %v591 = vcvt.s32.f32 %v589
    %v592 = vcvt.s32.f32 %v590
    %v593 = vsub.f32 %v525, %v531
    %v594 = vsub.f32 %v526, %v532
    %v595 = vsub.f32 %v531, %v537
    %v596 = vsub.f32 %v532, %v538
    %v597 = vsub.f32 %v537, %v543
    %v598 = vsub.f32 %v538, %v544
    %v599 = vsub.f32 %v543, %v549
    %v600 = vsub.f32 %v544, %v550
    %v601 = vsub.f32 %v549, %v555
    %v602 = vsub.f32 %v550, %v556
    %v603 = vsub.f32 %v555, %v561
    %v604 = vsub.f32 %v556, %v562
    %v605 = vsub.f32 %v561, %v567
    %v606 = vsub.f32 %v562, %v568
    %v607 = vsub.f32 %v567, %v573
    %v608 = vsub.f32 %v568, %v574
    %v609 = vsub.f32 %v573, %v579
    %v610 = vsub.f32 %v574, %v580
    %v611 = vsub.f32 %v579, %v585
    %v612 = vsub.f32 %v580, %v586
    %v613 = vsub.f32 %v585, %v591
    %v614 = vsub.f32 %v586, %v592
    %v615 = vmul.f32 %v497, 2.5
    %v616 = vmul.f32 %v498, 2.5
    %v617 = vmul.f32 %v615, %v593
    %v618 = vmul.f32 %v616, %v594
    %v619 = vmul.f32 %v501, -2.5
    %v620 = vmul.f32 %v502, -2.5
    %v621 = vmul.f32 %v619, %v595
    %v622 = vmul.f32 %v620, %v596
    %v623 = vadd.f32 %v617, %v621
    %v624 = vadd.f32 %v618, %v622
    %v625 = vmul.f32 %v499, 2.5
    %v626 = vmul.f32 %v500, 2.5
    %v627 = vmul.f32 %v625, %v595
    %v628 = vmul.f32 %v626, %v596
    %v629 = vmul.f32 %v503, -2.5
    %v630 = vmul.f32 %v504, -2.5
    %v631 = vmul.f32 %v629, %v597
    %v632 = vmul.f32 %v630, %v598
    %v633 = vadd.f32 %v627, %v631
    %v634 = vadd.f32 %v628, %v632
    %v635 = vmul.f32 %v501, 2.5
    %v636 = vmul.f32 %v502, 2.5
    %v637 = vmul.f32 %v635, %v597
    %v638 = vmul.f32 %v636, %v598
    %v639 = vmul.f32 %v505, -2.5
    %v640 = vmul.f32 %v506, -2.5
    %v641 = vmul.f32 %v639, %v599
    %v642 = vmul.f32 %v640, %v600
    %v643 = vadd.f32 %v637, %v641
    %v644 = vadd.f32 %v638, %v642
    %v645 = vmul.f32 %v503, 2.5
    %v646 = vmul.f32 %v504, 2.5
    %v647 = vmul.f32 %v645, %v599
    %v648 = vmul.f32 %v646, %v600
    %v649 = vmul.f32 %v507, -2.5
    %v650 = vmul.f32 %v508, -2.5
    %v651 = vmul.f32 %v649, %v601
    %v652 = vmul.f32 %v650, %v602
    %v653 = vadd.f32 %v647, %v651
    %v654 = vadd.f32 %v648, %v652
    %v655 = vmul.f32 %v505, 2.5
    %v656 = vmul.f32 %v506, 2.5
    %v657 = vmul.f32 %v655, %v601
    %v658 = vmul.f32 %v656, %v602
    %v659 = vmul.f32 %v509, -2.5
    %v660 = vmul.f32 %v510, -2.5
    %v661 = vmul.f32 %v659, %v603
    %v662 = vmul.f32 %v660, %v604
    %v663 = vadd.f32 %v657, %v661
    %v664 = vadd.f32 %v658, %v662
    %v665 = vmul.f32 %v507, 2.5
    %v666 = vmul.f32 %v508, 2.5
    %v667 = vmul.f32 %v665, %v603
    %v668 = vmul.f32 %v666, %v604
    %v669 = vmul.f32 %v511, -2.5
    %v670 = vmul.f32 %v512, -2.5
    %v671 = vmul.f32 %v669, %v605
    %v672 = vmul.f32 %v670, %v606
    %v673 = vadd.f32 %v667, %v671
    %v674 = vadd.f32 %v668, %v672
    %v675 = vmul.f32 %v509, 2.5
    %v676 = vmul.f32 %v510, 2.5
    %v677 = vmul.f32 %v675, %v605
    %v678 = vmul.f32 %v676, %v606
    %v679 = vmul.f32 %v513, -2.5
    %v680 = vmul.f32 %v514, -2.5
    %v681 = vmul.f32 %v679, %v607
    %v682 = vmul.f32 %v680, %v608
    %v683 = vadd.f32 %v677, %v681
    %v684 = vadd.f32 %v678, %v682
    %v685 = vmul.f32 %v511, 2.5
    %v686 = vmul.f32 %v512, 2.5
    %v687 = vmul.f32 %v685, %v607
    %v688 = vmul.f32 %v686, %v608
    %v689 = vmul.f32 %v515, -2.5
    %v690 = vmul.f32 %v516, -2.5
    %v691 = vmul.f32 %v689, %v609
    %v692 = vmul.f32 %v690, %v610
    %v693 = vadd.f32 %v687, %v691
    %v694 = vadd.f32 %v688, %v692
    %v695 = vmul.f32 %v513, 2.5
    %v696 = vmul.f32 %v514, 2.5
    %v697 = vmul.f32 %v695, %v609
    %v698 = vmul.f32 %v696, %v610
    %v699 = vmul.f32 %v517, -2.5
    %v700 = vmul.f32 %v518, -2.5
    %v701 = vmul.f32 %v699, %v611
    %v702 = vmul.f32 %v700, %v612
    %v703 = vadd.f32 %v697, %v701
    %v704 = vadd.f32 %v698, %v702
    %v705 = vmul.f32 %v515, 2.5
    %v706 = vmul.f32 %v516, 2.5
    %v707 = vmul.f32 %v705, %v611
    %v708 = vmul.f32 %v706, %v612
    %v709 = vmul.f32 %v519, -2.5
    %v710 = vmul.f32 %v520, -2.5
    %v711 = vmul.f32 %v709, %v613
    %v712 = vmul.f32 %v710, %v614
    %v713 = vadd.f32 %v707, %v711
    %v714 = vadd.f32 %v708, %v712
    %v715 = vmul.f32 %v497, 1.25
    %v716 = vmul.f32 %v498, 1.25
    %v717 = vmul.f32 %v715, %v623
    %v718 = vmul.f32 %v716, %v624
    %v719 = vmul.f32 %v503, -1.25
    %v720 = vmul.f32 %v504, -1.25
    %v721 = vmul.f32 %v719, %v633
    %v722 = vmul.f32 %v720, %v634
    %v723 = vadd.f32 %v717, %v721
    %v724 = vadd.f32 %v718, %v722
    %v725 = vmul.f32 %v499, 1.25
    %v726 = vmul.f32 %v500, 1.25
    %v727 = vmul.f32 %v725, %v633
    %v728 = vmul.f32 %v726, %v634
    %v729 = vmul.f32 %v505, -1.25
    %v730 = vmul.f32 %v506, -1.25
    %v731 = vmul.f32 %v729, %v643
    %v732 = vmul.f32 %v730, %v644
    %v733 = vadd.f32 %v727, %v731
    %v734 = vadd.f32 %v728, %v732
    %v735 = vmul.f32 %v501, 1.25
    %v736 = vmul.f32 %v502, 1.25
    %v737 = vmul.f32 %v735, %v643
    %v738 = vmul.f32 %v736, %v644
    %v739 = vmul.f32 %v507, -1.25
    %v740 = vmul.f32 %v508, -1.25
    %v741 = vmul.f32 %v739, %v653
    %v742 = vmul.f32 %v740, %v654
    %v743 = vadd.f32 %v737, %v741
    %v744 = vadd.f32 %v738, %v742
    %v745 = vmul.f32 %v503, 1.25
    %v746 = vmul.f32 %v504, 1.25
    %v747 = vmul.f32 %v745, %v653
    %v748 = vmul.f32 %v746, %v654
    %v749 = vmul.f32 %v509, -1.25
    %v750 = vmul.f32 %v510, -1.25
    %v751 = vmul.f32 %v749, %v663
    %v752 = vmul.f32 %v750, %v664
    %v753 = vadd.f32 %v747, %v751
    %v754 = vadd.f32 %v748, %v752
    %v755 = vmul.f32 %v505, 1.25
    %v756 = vmul.f32 %v506, 1.25
    %v757 = vmul.f32 %v755, %v663
    %v758 = vmul.f32 %v756, %v664
    %v759 = vmul.f32 %v511, -1.25
    %v760 = vmul.f32 %v512, -1.25
    %v761 = vmul.f32 %v759, %v673
    %v762 = vmul.f32 %v760, %v674
    %v763 = vadd.f32 %v757, %v761
    %v764 = vadd.f32 %v758, %v762
    %v765 = vmul.f32 %v507, 1.25
    %v766 = vmul.f32 %v508, 1.25
    %v767 = vmul.f32 %v765, %v673
    %v768 = vmul.f32 %v766, %v674
    %v769 = vmul.f32 %v513, -1.25
    %v770 = vmul.f32 %v514, -1.25
    %v771 = vmul.f32 %v769, %v683
    %v772 = vmul.f32 %v770, %v684
    %v773 = vadd.f32 %v767, %v771
    %v774 = vadd.f32 %v768, %v772
    %v775 = vmul.f32 %v509, 1.25
    %v776 = vmul.f32 %v510, 1.25
    %v777 = vmul.f32 %v775, %v683
    %v778 = vmul.f32 %v776, %v684
    %v779 = vmul.f32 %v515, -1.25
    %v780 = vmul.f32 %v516, -1.25
    %v781 = vmul.f32 %v779, %v693
    %v782 = vmul.f32 %v780, %v694
    %v783 = vadd.f32 %v777, %v781
    %v784 = vadd.f32 %v778, %v782
    %v785 = vmul.f32 %v511, 1.25
    %v786 = vmul.f32 %v512, 1.25
    %v787 = vmul.f32 %v785, %v693
    %v788 = vmul.f32 %v786, %v694
    %v789 = vmul.f32 %v517, -1.25
    %v790 = vmul.f32 %v518, -1.25
    %v791 = vmul.f32 %v789, %v703
    %v792 = vmul.f32 %v790, %v704
    %v793 = vadd.f32 %v787, %v791
    %v794 = vadd.f32 %v788, %v792
    %v795 = vmul.f32 %v513, 1.25
    %v796 = vmul.f32 %v514, 1.25
    %v797 = vmul.f32 %v795, %v703
    %v798 = vmul.f32 %v796, %v704
    %v799 = vmul.f32 %v519, -1.25
    %v800 = vmul.f32 %v520, -1.25
    %v801 = vmul.f32 %v799, %v713
    %v802 = vmul.f32 %v800, %v714
    %v803 = vadd.f32 %v797, %v801
    %v804 = vadd.f32 %v798, %v802
    %v805 = vmul.f32 %v497, 0.8333333
    %v806 = vmul.f32 %v498, 0.8333333
    %v807 = vmul.f32 %v805, %v723
    %v808 = vmul.f32 %v806, %v724
    %v809 = vmul.f32 %v505, -0.8333333
    %v810 = vmul.f32 %v506, -0.8333333
    %v811 = vmul.f32 %v809, %v733
    %v812 = vmul.f32 %v810, %v734
    %v813 = vadd.f32 %v807, %v811
    %v814 = vadd.f32 %v808, %v812
    %v815 = vmul.f32 %v499, 0.8333333
    %v816 = vmul.f32 %v500, 0.8333333
    %v817 = vmul.f32 %v815, %v733
    %v818 = vmul.f32 %v816, %v734
    %v819 = vmul.f32 %v507, -0.8333333
    %v820 = vmul.f32 %v508, -0.8333333
    %v821 = vmul.f32 %v819, %v743
    %v822 = vmul.f32 %v820, %v744
    %v823 = vadd.f32 %v817, %v821
    %v824 = vadd.f32 %v818, %v822
    %v825 = vmul.f32 %v501, 0.8333333
    %v826 = vmul.f32 %v502, 0.8333333
    %v827 = vmul.f32 %v825, %v743
    %v828 = vmul.f32 %v826, %v744
    %v829 = vmul.f32 %v509, -0.8333333
    %v830 = vmul.f32 %v510, -0.8333333
    %v831 = vmul.f32 %v829, %v753
    %v832 = vmul.f32 %v830, %v754
    %v833 = vadd.f32 %v827, %v831
    %v834 = vadd.f32 %v828, %v832
    %v835 = vmul.f32 %v503, 0.8333333
    %v836 = vmul.f32 %v504, 0.8333333
    %v837 = vmul.f32 %v835, %v753
    %v838 = vmul.f32 %v836, %v754
    %v839 = vmul.f32 %v511, -0.8333333
    %v840 = vmul.f32 %v512, -0.8333333
    %v841 = vmul.f32 %v839, %v763
    %v842 = vmul.f32 %v840, %v764
    %v843 = vadd.f32 %v837, %v841
    %v844 = vadd.f32 %v838, %v842
    %v845 = vmul.f32 %v505, 0.8333333
    %v846 = vmul.f32 %v506, 0.8333333
    %v847 = vmul.f32 %v845, %v763
    %v848 = vmul.f32 %v846, %v764
    %v849 = vmul.f32 %v513, -0.8333333
    %v850 = vmul.f32 %v514, -0.8333333
    %v851 = vmul.f32 %v849, %v773
    %v852 = vmul.f32 %v850, %v774
    %v853 = vadd.f32 %v847, %v851
    %v854 = vadd.f32 %v848, %v852
    %v855 = vmul.f32 %v507, 0.8333333
    %v856 = vmul.f32 %v508, 0.8333333
    %v857 = vmul.f32 %v855, %v773
    %v858 = vmul.f32 %v856, %v774
    %v859 = vmul.f32 %v515, -0.8333333
    %v860 = vmul.f32 %v516, -0.8333333
    %v861 = vmul.f32 %v859, %v783
    %v862 = vmul.f32 %v860, %v784
    %v863 = vadd.f32 %v857, %v861
    %v864 = vadd.f32 %v858, %v862
    %v865 = vmul.f32 %v509, 0.8333333
    %v866 = vmul.f32 %v510, 0.8333333
    %v867 = vmul.f32 %v865, %v783
    %v868 = vmul.f32 %v866, %v784
    %v869 = vmul.f32 %v517, -0.8333333
    %v870 = vmul.f32 %v518, -0.8333333
    %v871 = vmul.f32 %v869, %v793
    %v872 = vmul.f32 %v870, %v794
    %v873 = vadd.f32 %v867, %v871
    %v874 = vadd.f32 %v868, %v872
    %v875 = vmul.f32 %v511, 0.8333333
    %v876 = vmul.f32 %v512, 0.8333333
    %v877 = vmul.f32 %v875, %v793
    %v878 = vmul.f32 %v876, %v794
    %v879 = vmul.f32 %v519, -0.8333333
    %v880 = vmul.f32 %v520, -0.8333333
    %v881 = vmul.f32 %v879, %v803
    %v882 = vmul.f32 %v880, %v804
    %v883 = vadd.f32 %v877, %v881
    %v884 = vadd.f32 %v878, %v882
    %v887 = vrot.slane %v813, 6
    %v888 = vrot.slane %v814, 6
    %889 = vrot.lane.b32.xlu0 %v887, 17
    %v890 = vpop.permute.xlu0 %889
    %891 = vrot.lane.b32.xlu0 %v888, 17
    %v892 = vpop.permute.xlu0 %891
    %v893 = vsel %vm405, %v890, %v892
    %897 = vst.msk [vmem:[#allocation2] sm:$0xc] %vm492, %v890
    %898 = vst [vmem:[#allocation2 + $0x8] sm:$0xc] %v893
    %899 = vst.msk [vmem:[#allocation2 + $0x10] sm:$0xc] %vm495, %v892
    %vm900 = vcmask 1045644
    %901 = vst.msk [vmem:[#allocation2 + $0x30] sm:$0x30] %vm900, %v890
    %902 = vst [vmem:[#allocation2 + $0x38] sm:$0x30] %v893
    %vm903 = vcmask 136196
    %904 = vst.msk [vmem:[#allocation2 + $0x40] sm:$0x30] %vm903, %v892
    %v907 = vrot.slane %v823, 4
    %v908 = vrot.slane %v824, 4
    %909 = vrot.lane.b32.xlu0 %v907, 17
    %v910 = vpop.permute.xlu0 %909
    %911 = vrot.lane.b32.xlu0 %v908, 17
    %v912 = vpop.permute.xlu0 %911
    %v913 = vsel %vm405, %v910, %v912
    %917 = vst.msk [vmem:[#allocation2] sm:$0x30] %vm900, %v910
    %918 = vst [vmem:[#allocation2 + $0x8] sm:$0x30] %v913
    %919 = vst.msk [vmem:[#allocation2 + $0x10] sm:$0x30] %vm903, %v912
    %vm920 = vcmask 1047694
    %921 = vst.msk [vmem:[#allocation2 + $0x30] sm:$0xc0] %vm920, %v910
    %922 = vst [vmem:[#allocation2 + $0x38] sm:$0xc0] %v913
    %vm923 = vcmask 138246
    %924 = vst.msk [vmem:[#allocation2 + $0x40] sm:$0xc0] %vm923, %v912
    %v927 = vrot.slane %v833, 2
    %v928 = vrot.slane %v834, 2
    %929 = vrot.lane.b32.xlu0 %v927, 17
    %v930 = vpop.permute.xlu0 %929
    %931 = vrot.lane.b32.xlu0 %v928, 17
    %v932 = vpop.permute.xlu0 %931
    %v933 = vsel %vm405, %v930, %v932
    %937 = vst.msk [vmem:[#allocation2] sm:$0xc0] %vm920, %v930
    %938 = vst [vmem:[#allocation2 + $0x8] sm:$0xc0] %v933
    %939 = vst.msk [vmem:[#allocation2 + $0x10] sm:$0xc0] %vm923, %v932
    %940 = vst.msk [vmem:[#allocation2 + $0x48] sm:$0x3] %vm487, %v930
    %941 = vst [vmem:[#allocation2 + $0x50] sm:$0x3] %v933
    %942 = vst.msk [vmem:[#allocation2 + $0x58] sm:$0x3] %vm490, %v932
    %945 = vrot.lane.b32.xlu0 %v843, 17
    %v946 = vpop.permute.xlu0 %945
    %947 = vrot.lane.b32.xlu0 %v844, 17
    %v948 = vpop.permute.xlu0 %947
    %v949 = vsel %vm405, %v946, %v948
    %953 = vst.msk [vmem:[#allocation2 + $0x18] sm:$0x3] %vm487, %v946
    %954 = vst [vmem:[#allocation2 + $0x20] sm:$0x3] %v949
    %955 = vst.msk [vmem:[#allocation2 + $0x28] sm:$0x3] %vm490, %v948
    %956 = vst.msk [vmem:[#allocation2 + $0x48] sm:$0xc] %vm492, %v946
    %957 = vst [vmem:[#allocation2 + $0x50] sm:$0xc] %v949
    %958 = vst.msk [vmem:[#allocation2 + $0x58] sm:$0xc] %vm495, %v948
    %v961 = vrot.slane %v853, 6
    %v962 = vrot.slane %v854, 6
    %963 = vrot.lane.b32.xlu0 %v961, 17
    %v964 = vpop.permute.xlu0 %963
    %965 = vrot.lane.b32.xlu0 %v962, 17
    %v966 = vpop.permute.xlu0 %965
    %v967 = vsel %vm405, %v964, %v966
    %971 = vst.msk [vmem:[#allocation2 + $0x18] sm:$0xc] %vm492, %v964
    %972 = vst [vmem:[#allocation2 + $0x20] sm:$0xc] %v967
    %973 = vst.msk [vmem:[#allocation2 + $0x28] sm:$0xc] %vm495, %v966
    %974 = vst.msk [vmem:[#allocation2 + $0x48] sm:$0x30] %vm900, %v964
    %975 = vst [vmem:[#allocation2 + $0x50] sm:$0x30] %v967
    %976 = vst.msk [vmem:[#allocation2 + $0x58] sm:$0x30] %vm903, %v966
    %v979 = vrot.slane %v863, 4
    %v980 = vrot.slane %v864, 4
    %981 = vrot.lane.b32.xlu0 %v979, 17
    %v982 = vpop.permute.xlu0 %981
    %983 = vrot.lane.b32.xlu0 %v980, 17
    %v984 = vpop.permute.xlu0 %983
    %v985 = vsel %vm405, %v982, %v984
    %989 = vst.msk [vmem:[#allocation2 + $0x18] sm:$0x30] %vm900, %v982
    %990 = vst [vmem:[#allocation2 + $0x20] sm:$0x30] %v985
    %991 = vst.msk [vmem:[#allocation2 + $0x28] sm:$0x30] %vm903, %v984
    %992 = vst.msk [vmem:[#allocation2 + $0x48] sm:$0xc0] %vm920, %v982
    %993 = vst [vmem:[#allocation2 + $0x50] sm:$0xc0] %v985
    %994 = vst.msk [vmem:[#allocation2 + $0x58] sm:$0xc0] %vm923, %v984
    %v997 = vrot.slane %v873, 2
    %v998 = vrot.slane %v874, 2
    %999 = vrot.lane.b32.xlu0 %v997, 17
    %v1000 = vpop.permute.xlu0 %999
    %1001 = vrot.lane.b32.xlu0 %v998, 17
    %v1002 = vpop.permute.xlu0 %1001
    %v1003 = vsel %vm405, %v1000, %v1002
    %1007 = vst.msk [vmem:[#allocation2 + $0x18] sm:$0xc0] %vm920, %v1000
    %1008 = vst [vmem:[#allocation2 + $0x20] sm:$0xc0] %v1003
    %1009 = vst.msk [vmem:[#allocation2 + $0x28] sm:$0xc0] %vm923, %v1002
    %1010 = vst.msk [vmem:[#allocation2 + $0x60] sm:$0x3] %vm487, %v1000
    %1011 = vst [vmem:[#allocation2 + $0x68] sm:$0x3] %v1003
    %1012 = vst.msk [vmem:[#allocation2 + $0x70] sm:$0x3] %vm490, %v1002
    %1015 = vrot.lane.b32.xlu0 %v883, 17
    %v1016 = vpop.permute.xlu0 %1015
    %1017 = vrot.lane.b32.xlu0 %v884, 17
    %v1018 = vpop.permute.xlu0 %1017
    %v1019 = vsel %vm405, %v1016, %v1018
    %1023 = vst.msk [vmem:[#allocation2 + $0x30] sm:$0x3] %vm487, %v1016
    %1024 = vst [vmem:[#allocation2 + $0x38] sm:$0x3] %v1019
    %1025 = vst.msk [vmem:[#allocation2 + $0x40] sm:$0x3] %vm490, %v1018
    %1026 = vst.msk [vmem:[#allocation2 + $0x60] sm:$0xc] %vm492, %v1016
    %1027 = vst [vmem:[#allocation2 + $0x68] sm:$0xc] %v1019
    %1028 = vst.msk [vmem:[#allocation2 + $0x70] sm:$0xc] %vm495, %v1018
    %v1029 = vld [vmem:[#allocation2] sm:$0xff]
    %v1030 = vld [vmem:[#allocation2 + $0x8] sm:$0xff]
    %v1031 = vld [vmem:[#allocation2 + $0x18] sm:$0xff]
    %v1032 = vld [vmem:[#allocation2 + $0x20] sm:$0xff]
    %v1033 = vld [vmem:[#allocation2 + $0x30] sm:$0xff]
    %v1034 = vld [vmem:[#allocation2 + $0x38] sm:$0xff]
    %v1035 = vld [vmem:[#allocation2 + $0x48] sm:$0xff]
    %v1036 = vld [vmem:[#allocation2 + $0x50] sm:$0xff]
    %v1037 = vld [vmem:[#allocation2 + $0x60] sm:$0xf]
    %v1038 = vld [vmem:[#allocation2 + $0x68] sm:$0xf]
    %v1039 = vmul.f32 %v1029, %v55
    %v1040 = vmul.f32 %v1030, %v59
    %v1041 = vmul.f32 %v1031, %v55
    %v1042 = vmul.f32 %v1032, %v59
    %v1043 = vmul.f32 %v1033, %v55
    %v1044 = vmul.f32 %v1034, %v59
    %v1045 = vmul.f32 %v1035, %v55
    %v1046 = vmul.f32 %v1036, %v59
    %v1047 = vmul.f32 %v1037, %v55
    %v1048 = vmul.f32 %v1038, %v59
    %1049 = vst [vmem:[#allocation4] sm:$0xff] %v1039
    %1050 = vst [vmem:[#allocation4 + $0x8] sm:$0xff] %v1040
    %1051 = vst [vmem:[#allocation4 + $0x10] sm:$0xff] %v1041
    %1052 = vst [vmem:[#allocation4 + $0x18] sm:$0xff] %v1042
    %1053 = vst [vmem:[#allocation4 + $0x20] sm:$0xff] %v1043
    %1054 = vst [vmem:[#allocation4 + $0x28] sm:$0xff] %v1044
    %1055 = vst [vmem:[#allocation4 + $0x30] sm:$0xff] %v1045
    %1056 = vst [vmem:[#allocation4 + $0x38] sm:$0xff] %v1046
    %1057 = vst [vmem:[#allocation4 + $0x40] sm:$0xf] %v1047
    %1058 = vst [vmem:[#allocation4 + $0x48] sm:$0xf] %v1048
    %v1059 = vld [vmem:[#allocation2] sm:$0xff]
    %v1060 = vld [vmem:[#allocation2 + $0x8] sm:$0xff]
    %v1061 = vld [vmem:[#allocation2 + $0x10] sm:$0xff]
    %v1062 = vld [vmem:[#allocation2 + $0x18] sm:$0xff]
    %v1063 = vld [vmem:[#allocation2 + $0x20] sm:$0xff]
    %v1064 = vld [vmem:[#allocation2 + $0x28] sm:$0xff]
    %v1065 = vld [vmem:[#allocation2 + $0x30] sm:$0xff]
    %v1066 = vld [vmem:[#allocation2 + $0x38] sm:$0xff]
    %v1067 = vld [vmem:[#allocation2 + $0x40] sm:$0xff]
    %v1068 = vld [vmem:[#allocation2 + $0x48] sm:$0xff]
    %v1069 = vld [vmem:[#allocation2 + $0x50] sm:$0xff]
    %v1070 = vld [vmem:[#allocation2 + $0x58] sm:$0xff]
    %v1071 = vld [vmem:[#allocation2 + $0x60] sm:$0xf]
    %v1072 = vld [vmem:[#allocation2 + $0x68] sm:$0xf]
    %v1073 = vld [vmem:[#allocation2 + $0x70] sm:$0xf]
    %vm1089 = vcmask 1043456
    %v1090 = vrot.slane %v1059, 4
    %v1091 = vrot.slane %v1060, 4
    %v1092 = vrot.slane %v1061, 4
    %v1093 = vrot.slane %v1062, 4
    %v1094 = vsel %vm1089, %v1090, %v1093
    %v1095 = vrot.slane %v1063, 4
    %v1096 = vsel %vm1089, %v1091, %v1095
    %v1097 = vrot.slane %v1064, 4
    %v1098 = vsel %vm1089, %v1092, %v1097
    %v1099 = vrot.slane %v1065, 4
    %v1100 = vsel %vm1089, %v1093, %v1099
    %v1101 = vrot.slane %v1066, 4
    %v1102 = vsel %vm1089, %v1095, %v1101
    %v1103 = vrot.slane %v1067, 4
    %v1104 = vsel %vm1089, %v1097, %v1103
    %v1105 = vrot.slane %v1068, 4
    %v1106 = vsel %vm1089, %v1099, %v1105
    %v1107 = vrot.slane %v1069, 4
    %v1108 = vsel %vm1089, %v1101, %v1107
    %v1109 = vrot.slane %v1070, 4
    %v1110 = vsel %vm1089, %v1103, %v1109
    %v1111 = vrot.slane %v1071, 4
    %v1112 = vsel %vm1089, %v1105, %v1111
    %v1113 = vrot.slane %v1072, 4
    %v1114 = vsel %vm1089, %v1107, %v1113
    %v1115 = vrot.slane %v1073, 4
    %v1116 = vsel %vm1089, %v1109, %v1115
    %1117 = vrot.lane.b32.xlu0 %v1090, 127
    %v1118 = vpop.permute.xlu0 %1117
    %1119 = vrot.lane.b32.xlu0 %v1091, 127
    %v1120 = vpop.permute.xlu0 %1119
    %1121 = vrot.lane.b32.xlu0 %v1092, 127
    %v1122 = vpop.permute.xlu0 %1121
    %1123 = vrot.lane.b32.xlu0 %v1094, 127
    %v1124 = vpop.permute.xlu0 %1123
    %1125 = vrot.lane.b32.xlu0 %v1096, 127
    %v1126 = vpop.permute.xlu0 %1125
    %1127 = vrot.lane.b32.xlu0 %v1098, 127
    %v1128 = vpop.permute.xlu0 %1127
    %1129 = vrot.lane.b32.xlu0 %v1100, 127
    %v1130 = vpop.permute.xlu0 %1129
    %1131 = vrot.lane.b32.xlu0 %v1102, 127
    %v1132 = vpop.permute.xlu0 %1131
    %1133 = vrot.lane.b32.xlu0 %v1104, 127
    %v1134 = vpop.permute.xlu0 %1133
    %1135 = vrot.lane.b32.xlu0 %v1106, 127
    %v1136 = vpop.permute.xlu0 %1135
    %1137 = vrot.lane.b32.xlu0 %v1108, 127
    %v1138 = vpop.permute.xlu0 %1137
    %1139 = vrot.lane.b32.xlu0 %v1110, 127
    %v1140 = vpop.permute.xlu0 %1139
    %1141 = vrot.lane.b32.xlu0 %v1112, 127
    %v1142 = vpop.permute.xlu0 %1141
    %1143 = vrot.lane.b32.xlu0 %v1114, 127
    %v1144 = vpop.permute.xlu0 %1143
    %1145 = vrot.lane.b32.xlu0 %v1116, 127
    %v1146 = vpop.permute.xlu0 %1145
    %v1147 = vsel %vm91, %v1118, %v1120
    %v1148 = vsel %vm91, %v1120, %v1122
    %v1149 = vsel %vm91, %v1124, %v1126
    %v1150 = vsel %vm91, %v1126, %v1128
    %v1151 = vsel %vm91, %v1130, %v1132
    %v1152 = vsel %vm91, %v1132, %v1134
    %v1153 = vsel %vm91, %v1136, %v1138
    %v1154 = vsel %vm91, %v1138, %v1140
    %v1155 = vsel %vm91, %v1142, %v1144
    %v1156 = vsel %vm91, %v1144, %v1146
    %1167 = vst [vmem:[#allocation4 + $0x40] sm:$0xf0] %v1147
    %1168 = vst [vmem:[#allocation4 + $0x48] sm:$0xf0] %v1148
    %1169 = vst [vmem:[#allocation4 + $0x50] sm:$0xff] %v1149
    %1170 = vst [vmem:[#allocation4 + $0x58] sm:$0xff] %v1150
    %1171 = vst [vmem:[#allocation4 + $0x60] sm:$0xff] %v1151
    %1172 = vst [vmem:[#allocation4 + $0x68] sm:$0xff] %v1152
    %1173 = vst [vmem:[#allocation4 + $0x70] sm:$0xff] %v1153
    %1174 = vst [vmem:[#allocation4 + $0x78] sm:$0xff] %v1154
    %1175 = vst [vmem:[#allocation4 + $0x80] sm:$0xff] %v1155
    %1176 = vst [vmem:[#allocation4 + $0x88] sm:$0xff] %v1156
    %v1177 = vld [vmem:[#allocation2] sm:$0xff]
    %v1178 = vld [vmem:[#allocation2 + $0x8] sm:$0xff]
    %v1179 = vld [vmem:[#allocation2 + $0x10] sm:$0xff]
    %v1180 = vld [vmem:[#allocation2 + $0x18] sm:$0xff]
    %v1181 = vld [vmem:[#allocation2 + $0x20] sm:$0xff]
    %v1182 = vld [vmem:[#allocation2 + $0x28] sm:$0xff]
    %v1183 = vld [vmem:[#allocation2 + $0x30] sm:$0xff]
    %v1184 = vld [vmem:[#allocation2 + $0x38] sm:$0xff]
    %v1185 = vld [vmem:[#allocation2 + $0x40] sm:$0xff]
    %v1186 = vld [vmem:[#allocation2 + $0x48] sm:$0xff]
    %v1187 = vld [vmem:[#allocation2 + $0x50] sm:$0xff]
    %v1188 = vld [vmem:[#allocation2 + $0x58] sm:$0xff]
    %v1189 = vld [vmem:[#allocation2 + $0x60] sm:$0xf]
    %v1190 = vld [vmem:[#allocation2 + $0x68] sm:$0xf]
    %v1191 = vld [vmem:[#allocation2 + $0x70] sm:$0xf]
    %v1192 = vmul.f32 %v1177, %v102
    %v1193 = vmul.f32 %v1178, %v106
    %v1194 = vmul.f32 %v1179, %v104
    %v1195 = vmul.f32 %v1180, %v102
    %v1196 = vmul.f32 %v1181, %v106
    %v1197 = vmul.f32 %v1182, %v104
    %v1198 = vmul.f32 %v1183, %v102
    %v1199 = vmul.f32 %v1184, %v106
    %v1200 = vmul.f32 %v1185, %v104
    %v1201 = vmul.f32 %v1186, %v102
    %v1202 = vmul.f32 %v1187, %v106
    %v1203 = vmul.f32 %v1188, %v104
    %v1204 = vmul.f32 %v1189, %v102
    %v1205 = vmul.f32 %v1190, %v106
    %v1206 = vmul.f32 %v1191, %v104
    %1222 = vrot.lane.b32.xlu0 %v1192, 126
    %v1223 = vpop.permute.xlu0 %1222
    %1224 = vrot.lane.b32.xlu0 %v1193, 126
    %v1225 = vpop.permute.xlu0 %1224
    %1226 = vrot.lane.b32.xlu0 %v1194, 126
    %v1227 = vpop.permute.xlu0 %1226
    %1228 = vrot.lane.b32.xlu0 %v1195, 126
    %v1229 = vpop.permute.xlu0 %1228
    %1230 = vrot.lane.b32.xlu0 %v1196, 126
    %v1231 = vpop.permute.xlu0 %1230
    %1232 = vrot.lane.b32.xlu0 %v1197, 126
    %v1233 = vpop.permute.xlu0 %1232
    %1234 = vrot.lane.b32.xlu0 %v1198, 126
    %v1235 = vpop.permute.xlu0 %1234
    %1236 = vrot.lane.b32.xlu0 %v1199, 126
    %v1237 = vpop.permute.xlu0 %1236
    %1238 = vrot.lane.b32.xlu0 %v1200, 126
    %v1239 = vpop.permute.xlu0 %1238
    %1240 = vrot.lane.b32.xlu0 %v1201, 126
    %v1241 = vpop.permute.xlu0 %1240
    %1242 = vrot.lane.b32.xlu0 %v1202, 126
    %v1243 = vpop.permute.xlu0 %1242
    %1244 = vrot.lane.b32.xlu0 %v1203, 126
    %v1245 = vpop.permute.xlu0 %1244
    %1246 = vrot.lane.b32.xlu0 %v1204, 126
    %v1247 = vpop.permute.xlu0 %1246
    %1248 = vrot.lane.b32.xlu0 %v1205, 126
    %v1249 = vpop.permute.xlu0 %1248
    %1250 = vrot.lane.b32.xlu0 %v1206, 126
    %v1251 = vpop.permute.xlu0 %1250
    %v1252 = vsel %vm122, %v1223, %v1225
    %v1253 = vsel %vm122, %v1225, %v1227
    %v1254 = vsel %vm122, %v1229, %v1231
    %v1255 = vsel %vm122, %v1231, %v1233
    %v1256 = vsel %vm122, %v1235, %v1237
    %v1257 = vsel %vm122, %v1237, %v1239
    %v1258 = vsel %vm122, %v1241, %v1243
    %v1259 = vsel %vm122, %v1243, %v1245
    %v1260 = vsel %vm122, %v1247, %v1249
    %v1261 = vsel %vm122, %v1249, %v1251
    %1272 = vst [vmem:[#allocation4 + $0x90] sm:$0xff] %v1252
    %1273 = vst [vmem:[#allocation4 + $0x98] sm:$0xff] %v1253
    %1274 = vst [vmem:[#allocation4 + $0xa0] sm:$0xff] %v1254
    %1275 = vst [vmem:[#allocation4 + $0xa8] sm:$0xff] %v1255
    %1276 = vst [vmem:[#allocation4 + $0xb0] sm:$0xff] %v1256
    %1277 = vst [vmem:[#allocation4 + $0xb8] sm:$0xff] %v1257
    %1278 = vst [vmem:[#allocation4 + $0xc0] sm:$0xff] %v1258
    %1279 = vst [vmem:[#allocation4 + $0xc8] sm:$0xff] %v1259
    %1280 = vst [vmem:[#allocation4 + $0xd0] sm:$0xf] %v1260
    %1281 = vst [vmem:[#allocation4 + $0xd8] sm:$0xf] %v1261
    %v1282 = vld [vmem:[#allocation2] sm:$0xff]
    %v1283 = vld [vmem:[#allocation2 + $0x8] sm:$0xff]
    %v1284 = vld [vmem:[#allocation2 + $0x10] sm:$0xff]
    %v1285 = vld [vmem:[#allocation2 + $0x18] sm:$0xff]
    %v1286 = vld [vmem:[#allocation2 + $0x20] sm:$0xff]
    %v1287 = vld [vmem:[#allocation2 + $0x28] sm:$0xff]
    %v1288 = vld [vmem:[#allocation2 + $0x30] sm:$0xff]
    %v1289 = vld [vmem:[#allocation2 + $0x38] sm:$0xff]
    %v1290 = vld [vmem:[#allocation2 + $0x40] sm:$0xff]
    %v1291 = vld [vmem:[#allocation2 + $0x48] sm:$0xff]
    %v1292 = vld [vmem:[#allocation2 + $0x50] sm:$0xff]
    %v1293 = vld [vmem:[#allocation2 + $0x58] sm:$0xff]
    %v1294 = vld [vmem:[#allocation2 + $0x60] sm:$0xf]
    %v1295 = vld [vmem:[#allocation2 + $0x68] sm:$0xf]
    %v1296 = vld [vmem:[#allocation2 + $0x70] sm:$0xf]
    %v1297 = vmul.f32 %v1282, %v133
    %v1298 = vmul.f32 %v1283, %v137
    %v1299 = vmul.f32 %v1284, %v135
    %v1300 = vmul.f32 %v1285, %v133
    %v1301 = vmul.f32 %v1286, %v137
    %v1302 = vmul.f32 %v1287, %v135
    %v1303 = vmul.f32 %v1288, %v133
    %v1304 = vmul.f32 %v1289, %v137
    %v1305 = vmul.f32 %v1290, %v135
    %v1306 = vmul.f32 %v1291, %v133
    %v1307 = vmul.f32 %v1292, %v137
    %v1308 = vmul.f32 %v1293, %v135
    %v1309 = vmul.f32 %v1294, %v133
    %v1310 = vmul.f32 %v1295, %v137
    %v1311 = vmul.f32 %v1296, %v135
    %v1327 = vrot.slane %v1297, 4
    %v1328 = vrot.slane %v1298, 4
    %v1329 = vrot.slane %v1299, 4
    %v1330 = vrot.slane %v1300, 4
    %v1331 = vsel %vm1089, %v1327, %v1330
    %v1332 = vrot.slane %v1301, 4
    %v1333 = vsel %vm1089, %v1328, %v1332
    %v1334 = vrot.slane %v1302, 4
    %v1335 = vsel %vm1089, %v1329, %v1334
    %v1336 = vrot.slane %v1303, 4
    %v1337 = vsel %vm1089, %v1330, %v1336
    %v1338 = vrot.slane %v1304, 4
    %v1339 = vsel %vm1089, %v1332, %v1338
    %v1340 = vrot.slane %v1305, 4
    %v1341 = vsel %vm1089, %v1334, %v1340
    %v1342 = vrot.slane %v1306, 4
    %v1343 = vsel %vm1089, %v1336, %v1342
    %v1344 = vrot.slane %v1307, 4
    %v1345 = vsel %vm1089, %v1338, %v1344
    %v1346 = vrot.slane %v1308, 4
    %v1347 = vsel %vm1089, %v1340, %v1346
    %v1348 = vrot.slane %v1309, 4
    %v1349 = vsel %vm1089, %v1342, %v1348
    %v1350 = vrot.slane %v1310, 4
    %v1351 = vsel %vm1089, %v1344, %v1350
    %v1352 = vrot.slane %v1311, 4
    %v1353 = vsel %vm1089, %v1346, %v1352
    %1354 = vrot.lane.b32.xlu0 %v1327, 112
    %v1355 = vpop.permute.xlu0 %1354
    %1356 = vrot.lane.b32.xlu0 %v1328, 112
    %v1357 = vpop.permute.xlu0 %1356
    %1358 = vrot.lane.b32.xlu0 %v1329, 112
    %v1359 = vpop.permute.xlu0 %1358
    %1360 = vrot.lane.b32.xlu0 %v1331, 112
    %v1361 = vpop.permute.xlu0 %1360
    %1362 = vrot.lane.b32.xlu0 %v1333, 112
    %v1363 = vpop.permute.xlu0 %1362
    %1364 = vrot.lane.b32.xlu0 %v1335, 112
    %v1365 = vpop.permute.xlu0 %1364
    %1366 = vrot.lane.b32.xlu0 %v1337, 112
    %v1367 = vpop.permute.xlu0 %1366
    %1368 = vrot.lane.b32.xlu0 %v1339, 112
    %v1369 = vpop.permute.xlu0 %1368
    %1370 = vrot.lane.b32.xlu0 %v1341, 112
    %v1371 = vpop.permute.xlu0 %1370
    %1372 = vrot.lane.b32.xlu0 %v1343, 112
    %v1373 = vpop.permute.xlu0 %1372
    %1374 = vrot.lane.b32.xlu0 %v1345, 112
    %v1375 = vpop.permute.xlu0 %1374
    %1376 = vrot.lane.b32.xlu0 %v1347, 112
    %v1377 = vpop.permute.xlu0 %1376
    %1378 = vrot.lane.b32.xlu0 %v1349, 112
    %v1379 = vpop.permute.xlu0 %1378
    %1380 = vrot.lane.b32.xlu0 %v1351, 112
    %v1381 = vpop.permute.xlu0 %1380
    %1382 = vrot.lane.b32.xlu0 %v1353, 112
    %v1383 = vpop.permute.xlu0 %1382
    %v1384 = vsel %vm153, %v1355, %v1357
    %v1385 = vsel %vm153, %v1357, %v1359
    %v1386 = vsel %vm153, %v1361, %v1363
    %v1387 = vsel %vm153, %v1363, %v1365
    %v1388 = vsel %vm153, %v1367, %v1369
    %v1389 = vsel %vm153, %v1369, %v1371
    %v1390 = vsel %vm153, %v1373, %v1375
    %v1391 = vsel %vm153, %v1375, %v1377
    %v1392 = vsel %vm153, %v1379, %v1381
    %v1393 = vsel %vm153, %v1381, %v1383
    %1404 = vst [vmem:[#allocation4 + $0xd0] sm:$0xf0] %v1384
    %1405 = vst [vmem:[#allocation4 + $0xd8] sm:$0xf0] %v1385
    %1406 = vst [vmem:[#allocation4 + $0xe0] sm:$0xff] %v1386
    %1407 = vst [vmem:[#allocation4 + $0xe8] sm:$0xff] %v1387
    %1408 = vst [vmem:[#allocation4 + $0xf0] sm:$0xff] %v1388
    %1409 = vst [vmem:[#allocation4 + $0xf8] sm:$0xff] %v1389
    %1410 = vst [vmem:[#allocation4 + $0x100] sm:$0xff] %v1390
    %1411 = vst [vmem:[#allocation4 + $0x108] sm:$0xff] %v1391
    %1412 = vst [vmem:[#allocation4 + $0x110] sm:$0xff] %v1392
    %1413 = vst [vmem:[#allocation4 + $0x118] sm:$0xff] %v1393
    %v1414 = vld [vmem:[#allocation2] sm:$0xff]
    %v1415 = vld [vmem:[#allocation2 + $0x8] sm:$0xff]
    %v1416 = vld [vmem:[#allocation2 + $0x10] sm:$0xff]
    %v1417 = vld [vmem:[#allocation2 + $0x18] sm:$0xff]
    %v1418 = vld [vmem:[#allocation2 + $0x20] sm:$0xff]
    %v1419 = vld [vmem:[#allocation2 + $0x28] sm:$0xff]
    %v1420 = vld [vmem:[#allocation2 + $0x30] sm:$0xff]
    %v1421 = vld [vmem:[#allocation2 + $0x38] sm:$0xff]
    %v1422 = vld [vmem:[#allocation2 + $0x40] sm:$0xff]
    %v1423 = vld [vmem:[#allocation2 + $0x48] sm:$0xff]
    %v1424 = vld [vmem:[#allocation2 + $0x50] sm:$0xff]
    %v1425 = vld [vmem:[#allocation2 + $0x58] sm:$0xff]
    %v1426 = vld [vmem:[#allocation2 + $0x60] sm:$0xf]
    %v1427 = vld [vmem:[#allocation2 + $0x68] sm:$0xf]
    %v1428 = vld [vmem:[#allocation2 + $0x70] sm:$0xf]
    %1444 = vrot.lane.b32.xlu0 %v1414, 111
    %v1445 = vpop.permute.xlu0 %1444
    %1446 = vrot.lane.b32.xlu0 %v1415, 111
    %v1447 = vpop.permute.xlu0 %1446
    %1448 = vrot.lane.b32.xlu0 %v1416, 111
    %v1449 = vpop.permute.xlu0 %1448
    %1450 = vrot.lane.b32.xlu0 %v1417, 111
    %v1451 = vpop.permute.xlu0 %1450
    %1452 = vrot.lane.b32.xlu0 %v1418, 111
    %v1453 = vpop.permute.xlu0 %1452
    %1454 = vrot.lane.b32.xlu0 %v1419, 111
    %v1455 = vpop.permute.xlu0 %1454
    %1456 = vrot.lane.b32.xlu0 %v1420, 111
    %v1457 = vpop.permute.xlu0 %1456
    %1458 = vrot.lane.b32.xlu0 %v1421, 111
    %v1459 = vpop.permute.xlu0 %1458
    %1460 = vrot.lane.b32.xlu0 %v1422, 111
    %v1461 = vpop.permute.xlu0 %1460
    %1462 = vrot.lane.b32.xlu0 %v1423, 111
    %v1463 = vpop.permute.xlu0 %1462
    %1464 = vrot.lane.b32.xlu0 %v1424, 111
    %v1465 = vpop.permute.xlu0 %1464
    %1466 = vrot.lane.b32.xlu0 %v1425, 111
    %v1467 = vpop.permute.xlu0 %1466
    %1468 = vrot.lane.b32.xlu0 %v1426, 111
    %v1469 = vpop.permute.xlu0 %1468
    %1470 = vrot.lane.b32.xlu0 %v1427, 111
    %v1471 = vpop.permute.xlu0 %1470
    %1472 = vrot.lane.b32.xlu0 %v1428, 111
    %v1473 = vpop.permute.xlu0 %1472
    %v1474 = vsel %vm172, %v1445, %v1447
    %v1475 = vsel %vm172, %v1447, %v1449
    %v1476 = vsel %vm172, %v1451, %v1453
    %v1477 = vsel %vm172, %v1453, %v1455
    %v1478 = vsel %vm172, %v1457, %v1459
    %v1479 = vsel %vm172, %v1459, %v1461
    %v1480 = vsel %vm172, %v1463, %v1465
    %v1481 = vsel %vm172, %v1465, %v1467
    %v1482 = vsel %vm172, %v1469, %v1471
    %v1483 = vsel %vm172, %v1471, %v1473
    %1494 = vst [vmem:[#allocation4 + $0x120] sm:$0xff] %v1474
    %1495 = vst [vmem:[#allocation4 + $0x128] sm:$0xff] %v1475
    %1496 = vst [vmem:[#allocation4 + $0x130] sm:$0xff] %v1476
    %1497 = vst [vmem:[#allocation4 + $0x138] sm:$0xff] %v1477
    %1498 = vst [vmem:[#allocation4 + $0x140] sm:$0xff] %v1478
    %1499 = vst [vmem:[#allocation4 + $0x148] sm:$0xff] %v1479
    %1500 = vst [vmem:[#allocation4 + $0x150] sm:$0xff] %v1480
    %1501 = vst [vmem:[#allocation4 + $0x158] sm:$0xff] %v1481
    %1502 = vst [vmem:[#allocation4 + $0x160] sm:$0xf] %v1482
    %1503 = vst [vmem:[#allocation4 + $0x168] sm:$0xf] %v1483
    %v1504 = vld [vmem:[#allocation2] sm:$0xff]
    %v1505 = vld [vmem:[#allocation2 + $0x8] sm:$0xff]
    %v1506 = vld [vmem:[#allocation2 + $0x10] sm:$0xff]
    %v1507 = vld [vmem:[#allocation2 + $0x18] sm:$0xff]
    %v1508 = vld [vmem:[#allocation2 + $0x20] sm:$0xff]
    %v1509 = vld [vmem:[#allocation2 + $0x28] sm:$0xff]
    %v1510 = vld [vmem:[#allocation2 + $0x30] sm:$0xff]
    %v1511 = vld [vmem:[#allocation2 + $0x38] sm:$0xff]
    %v1512 = vld [vmem:[#allocation2 + $0x40] sm:$0xff]
    %v1513 = vld [vmem:[#allocation2 + $0x48] sm:$0xff]
    %v1514 = vld [vmem:[#allocation2 + $0x50] sm:$0xff]
    %v1515 = vld [vmem:[#allocation2 + $0x58] sm:$0xff]
    %v1516 = vld [vmem:[#allocation2 + $0x60] sm:$0xf]
    %v1517 = vld [vmem:[#allocation2 + $0x68] sm:$0xf]
    %v1518 = vld [vmem:[#allocation2 + $0x70] sm:$0xf]
    %v1519 = vmul.f32 %v1504, %v183
    %v1520 = vmul.f32 %v1505, %v187
    %v1521 = vmul.f32 %v1506, %v185
    %v1522 = vmul.f32 %v1507, %v183
    %v1523 = vmul.f32 %v1508, %v187
    %v1524 = vmul.f32 %v1509, %v185
    %v1525 = vmul.f32 %v1510, %v183
    %v1526 = vmul.f32 %v1511, %v187
    %v1527 = vmul.f32 %v1512, %v185
    %v1528 = vmul.f32 %v1513, %v183
    %v1529 = vmul.f32 %v1514, %v187
    %v1530 = vmul.f32 %v1515, %v185
    %v1531 = vmul.f32 %v1516, %v183
    %v1532 = vmul.f32 %v1517, %v187
    %v1533 = vmul.f32 %v1518, %v185
    %v1549 = vrot.slane %v1519, 4
    %v1550 = vrot.slane %v1520, 4
    %v1551 = vrot.slane %v1521, 4
    %v1552 = vrot.slane %v1522, 4
    %v1553 = vsel %vm1089, %v1549, %v1552
    %v1554 = vrot.slane %v1523, 4
    %v1555 = vsel %vm1089, %v1550, %v1554
    %v1556 = vrot.slane %v1524, 4
    %v1557 = vsel %vm1089, %v1551, %v1556
    %v1558 = vrot.slane %v1525, 4
    %v1559 = vsel %vm1089, %v1552, %v1558
    %v1560 = vrot.slane %v1526, 4
    %v1561 = vsel %vm1089, %v1554, %v1560
    %v1562 = vrot.slane %v1527, 4
    %v1563 = vsel %vm1089, %v1556, %v1562
    %v1564 = vrot.slane %v1528, 4
    %v1565 = vsel %vm1089, %v1558, %v1564
    %v1566 = vrot.slane %v1529, 4
    %v1567 = vsel %vm1089, %v1560, %v1566
    %v1568 = vrot.slane %v1530, 4
    %v1569 = vsel %vm1089, %v1562, %v1568
    %v1570 = vrot.slane %v1531, 4
    %v1571 = vsel %vm1089, %v1564, %v1570
    %v1572 = vrot.slane %v1532, 4
    %v1573 = vsel %vm1089, %v1566, %v1572
    %v1574 = vrot.slane %v1533, 4
    %v1575 = vsel %vm1089, %v1568, %v1574
    %1576 = vrot.lane.b32.xlu0 %v1549, 110
    %v1577 = vpop.permute.xlu0 %1576
    %1578 = vrot.lane.b32.xlu0 %v1550, 110
    %v1579 = vpop.permute.xlu0 %1578
    %1580 = vrot.lane.b32.xlu0 %v1551, 110
    %v1581 = vpop.permute.xlu0 %1580
    %1582 = vrot.lane.b32.xlu0 %v1553, 110
    %v1583 = vpop.permute.xlu0 %1582
    %1584 = vrot.lane.b32.xlu0 %v1555, 110
    %v1585 = vpop.permute.xlu0 %1584
    %1586 = vrot.lane.b32.xlu0 %v1557, 110
    %v1587 = vpop.permute.xlu0 %1586
    %1588 = vrot.lane.b32.xlu0 %v1559, 110
    %v1589 = vpop.permute.xlu0 %1588
    %1590 = vrot.lane.b32.xlu0 %v1561, 110
    %v1591 = vpop.permute.xlu0 %1590
    %1592 = vrot.lane.b32.xlu0 %v1563, 110
    %v1593 = vpop.permute.xlu0 %1592
    %1594 = vrot.lane.b32.xlu0 %v1565, 110
    %v1595 = vpop.permute.xlu0 %1594
    %1596 = vrot.lane.b32.xlu0 %v1567, 110
    %v1597 = vpop.permute.xlu0 %1596
    %1598 = vrot.lane.b32.xlu0 %v1569, 110
    %v1599 = vpop.permute.xlu0 %1598
    %1600 = vrot.lane.b32.xlu0 %v1571, 110
    %v1601 = vpop.permute.xlu0 %1600
    %1602 = vrot.lane.b32.xlu0 %v1573, 110
    %v1603 = vpop.permute.xlu0 %1602
    %1604 = vrot.lane.b32.xlu0 %v1575, 110
    %v1605 = vpop.permute.xlu0 %1604
    %v1606 = vsel %vm203, %v1577, %v1579
    %v1607 = vsel %vm203, %v1579, %v1581
    %v1608 = vsel %vm203, %v1583, %v1585
    %v1609 = vsel %vm203, %v1585, %v1587
    %v1610 = vsel %vm203, %v1589, %v1591
    %v1611 = vsel %vm203, %v1591, %v1593
    %v1612 = vsel %vm203, %v1595, %v1597
    %v1613 = vsel %vm203, %v1597, %v1599
    %v1614 = vsel %vm203, %v1601, %v1603
    %v1615 = vsel %vm203, %v1603, %v1605
    %1626 = vst [vmem:[#allocation4 + $0x160] sm:$0xf0] %v1606
    %1627 = vst [vmem:[#allocation4 + $0x168] sm:$0xf0] %v1607
    %1628 = vst [vmem:[#allocation4 + $0x170] sm:$0xff] %v1608
    %1629 = vst [vmem:[#allocation4 + $0x178] sm:$0xff] %v1609
    %1630 = vst [vmem:[#allocation4 + $0x180] sm:$0xff] %v1610
    %1631 = vst [vmem:[#allocation4 + $0x188] sm:$0xff] %v1611
    %1632 = vst [vmem:[#allocation4 + $0x190] sm:$0xff] %v1612
    %1633 = vst [vmem:[#allocation4 + $0x198] sm:$0xff] %v1613
    %1634 = vst [vmem:[#allocation4 + $0x1a0] sm:$0xff] %v1614
    %1635 = vst [vmem:[#allocation4 + $0x1a8] sm:$0xff] %v1615
    %v1636 = vld [vmem:[#allocation2] sm:$0xff]
    %v1637 = vld [vmem:[#allocation2 + $0x8] sm:$0xff]
    %v1638 = vld [vmem:[#allocation2 + $0x10] sm:$0xff]
    %v1639 = vld [vmem:[#allocation2 + $0x18] sm:$0xff]
    %v1640 = vld [vmem:[#allocation2 + $0x20] sm:$0xff]
    %v1641 = vld [vmem:[#allocation2 + $0x28] sm:$0xff]
    %v1642 = vld [vmem:[#allocation2 + $0x30] sm:$0xff]
    %v1643 = vld [vmem:[#allocation2 + $0x38] sm:$0xff]
    %v1644 = vld [vmem:[#allocation2 + $0x40] sm:$0xff]
    %v1645 = vld [vmem:[#allocation2 + $0x48] sm:$0xff]
    %v1646 = vld [vmem:[#allocation2 + $0x50] sm:$0xff]
    %v1647 = vld [vmem:[#allocation2 + $0x58] sm:$0xff]
    %v1648 = vld [vmem:[#allocation2 + $0x60] sm:$0xf]
    %v1649 = vld [vmem:[#allocation2 + $0x68] sm:$0xf]
    %v1650 = vld [vmem:[#allocation2 + $0x70] sm:$0xf]
    %v1651 = vmul.f32 %v1636, %v214
    %v1652 = vmul.f32 %v1637, %v218
    %v1653 = vmul.f32 %v1638, %v216
    %v1654 = vmul.f32 %v1639, %v214
    %v1655 = vmul.f32 %v1640, %v218
    %v1656 = vmul.f32 %v1641, %v216
    %v1657 = vmul.f32 %v1642, %v214
    %v1658 = vmul.f32 %v1643, %v218
    %v1659 = vmul.f32 %v1644, %v216
    %v1660 = vmul.f32 %v1645, %v214
    %v1661 = vmul.f32 %v1646, %v218
    %v1662 = vmul.f32 %v1647, %v216
    %v1663 = vmul.f32 %v1648, %v214
    %v1664 = vmul.f32 %v1649, %v218
    %v1665 = vmul.f32 %v1650, %v216
    %1681 = vrot.lane.b32.xlu0 %v1651, 96
    %v1682 = vpop.permute.xlu0 %1681
    %1683 = vrot.lane.b32.xlu0 %v1652, 96
    %v1684 = vpop.permute.xlu0 %1683
    %1685 = vrot.lane.b32.xlu0 %v1653, 96
    %v1686 = vpop.permute.xlu0 %1685
    %1687 = vrot.lane.b32.xlu0 %v1654, 96
    %v1688 = vpop.permute.xlu0 %1687
    %1689 = vrot.lane.b32.xlu0 %v1655, 96
    %v1690 = vpop.permute.xlu0 %1689
    %1691 = vrot.lane.b32.xlu0 %v1656, 96
    %v1692 = vpop.permute.xlu0 %1691
    %1693 = vrot.lane.b32.xlu0 %v1657, 96
    %v1694 = vpop.permute.xlu0 %1693
    %1695 = vrot.lane.b32.xlu0 %v1658, 96
    %v1696 = vpop.permute.xlu0 %1695
    %1697 = vrot.lane.b32.xlu0 %v1659, 96
    %v1698 = vpop.permute.xlu0 %1697
    %1699 = vrot.lane.b32.xlu0 %v1660, 96
    %v1700 = vpop.permute.xlu0 %1699
    %1701 = vrot.lane.b32.xlu0 %v1661, 96
    %v1702 = vpop.permute.xlu0 %1701
    %1703 = vrot.lane.b32.xlu0 %v1662, 96
    %v1704 = vpop.permute.xlu0 %1703
    %1705 = vrot.lane.b32.xlu0 %v1663, 96
    %v1706 = vpop.permute.xlu0 %1705
    %1707 = vrot.lane.b32.xlu0 %v1664, 96
    %v1708 = vpop.permute.xlu0 %1707
    %1709 = vrot.lane.b32.xlu0 %v1665, 96
    %v1710 = vpop.permute.xlu0 %1709
    %v1711 = vsel %vm234, %v1682, %v1684
    %v1712 = vsel %vm234, %v1684, %v1686
    %v1713 = vsel %vm234, %v1688, %v1690
    %v1714 = vsel %vm234, %v1690, %v1692
    %v1715 = vsel %vm234, %v1694, %v1696
    %v1716 = vsel %vm234, %v1696, %v1698
    %v1717 = vsel %vm234, %v1700, %v1702
    %v1718 = vsel %vm234, %v1702, %v1704
    %v1719 = vsel %vm234, %v1706, %v1708
    %v1720 = vsel %vm234, %v1708, %v1710
    %1731 = vst [vmem:[#allocation4 + $0x1b0] sm:$0xff] %v1711
    %1732 = vst [vmem:[#allocation4 + $0x1b8] sm:$0xff] %v1712
    %1733 = vst [vmem:[#allocation4 + $0x1c0] sm:$0xff] %v1713
    %1734 = vst [vmem:[#allocation4 + $0x1c8] sm:$0xff] %v1714
    %1735 = vst [vmem:[#allocation4 + $0x1d0] sm:$0xff] %v1715
    %1736 = vst [vmem:[#allocation4 + $0x1d8] sm:$0xff] %v1716
    %1737 = vst [vmem:[#allocation4 + $0x1e0] sm:$0xff] %v1717
    %1738 = vst [vmem:[#allocation4 + $0x1e8] sm:$0xff] %v1718
    %1739 = vst [vmem:[#allocation4 + $0x1f0] sm:$0xf] %v1719
    %1740 = vst [vmem:[#allocation4 + $0x1f8] sm:$0xf] %v1720
    %v1741 = vld [vmem:[#allocation2] sm:$0xff]
    %v1742 = vld [vmem:[#allocation2 + $0x8] sm:$0xff]
    %v1743 = vld [vmem:[#allocation2 + $0x10] sm:$0xff]
    %v1744 = vld [vmem:[#allocation2 + $0x18] sm:$0xff]
    %v1745 = vld [vmem:[#allocation2 + $0x20] sm:$0xff]
    %v1746 = vld [vmem:[#allocation2 + $0x28] sm:$0xff]
    %v1747 = vld [vmem:[#allocation2 + $0x30] sm:$0xff]
    %v1748 = vld [vmem:[#allocation2 + $0x38] sm:$0xff]
    %v1749 = vld [vmem:[#allocation2 + $0x40] sm:$0xff]
    %v1750 = vld [vmem:[#allocation2 + $0x48] sm:$0xff]
    %v1751 = vld [vmem:[#allocation2 + $0x50] sm:$0xff]
    %v1752 = vld [vmem:[#allocation2 + $0x58] sm:$0xff]
    %v1753 = vld [vmem:[#allocation2 + $0x60] sm:$0xf]
    %v1754 = vld [vmem:[#allocation2 + $0x68] sm:$0xf]
    %v1755 = vld [vmem:[#allocation2 + $0x70] sm:$0xf]
    %v1771 = vrot.slane %v1741, 4
    %v1772 = vrot.slane %v1742, 4
    %v1773 = vrot.slane %v1743, 4
    %v1774 = vrot.slane %v1744, 4
    %v1775 = vsel %vm1089, %v1771, %v1774
    %v1776 = vrot.slane %v1745, 4
    %v1777 = vsel %vm1089, %v1772, %v1776
    %v1778 = vrot.slane %v1746, 4
    %v1779 = vsel %vm1089, %v1773, %v1778
    %v1780 = vrot.slane %v1747, 4
    %v1781 = vsel %vm1089, %v1774, %v1780
    %v1782 = vrot.slane %v1748, 4
    %v1783 = vsel %vm1089, %v1776, %v1782
    %v1784 = vrot.slane %v1749, 4
    %v1785 = vsel %vm1089, %v1778, %v1784
    %v1786 = vrot.slane %v1750, 4
    %v1787 = vsel %vm1089, %v1780, %v1786
    %v1788 = vrot.slane %v1751, 4
    %v1789 = vsel %vm1089, %v1782, %v1788
    %v1790 = vrot.slane %v1752, 4
    %v1791 = vsel %vm1089, %v1784, %v1790
    %v1792 = vrot.slane %v1753, 4
    %v1793 = vsel %vm1089, %v1786, %v1792
    %v1794 = vrot.slane %v1754, 4
    %v1795 = vsel %vm1089, %v1788, %v1794
    %v1796 = vrot.slane %v1755, 4
    %v1797 = vsel %vm1089, %v1790, %v1796
    %1798 = vrot.lane.b32.xlu0 %v1771, 95
    %v1799 = vpop.permute.xlu0 %1798
    %1800 = vrot.lane.b32.xlu0 %v1772, 95
    %v1801 = vpop.permute.xlu0 %1800
    %1802 = vrot.lane.b32.xlu0 %v1773, 95
    %v1803 = vpop.permute.xlu0 %1802
    %1804 = vrot.lane.b32.xlu0 %v1775, 95
    %v1805 = vpop.permute.xlu0 %1804
    %1806 = vrot.lane.b32.xlu0 %v1777, 95
    %v1807 = vpop.permute.xlu0 %1806
    %1808 = vrot.lane.b32.xlu0 %v1779, 95
    %v1809 = vpop.permute.xlu0 %1808
    %1810 = vrot.lane.b32.xlu0 %v1781, 95
    %v1811 = vpop.permute.xlu0 %1810
    %1812 = vrot.lane.b32.xlu0 %v1783, 95
    %v1813 = vpop.permute.xlu0 %1812
    %1814 = vrot.lane.b32.xlu0 %v1785, 95
    %v1815 = vpop.permute.xlu0 %1814
    %1816 = vrot.lane.b32.xlu0 %v1787, 95
    %v1817 = vpop.permute.xlu0 %1816
    %1818 = vrot.lane.b32.xlu0 %v1789, 95
    %v1819 = vpop.permute.xlu0 %1818
    %1820 = vrot.lane.b32.xlu0 %v1791, 95
    %v1821 = vpop.permute.xlu0 %1820
    %1822 = vrot.lane.b32.xlu0 %v1793, 95
    %v1823 = vpop.permute.xlu0 %1822
    %1824 = vrot.lane.b32.xlu0 %v1795, 95
    %v1825 = vpop.permute.xlu0 %1824
    %1826 = vrot.lane.b32.xlu0 %v1797, 95
    %v1827 = vpop.permute.xlu0 %1826
    %v1828 = vsel %vm253, %v1799, %v1801
    %v1829 = vsel %vm253, %v1801, %v1803
    %v1830 = vsel %vm253, %v1805, %v1807
    %v1831 = vsel %vm253, %v1807, %v1809
    %v1832 = vsel %vm253, %v1811, %v1813
    %v1833 = vsel %vm253, %v1813, %v1815
    %v1834 = vsel %vm253, %v1817, %v1819
    %v1835 = vsel %vm253, %v1819, %v1821
    %v1836 = vsel %vm253, %v1823, %v1825
    %v1837 = vsel %vm253, %v1825, %v1827
    %1848 = vst [vmem:[#allocation4 + $0x1f0] sm:$0xf0] %v1828
    %1849 = vst [vmem:[#allocation4 + $0x1f8] sm:$0xf0] %v1829
    %1850 = vst [vmem:[#allocation4 + $0x200] sm:$0xff] %v1830
    %1851 = vst [vmem:[#allocation4 + $0x208] sm:$0xff] %v1831
    %1852 = vst [vmem:[#allocation4 + $0x210] sm:$0xff] %v1832
    %1853 = vst [vmem:[#allocation4 + $0x218] sm:$0xff] %v1833
    %1854 = vst [vmem:[#allocation4 + $0x220] sm:$0xff] %v1834
    %1855 = vst [vmem:[#allocation4 + $0x228] sm:$0xff] %v1835
    %1856 = vst [vmem:[#allocation4 + $0x230] sm:$0xff] %v1836
    %1857 = vst [vmem:[#allocation4 + $0x238] sm:$0xff] %v1837
    %v1858 = vld [vmem:[#allocation2] sm:$0xff]
    %v1859 = vld [vmem:[#allocation2 + $0x8] sm:$0xff]
    %v1860 = vld [vmem:[#allocation2 + $0x10] sm:$0xff]
    %v1861 = vld [vmem:[#allocation2 + $0x18] sm:$0xff]
    %v1862 = vld [vmem:[#allocation2 + $0x20] sm:$0xff]
    %v1863 = vld [vmem:[#allocation2 + $0x28] sm:$0xff]
    %v1864 = vld [vmem:[#allocation2 + $0x30] sm:$0xff]
    %v1865 = vld [vmem:[#allocation2 + $0x38] sm:$0xff]
    %v1866 = vld [vmem:[#allocation2 + $0x40] sm:$0xff]
    %v1867 = vld [vmem:[#allocation2 + $0x48] sm:$0xff]
    %v1868 = vld [vmem:[#allocation2 + $0x50] sm:$0xff]
    %v1869 = vld [vmem:[#allocation2 + $0x58] sm:$0xff]
    %v1870 = vld [vmem:[#allocation2 + $0x60] sm:$0xf]
    %v1871 = vld [vmem:[#allocation2 + $0x68] sm:$0xf]
    %v1872 = vld [vmem:[#allocation2 + $0x70] sm:$0xf]
    %v1873 = vmul.f32 %v1858, %v264
    %v1874 = vmul.f32 %v1859, %v268
    %v1875 = vmul.f32 %v1860, %v266
    %v1876 = vmul.f32 %v1861, %v264
    %v1877 = vmul.f32 %v1862, %v268
    %v1878 = vmul.f32 %v1863, %v266
    %v1879 = vmul.f32 %v1864, %v264
    %v1880 = vmul.f32 %v1865, %v268
    %v1881 = vmul.f32 %v1866, %v266
    %v1882 = vmul.f32 %v1867, %v264
    %v1883 = vmul.f32 %v1868, %v268
    %v1884 = vmul.f32 %v1869, %v266
    %v1885 = vmul.f32 %v1870, %v264
    %v1886 = vmul.f32 %v1871, %v268
    %v1887 = vmul.f32 %v1872, %v266
    %1903 = vrot.lane.b32.xlu0 %v1873, 94
    %v1904 = vpop.permute.xlu0 %1903
    %1905 = vrot.lane.b32.xlu0 %v1874, 94
    %v1906 = vpop.permute.xlu0 %1905
    %1907 = vrot.lane.b32.xlu0 %v1875, 94
    %v1908 = vpop.permute.xlu0 %1907
    %1909 = vrot.lane.b32.xlu0 %v1876, 94
    %v1910 = vpop.permute.xlu0 %1909
    %1911 = vrot.lane.b32.xlu0 %v1877, 94
    %v1912 = vpop.permute.xlu0 %1911
    %1913 = vrot.lane.b32.xlu0 %v1878, 94
    %v1914 = vpop.permute.xlu0 %1913
    %1915 = vrot.lane.b32.xlu0 %v1879, 94
    %v1916 = vpop.permute.xlu0 %1915
    %1917 = vrot.lane.b32.xlu0 %v1880, 94
    %v1918 = vpop.permute.xlu0 %1917
    %1919 = vrot.lane.b32.xlu0 %v1881, 94
    %v1920 = vpop.permute.xlu0 %1919
    %1921 = vrot.lane.b32.xlu0 %v1882, 94
    %v1922 = vpop.permute.xlu0 %1921
    %1923 = vrot.lane.b32.xlu0 %v1883, 94
    %v1924 = vpop.permute.xlu0 %1923
    %1925 = vrot.lane.b32.xlu0 %v1884, 94
    %v1926 = vpop.permute.xlu0 %1925
    %1927 = vrot.lane.b32.xlu0 %v1885, 94
    %v1928 = vpop.permute.xlu0 %1927
    %1929 = vrot.lane.b32.xlu0 %v1886, 94
    %v1930 = vpop.permute.xlu0 %1929
    %1931 = vrot.lane.b32.xlu0 %v1887, 94
    %v1932 = vpop.permute.xlu0 %1931
    %v1933 = vsel %vm284, %v1904, %v1906
    %v1934 = vsel %vm284, %v1906, %v1908
    %v1935 = vsel %vm284, %v1910, %v1912
    %v1936 = vsel %vm284, %v1912, %v1914
    %v1937 = vsel %vm284, %v1916, %v1918
    %v1938 = vsel %vm284, %v1918, %v1920
    %v1939 = vsel %vm284, %v1922, %v1924
    %v1940 = vsel %vm284, %v1924, %v1926
    %v1941 = vsel %vm284, %v1928, %v1930
    %v1942 = vsel %vm284, %v1930, %v1932
    %1953 = vst [vmem:[#allocation4 + $0x240] sm:$0xff] %v1933
    %1954 = vst [vmem:[#allocation4 + $0x248] sm:$0xff] %v1934
    %1955 = vst [vmem:[#allocation4 + $0x250] sm:$0xff] %v1935
    %1956 = vst [vmem:[#allocation4 + $0x258] sm:$0xff] %v1936
    %1957 = vst [vmem:[#allocation4 + $0x260] sm:$0xff] %v1937
    %1958 = vst [vmem:[#allocation4 + $0x268] sm:$0xff] %v1938
    %1959 = vst [vmem:[#allocation4 + $0x270] sm:$0xff] %v1939
    %1960 = vst [vmem:[#allocation4 + $0x278] sm:$0xff] %v1940
    %1961 = vst [vmem:[#allocation4 + $0x280] sm:$0xf] %v1941
    %1962 = vst [vmem:[#allocation4 + $0x288] sm:$0xf] %v1942
    %v1963 = vld [vmem:[#allocation9] sm:$0xff]
    %v1964 = vld [vmem:[#allocation9 + $0x8] sm:$0xff]
    %v1965 = vld [vmem:[#allocation9 + $0x10] sm:$0xff]
    %v1966 = vld [vmem:[#allocation4] sm:$0xff]
    %v1967 = vld [vmem:[#allocation4 + $0x8] sm:$0xff]
    %v1968 = vld [vmem:[#allocation4 + $0x10] sm:$0xff]
    %v1969 = vld [vmem:[#allocation4 + $0x18] sm:$0xff]
    %v1970 = vld [vmem:[#allocation4 + $0x20] sm:$0xff]
    %v1971 = vld [vmem:[#allocation4 + $0x28] sm:$0xff]
    %v1972 = vld [vmem:[#allocation4 + $0x30] sm:$0xff]
    %v1973 = vld [vmem:[#allocation4 + $0x38] sm:$0xff]
    %v1974 = vld [vmem:[#allocation4 + $0x40] sm:$0xff]
    %v1975 = vld [vmem:[#allocation4 + $0x48] sm:$0xff]
    %v1976 = vld [vmem:[#allocation4 + $0x50] sm:$0xff]
    %v1977 = vld [vmem:[#allocation4 + $0x58] sm:$0xff]
    %v1978 = vld [vmem:[#allocation4 + $0x60] sm:$0xff]
    %v1979 = vld [vmem:[#allocation4 + $0x68] sm:$0xff]
    %v1980 = vld [vmem:[#allocation4 + $0x70] sm:$0xff]
    %v1981 = vld [vmem:[#allocation4 + $0x78] sm:$0xff]
    %v1982 = vld [vmem:[#allocation4 + $0x80] sm:$0xff]
    %v1983 = vld [vmem:[#allocation4 + $0x88] sm:$0xff]
    %v1984 = vld [vmem:[#allocation4 + $0x90] sm:$0xff]
    %v1985 = vld [vmem:[#allocation4 + $0x98] sm:$0xff]
    %v1986 = vld [vmem:[#allocation4 + $0xa0] sm:$0xff]
    %v1987 = vld [vmem:[#allocation4 + $0xa8] sm:$0xff]
    %v1988 = vld [vmem:[#allocation4 + $0xb0] sm:$0xff]
    %v1989 = vld [vmem:[#allocation4 + $0xb8] sm:$0xff]
    %v1990 = vld [vmem:[#allocation4 + $0xc0] sm:$0xff]
    %v1991 = vld [vmem:[#allocation4 + $0xc8] sm:$0xff]
    %v1992 = vld [vmem:[#allocation4 + $0xd0] sm:$0xff]
    %v1993 = vld [vmem:[#allocation4 + $0xd8] sm:$0xff]
    %v1994 = vld [vmem:[#allocation4 + $0xe0] sm:$0xff]
    %v1995 = vld [vmem:[#allocation4 + $0xe8] sm:$0xff]
    %v1996 = vld [vmem:[#allocation4 + $0xf0] sm:$0xff]
    %v1997 = vld [vmem:[#allocation4 + $0xf8] sm:$0xff]
    %v1998 = vld [vmem:[#allocation4 + $0x100] sm:$0xff]
    %v1999 = vld [vmem:[#allocation4 + $0x108] sm:$0xff]
    %v2000 = vld [vmem:[#allocation4 + $0x110] sm:$0xff]
    %v2001 = vld [vmem:[#allocation4 + $0x118] sm:$0xff]
    %v2002 = vld [vmem:[#allocation4 + $0x120] sm:$0xff]
    %v2003 = vld [vmem:[#allocation4 + $0x128] sm:$0xff]
    %v2004 = vld [vmem:[#allocation4 + $0x130] sm:$0xff]
    %v2005 = vld [vmem:[#allocation4 + $0x138] sm:$0xff]
    %v2006 = vld [vmem:[#allocation4 + $0x140] sm:$0xff]
    %v2007 = vld [vmem:[#allocation4 + $0x148] sm:$0xff]
    %v2008 = vld [vmem:[#allocation4 + $0x150] sm:$0xff]
    %v2009 = vld [vmem:[#allocation4 + $0x158] sm:$0xff]
    %v2010 = vld [vmem:[#allocation4 + $0x160] sm:$0xff]
    %v2011 = vld [vmem:[#allocation4 + $0x168] sm:$0xff]
    %v2012 = vld [vmem:[#allocation4 + $0x170] sm:$0xff]
    %v2013 = vld [vmem:[#allocation4 + $0x178] sm:$0xff]
    %v2014 = vld [vmem:[#allocation4 + $0x180] sm:$0xff]
    %v2015 = vld [vmem:[#allocation4 + $0x188] sm:$0xff]
    %v2016 = vld [vmem:[#allocation4 + $0x190] sm:$0xff]
    %v2017 = vld [vmem:[#allocation4 + $0x198] sm:$0xff]
    %v2018 = vld [vmem:[#allocation4 + $0x1a0] sm:$0xff]
    %v2019 = vld [vmem:[#allocation4 + $0x1a8] sm:$0xff]
    %v2020 = vld [vmem:[#allocation4 + $0x1b0] sm:$0xff]
    %v2021 = vld [vmem:[#allocation4 + $0x1b8] sm:$0xff]
    %v2022 = vld [vmem:[#allocation4 + $0x1c0] sm:$0xff]
    %v2023 = vld [vmem:[#allocation4 + $0x1c8] sm:$0xff]
    %v2024 = vld [vmem:[#allocation4 + $0x1d0] sm:$0xff]
    %v2025 = vld [vmem:[#allocation4 + $0x1d8] sm:$0xff]
    %v2026 = vld [vmem:[#allocation4 + $0x1e0] sm:$0xff]
    %v2027 = vld [vmem:[#allocation4 + $0x1e8] sm:$0xff]
    %v2028 = vld [vmem:[#allocation4 + $0x1f0] sm:$0xff]
    %v2029 = vld [vmem:[#allocation4 + $0x1f8] sm:$0xff]
    %v2030 = vld [vmem:[#allocation4 + $0x200] sm:$0xff]
    %v2031 = vld [vmem:[#allocation4 + $0x208] sm:$0xff]
    %v2032 = vld [vmem:[#allocation4 + $0x210] sm:$0xff]
    %v2033 = vld [vmem:[#allocation4 + $0x218] sm:$0xff]
    %v2034 = vld [vmem:[#allocation4 + $0x220] sm:$0xff]
    %v2035 = vld [vmem:[#allocation4 + $0x228] sm:$0xff]
    %v2036 = vld [vmem:[#allocation4 + $0x230] sm:$0xff]
    %v2037 = vld [vmem:[#allocation4 + $0x238] sm:$0xff]
    %v2038 = vld [vmem:[#allocation4 + $0x240] sm:$0xff]
    %v2039 = vld [vmem:[#allocation4 + $0x248] sm:$0xff]
    %v2040 = vld [vmem:[#allocation4 + $0x250] sm:$0xff]
    %v2041 = vld [vmem:[#allocation4 + $0x258] sm:$0xff]
    %v2042 = vld [vmem:[#allocation4 + $0x260] sm:$0xff]
    %v2043 = vld [vmem:[#allocation4 + $0x268] sm:$0xff]
    %v2044 = vld [vmem:[#allocation4 + $0x270] sm:$0xff]
    %v2045 = vld [vmem:[#allocation4 + $0x278] sm:$0xff]
    %v2046 = vld [vmem:[#allocation4 + $0x280] sm:$0xf]
    %v2047 = vld [vmem:[#allocation4 + $0x288] sm:$0xf]
    %vm2048 = vcmask 556032
    %v2050 = vsel %vm2048, %v1965, 0
    %v2053 = vsel %vm1089, %v2046, 0
    %v2056 = vsel %vm1089, %v2047, 0
    %2058 = vmatprep.subr.mxu0 %v1967
    %2059 = vmatpush1.msra.mxu0 %v1966
    %2060 = vmatprep.subr.mxu0 %v1969
    %2061 = vmatpush1.msra.mxu0 %v1968
    %2062 = vmatprep.subr.mxu0 %v1971
    %2063 = vmatpush1.msra.mxu0 %v1970
    %2064 = vmatprep.subr.mxu0 %v1973
    %2065 = vmatpush1.msra.mxu0 %v1972
    %2066 = vmatprep.subr.mxu0 %v1975
    %2067 = vmatpush1.msra.mxu0 %v1974
    %2068 = vmatprep.subr.mxu0 %v1977
    %2069 = vmatpush1.msra.mxu0 %v1976
    %2070 = vmatprep.subr.mxu0 %v1979
    %2071 = vmatpush1.msra.mxu0 %v1978
    %2072 = vmatprep.subr.mxu0 %v1981
    %2073 = vmatpush1.msra.mxu0 %v1980
    %2074 = vmatprep.subr.mxu0 %v1983
    %2075 = vmatpush1.msra.mxu0 %v1982
    %2076 = vmatprep.subr.mxu0 %v1985
    %2077 = vmatpush1.msra.mxu0 %v1984
    %2078 = vmatprep.subr.mxu0 %v1987
    %2079 = vmatpush1.msra.mxu0 %v1986
    %2080 = vmatprep.subr.mxu0 %v1989
    %2081 = vmatpush1.msra.mxu0 %v1988
    %2082 = vmatprep.subr.mxu0 %v1991
    %2083 = vmatpush1.msra.mxu0 %v1990
    %2084 = vmatprep.subr.mxu0 %v1993
    %2085 = vmatpush1.msra.mxu0 %v1992
    %2086 = vmatprep.subr.mxu0 %v1995
    %2087 = vmatpush1.msra.mxu0 %v1994
    %2088 = vmatprep.subr.mxu0 %v1997
    %2089 = vmatpush1.msra.mxu0 %v1996
    %2090 = vmatprep.subr.mxu0 %v1999
    %2091 = vmatpush1.msra.mxu0 %v1998
    %2092 = vmatprep.subr.mxu0 %v2001
    %2093 = vmatpush1.msra.mxu0 %v2000
    %2094 = vmatprep.subr.mxu0 %v2003
    %2095 = vmatpush1.msra.mxu0 %v2002
    %2096 = vmatprep.subr.mxu0 %v2005
    %2097 = vmatpush1.msra.mxu0 %v2004
    %2098 = vmatprep.subr.mxu0 %v2007
    %2099 = vmatpush1.msra.mxu0 %v2006
    %2100 = vmatprep.subr.mxu0 %v2009
    %2101 = vmatpush1.msra.mxu0 %v2008
    %2102 = vmatprep.subr.mxu0 %v2011
    %2103 = vmatpush1.msra.mxu0 %v2010
    %2104 = vmatprep.subr.mxu0 %v2013
    %2105 = vmatpush1.msra.mxu0 %v2012
    %2106 = vmatprep.subr.mxu0 %v2015
    %2107 = vmatpush1.msra.mxu0 %v2014
    %2108 = vmatprep.subr.mxu0 %v2017
    %2109 = vmatpush1.msra.mxu0 %v2016
    %2110 = vmatprep.subr.mxu0 %v2019
    %2111 = vmatpush1.msra.mxu0 %v2018
    %2112 = vmatprep.subr.mxu0 %v2021
    %2113 = vmatpush1.msra.mxu0 %v2020
    %2114 = vmatprep.subr.mxu0 %v2023
    %2115 = vmatpush1.msra.mxu0 %v2022
    %2116 = vmatprep.subr.mxu0 %v2025
    %2117 = vmatpush1.msra.mxu0 %v2024
    %2118 = vmatprep.subr.mxu0 %v2027
    %2119 = vmatpush1.msra.mxu0 %v2026
    %2120 = vmatprep.subr.mxu0 %v2029
    %2121 = vmatpush1.msra.mxu0 %v2028
    %2122 = vmatprep.mubr.f32.mxu0 %v1964
    %2123 = vmatmul.mubr.f32.gmra.mrb[0].mxu0 %v1963
    %v2124 = vpop.f32.mrb[0].mxu0
    %v2125 = vadd.f32 0.0, %v2124
    %v2126 = vpop.f32.mrb[0].mxu0
    %v2127 = vadd.f32 0.0, %v2126
    %2128 = vdwg.mxu0
    %2129 = vmatprep.subr.mxu0 %v2031
    %2130 = vmatpush1.msra.mxu0 %v2030
    %2131 = vmatprep.subr.mxu0 %v2033
    %2132 = vmatpush1.msra.mxu0 %v2032
    %2133 = vmatprep.subr.mxu0 %v2035
    %2134 = vmatpush1.msra.mxu0 %v2034
    %2135 = vmatprep.subr.mxu0 %v2037
    %2136 = vmatpush1.msra.mxu0 %v2036
    %2137 = vmatprep.subr.mxu0 %v2039
    %2138 = vmatpush1.msra.mxu0 %v2038
    %2139 = vmatprep.subr.mxu0 %v2041
    %2140 = vmatpush1.msra.mxu0 %v2040
    %2141 = vmatprep.subr.mxu0 %v2043
    %2142 = vmatpush1.msra.mxu0 %v2042
    %2143 = vmatprep.subr.mxu0 %v2045
    %2144 = vmatpush1.msra.mxu0 %v2044
    %2145 = vmatprep.subr.mxu0 %v2056
    %2146 = vmatpush1.msra.mxu0 %v2053
    %2147 = vmatprep.subr.mxu0 0.0
    %2148 = vmatpush1.msra.mxu0 0.0
    %2149 = vmatprep.subr.mxu0 0.0
    %2150 = vmatpush1.msra.mxu0 0.0
    %2151 = vmatprep.subr.mxu0 0.0
    %2152 = vmatpush1.msra.mxu0 0.0
    %2153 = vmatprep.subr.mxu0 0.0
    %2154 = vmatpush1.msra.mxu0 0.0
    %2155 = vmatprep.subr.mxu0 0.0
    %2156 = vmatpush1.msra.mxu0 0.0
    %2157 = vmatprep.subr.mxu0 0.0
    %2158 = vmatpush1.msra.mxu0 0.0
    %2159 = vmatprep.subr.mxu0 0.0
    %2160 = vmatpush1.msra.mxu0 0.0
    %2161 = vmatprep.subr.mxu0 0.0
    %2162 = vmatpush1.msra.mxu0 0.0
    %2163 = vmatprep.subr.mxu0 0.0
    %2164 = vmatpush1.msra.mxu0 0.0
    %2165 = vmatprep.subr.mxu0 0.0
    %2166 = vmatpush1.msra.mxu0 0.0
    %2167 = vmatprep.subr.mxu0 0.0
    %2168 = vmatpush1.msra.mxu0 0.0
    %2169 = vmatprep.subr.mxu0 0.0
    %2170 = vmatpush1.msra.mxu0 0.0
    %2171 = vmatprep.subr.mxu0 0.0
    %2172 = vmatpush1.msra.mxu0 0.0
    %2173 = vmatprep.subr.mxu0 0.0
    %2174 = vmatpush1.msra.mxu0 0.0
    %2175 = vmatprep.subr.mxu0 0.0
    %2176 = vmatpush1.msra.mxu0 0.0
    %2177 = vmatprep.subr.mxu0 0.0
    %2178 = vmatpush1.msra.mxu0 0.0
    %2179 = vmatprep.subr.mxu0 0.0
    %2180 = vmatpush1.msra.mxu0 0.0
    %2181 = vmatprep.subr.mxu0 0.0
    %2182 = vmatpush1.msra.mxu0 0.0
    %2183 = vmatprep.subr.mxu0 0.0
    %2184 = vmatpush1.msra.mxu0 0.0
    %2185 = vmatprep.subr.mxu0 0.0
    %2186 = vmatpush1.msra.mxu0 0.0
    %2187 = vmatprep.subr.mxu0 0.0
    %2188 = vmatpush1.msra.mxu0 0.0
    %2189 = vmatprep.subr.mxu0 0.0
    %2190 = vmatpush1.msra.mxu0 0.0
    %2191 = vmatprep.subr.mxu0 0.0
    %2192 = vmatpush1.msra.mxu0 0.0
    %2193 = vmatprep.mubr.f32.mxu0 0.0
    %2194 = vmatmul.mubr.f32.gmra.mrb[0].mxu0 %v2050
    %v2195 = vpop.f32.mrb[0].mxu0
    %v2196 = vadd.f32 %v2125, %v2195
    %v2197 = vpop.f32.mrb[0].mxu0
    %v2198 = vadd.f32 %v2127, %v2197
    %2199 = vdwg.mxu0
    %v2200 = vadd.f32 %v2196, %v2198
    %2201 = vadd.xlane.f32.xlu0 %v2200
    %v2202 = vpop.xlane.xlu0 %2201
    %v2203 = vmul.f32 %v2202, 0.00390625
    %v2204 = vsub.f32 %v2196, %v2203
    %v2205 = vsub.f32 %v2198, %v2203
    %v2206 = vmul.f32 %v2204, %v2204
    %v2207 = vmul.f32 %v2205, %v2205
    %v2208 = vadd.f32 %v2206, %v2207
    %2209 = vadd.xlane.f32.xlu0 %v2208
    %v2210 = vpop.xlane.xlu0 %2209
    %v2211 = vmul.f32 %v2210, 0.00390625
    %v2212 = vadd.f32 %v2211, 1e-05
    %v2213 = vrsqrt.pop %v2212
    %v2214 = vmul.f32 %v2204, %v2213
    %v2215 = vmul.f32 %v2205, %v2213
    %v2216 = vld [vmem:[#allocation5] sm:$0x1]
    %vm2217 = vcmp.ge.f32.partialorder %v2214, 0.0
    %vm2218 = vcmp.ge.f32.partialorder %v2215, 0.0
    %v2220 = vlaneseq
    %v2221 = vshrl.u32 %v2220, 7
    %v2222 = vsub.s32 0, %v2221
    %v2223 = vrot.slane %v2216, %v2222
    %2224 = vset.pattern.permute.xlu0 0
    %2225 = vperm.xlu0 %2224, %v2223
    %v2226 = vpop.permute.xlu0 %2225
    %v2228 = vmul.f32 %v2226, %v2214
    %v2229 = vmul.f32 %v2226, %v2215
    %v2230 = vsel %vm2217, %v2214, %v2228
    %v2231 = vsel %vm2218, %v2215, %v2229
    %v2232 = vld [vmem:[#allocation6] sm:$0xff]
    %v2233 = vld [vmem:[#allocation6 + $0x8] sm:$0xff]
    %v2234 = vld [vmem:[#allocation6 + $0x10] sm:$0xff]
    %2238 = vrot.lane.b32.xlu0 %v2232, 111
    %v2239 = vpop.permute.xlu0 %2238
    %2240 = vrot.lane.b32.xlu0 %v2233, 111
    %v2241 = vpop.permute.xlu0 %2240
    %2242 = vrot.lane.b32.xlu0 %v2234, 111
    %v2243 = vpop.permute.xlu0 %2242
    %v2244 = vsel %vm172, %v2239, %v2241
    %v2245 = vsel %vm172, %v2241, %v2243
    %v2248 = vadd.f32 %v2230, %v2244
    %v2249 = vadd.f32 %v2231, %v2245
    %2250 = vst [vmem:[#allocation11] sm:$0xff] %v2248
    %2251 = vst [vmem:[#allocation11 + $0x8] sm:$0xff] %v2249
    // Predicated region
    $region34: #{tpu_custom_call.1} parent=1 // pred_check
      _
    $region35: #{tpu_custom_call.1} parent=1 // pred_check_branch
      %2253 = sbr.rel (0) target = $region37
    $region36: #{tpu_custom_call.1} parent=1 // pred_region
      %s2255 = ssub.s32 256, 256
      %2256 = vsyncadd [#allocation8], %s2255
      %s2258 = sshll.u32 [#allocation11], 4
      %s2259 = int_to_ptr.vmem [resolvable:$true] %s2258
      %2261 = dma.vmem_to_hbm [thread:$0]  %s2259, 256, %s6, [#allocation8]
    $region37: #{tpu_custom_call.1} parent=1 // pred_fallthru
      _
    // Predicated region
    $region38: #{tpu_custom_call.1} parent=1 // pred_check
      _
    $region39: #{tpu_custom_call.1} parent=1 // pred_check_branch
      %2263 = sbr.rel (0) target = $region41
    $region40: #{tpu_custom_call.1} parent=1 // pred_region
      %2264 = dma.done [#allocation8], 256
    $region41: #{tpu_custom_call.1} parent=1 // pred_fallthru
      _
    %2265 = vsyncpa [#allocation7], 1
    %2266 = vsyncpa [#allocation10], 1
    %2267 = vsyncpa [#allocation8], 1

</llo_original>
